<compile_context>
chip_gen: v7x
topology: tpu7x:2x2x1
jax: 0.10.0
libtpu: 0.0.40
codegen_flags: <defaults>
</compile_context>

<pallas_src>
import math

import jax
import jax.numpy as jnp
from jax.experimental import pallas as pl
from jax.experimental.pallas import tpu as pltpu

# ----------------------------- configuration ------------------------------
MAX_SIZE = 15          # sequence length used by the PyTorch module
S_PAD = 16             # padded sequence length (sublane friendly)
VOCAB = 128
HIDDEN = 32            # synthetic tinybert hidden size
NUM_HEADS = 2
HEAD_DIM = HIDDEN // NUM_HEADS
INTERMEDIATE = 64
NUM_LAYERS = 2
HIDDEN_DIM = 32        # classifier hidden_dim (nn.Linear outputs)
NUM_CATEGORIES = 8
BATCH = 2
LN_EPS = 1e-12

# ---- constH (f32, width HIDDEN) row offsets ----
CH_EMBLN = 0                                  # 2 rows: embedding LayerNorm gamma, beta
CH_LAYER = CH_EMBLN + 2                       # 6 rows/layer: bo, ln1_g, ln1_b, b2, ln2_g, ln2_b
CH_WSEQ = CH_LAYER + 6 * NUM_LAYERS           # 16 rows: fc_sequence weight (zero pad row)
CH_WCAT = CH_WSEQ + S_PAD                     # 8 rows: fc_categorical weight
CH_BSEQ = CH_WCAT + NUM_CATEGORIES            # fc_sequence bias (+ folded QA end bias)
CH_BCAT = CH_BSEQ + 1                         # fc_categorical bias
CH_WCS = CH_BCAT + 1                          # fc_combined weight, sequence half
CH_WCC = CH_WCS + 1                           # fc_combined weight, categorical half
CH_WQA = CH_WCC + 1                           # QA end-logit projection column
CH_BCOMB = CH_WQA + 1                         # fc_combined bias (col 0)
CH_ROWS = CH_BCOMB + 1                        # 44
CH_ROWS_PAD = 48

# ---- constW (f32, width 3*HIDDEN) row offsets ----
CW_QKVB = 0                                   # L rows: [bq*scale | bk | bv]
CW_B1 = CW_QKVB + NUM_LAYERS                  # L rows: FFN b1 (cols 0:64)
CW_ROWS = CW_B1 + NUM_LAYERS                  # 4

# ---- wA (bf16, width HIDDEN) row offsets ----
WA_EMB = 0                                    # VOCAB rows: word embedding
WA_POS = WA_EMB + VOCAB                       # S_PAD rows: position + token-type embedding
WA_W2 = WA_POS + S_PAD                        # L*INTERMEDIATE rows: FFN W2 per layer
WA_ROWS = WA_W2 + NUM_LAYERS * INTERMEDIATE   # 272

# ---- wB (bf16, width 3*HIDDEN) row offsets ----
WB_QKV = 0                                    # L*HIDDEN rows: [Wq*scale | Wk | Wv]
WB_WOW1 = WB_QKV + NUM_LAYERS * HIDDEN        # L*HIDDEN rows: [Wo | W1]
WB_ROWS = WB_WOW1 + NUM_LAYERS * HIDDEN       # 128


# ----------------------------- kernel helpers ------------------------------
def _layer_norm(x, g, b):
    mu = jnp.mean(x, axis=-1, keepdims=True)
    var = jnp.maximum(jnp.mean(x * x, axis=-1, keepdims=True) - mu * mu, 0.0)
    return (x - mu) * jax.lax.rsqrt(var + LN_EPS) * g + b


# --------------------------- single fused kernel ----------------------------
def fused_forward_kernel(ids_ref, mask_ref, cat_ref, wa_ref, wb_ref, ch_ref, cw_ref,
                         out_ref, ctx_scr, xseq_scr):
    B = mask_ref.shape[0]
    rows = B * S_PAD

    ch = ch_ref[...]                                        # (48, 32) f32 constants

    # ---- embeddings: [token one-hot | position one-hot] @ [word_emb ; pos+type] ----
    ids = ids_ref[...]                                      # (rows, 1) int32
    col = jax.lax.broadcasted_iota(jnp.int32, (rows, VOCAB + S_PAD), 1)
    row = jax.lax.broadcasted_iota(jnp.int32, (rows, VOCAB + S_PAD), 0)
    # token ids are < VOCAB, so the two hit-sets are disjoint by construction
    hit = jnp.logical_or(col == ids, (col - VOCAB) == (row & (S_PAD - 1)))
    onehot = hit.astype(jnp.float32).astype(jnp.bfloat16)   # (rows, 144)
    x = jnp.dot(onehot, wa_ref[0:VOCAB + S_PAD, :],
                preferred_element_type=jnp.float32)         # (rows, H) f32
    x = _layer_norm(x, ch[CH_EMBLN:CH_EMBLN + 1, :], ch[CH_EMBLN + 1:CH_EMBLN + 2, :])

    mask_bias = (1.0 - mask_ref[...]) * (-1e4)              # (B, S_PAD) additive bias

    # ---- transformer encoder, all weights resident in VMEM ----
    for l in range(NUM_LAYERS):
        lv = CH_LAYER + 6 * l
        bo, ln1_g, ln1_b = ch[lv:lv + 1, :], ch[lv + 1:lv + 2, :], ch[lv + 2:lv + 3, :]
        b2, ln2_g, ln2_b = ch[lv + 3:lv + 4, :], ch[lv + 4:lv + 5, :], ch[lv + 5:lv + 6, :]

        # fused Q|K|V projection for all batches & heads: one lane-dense bf16 matmul
        wqkv_l = wb_ref[WB_QKV + l * HIDDEN:WB_QKV + (l + 1) * HIDDEN, :]   # (32,96) bf16
        qkv = jnp.dot(x.astype(jnp.bfloat16), wqkv_l,
                      preferred_element_type=jnp.float32)
        qkv = qkv + cw_ref[CW_QKVB + l:CW_QKVB + l + 1, :]                   # (rows,96)

        # tiny per-(batch, head) score/context matmuls; contexts written to scratch
        for bi in range(B):                                  # static, tiny batch
            r0 = bi * S_PAD
            bias_b = mask_bias[bi:bi + 1, :]                 # (1, S_PAD)
            for hh in range(NUM_HEADS):                      # static head loop
                c0 = hh * HEAD_DIM
                q = qkv[r0:r0 + S_PAD, c0:c0 + HEAD_DIM]
                k = qkv[r0:r0 + S_PAD, HIDDEN + c0:HIDDEN + c0 + HEAD_DIM]
                v = qkv[r0:r0 + S_PAD, 2 * HIDDEN + c0:2 * HIDDEN + c0 + HEAD_DIM]
                # scores = q @ k^T  (1/sqrt(dH) pre-folded into Wq, bq at pack time)
                s = jax.lax.dot_general(q.astype(jnp.bfloat16), k.astype(jnp.bfloat16),
                                        (((1,), (1,)), ((), ())),
                                        preferred_element_type=jnp.float32)  # (16,16)
                s = s + bias_b
                s = s - jnp.max(s, axis=-1, keepdims=True)
                p = jnp.exp(s)
                p = p * pl.reciprocal(jnp.sum(p, axis=-1, keepdims=True), approx=True)
                ctx = jnp.dot(p.astype(jnp.bfloat16), v.astype(jnp.bfloat16),
                              preferred_element_type=jnp.float32)            # (16,16)
                ctx_scr[r0:r0 + S_PAD, c0:c0 + HEAD_DIM] = ctx

        # single fused output projection over all heads/batches + FFN
        wow1 = wb_ref[WB_WOW1 + l * HIDDEN:WB_WOW1 + (l + 1) * HIDDEN, :]    # (32,96) bf16
        attn = jnp.dot(ctx_scr[...].astype(jnp.bfloat16), wow1[:, 0:HIDDEN],
                       preferred_element_type=jnp.float32) + bo
        h1 = _layer_norm(x + attn, ln1_g, ln1_b)
        ff = jnp.dot(h1.astype(jnp.bfloat16), wow1[:, HIDDEN:HIDDEN + INTERMEDIATE],
                     preferred_element_type=jnp.float32)
        ff = ff + cw_ref[CW_B1 + l:CW_B1 + l + 1, 0:INTERMEDIATE]
        # TODO(synk): HF BERT uses the exact erf GELU; tanh approximation kept
        #             here for guaranteed Mosaic lowering (tiny numeric delta).
        ff = jax.nn.gelu(ff, approximate=True)
        w2_l = wa_ref[WA_W2 + l * INTERMEDIATE:WA_W2 + (l + 1) * INTERMEDIATE, :]
        ff = jnp.dot(ff.astype(jnp.bfloat16), w2_l,
                     preferred_element_type=jnp.float32) + b2
        x = _layer_norm(h1 + ff, ln2_g, ln2_b)

    # ---- fused QA end-logits + classifier head (f32, tiny) ----
    w_seq_p = ch[CH_WSEQ:CH_WSEQ + S_PAD, :]
    wqa_row = ch[CH_WQA:CH_WQA + 1, :]
    for bi in range(B):
        xb = x[bi * S_PAD:(bi + 1) * S_PAD, :]               # (S_PAD, H)
        # end-logits row: (1, S_PAD) = w_qa_end . x[b]   (qa end bias folded into b_seq)
        end_row = jax.lax.dot_general(wqa_row, xb, (((1,), (1,)), ((), ())),
                                      preferred_element_type=jnp.float32)
        xseq_scr[bi:bi + 1, :] = jnp.dot(end_row, w_seq_p,
                                         preferred_element_type=jnp.float32)

    x_seq = xseq_scr[...] + ch[CH_BSEQ:CH_BSEQ + 1, :]        # (B, HIDDEN_DIM)
    x_cat = jnp.dot(cat_ref[...], ch[CH_WCAT:CH_WCAT + NUM_CATEGORIES, :],
                    preferred_element_type=jnp.float32) + ch[CH_BCAT:CH_BCAT + 1, :]
    # ReLU(concat([xs, xc])) == concat([ReLU(xs), ReLU(xc)])
    xs = jnp.maximum(x_seq, 0.0)
    xc = jnp.maximum(x_cat, 0.0)
    # fc_combined on concat == xs @ W[:Hd] + xc @ W[Hd:]  (avoids lane concat)
    z = (jax.lax.dot_general(xs, ch[CH_WCS:CH_WCS + 1, :], (((1,), (1,)), ((), ())),
                             preferred_element_type=jnp.float32)
         + jax.lax.dot_general(xc, ch[CH_WCC:CH_WCC + 1, :], (((1,), (1,)), ((), ())),
                               preferred_element_type=jnp.float32)
         + ch[CH_BCOMB:CH_BCOMB + 1, 0:1])
    out_ref[...] = jax.nn.sigmoid(z)


# ------------------------------ parameters ----------------------------------
def init_params(key):
    keys = iter(jax.random.split(key, 64))

    def nrm(shape, scale=0.02):
        return scale * jax.random.normal(next(keys), shape, jnp.float32)

    p = {
        'word_emb': nrm((VOCAB, HIDDEN)),
        'pos_emb': nrm((MAX_SIZE, HIDDEN)),
        'type_emb': nrm((2, HIDDEN)),
        'emb_ln_g': jnp.ones((HIDDEN,), jnp.float32),
        'emb_ln_b': jnp.zeros((HIDDEN,), jnp.float32),
        'layers': [],
    }
    for _ in range(NUM_LAYERS):
        p['layers'].append(dict(
            wq=nrm((HIDDEN, HIDDEN)), bq=jnp.zeros((1, HIDDEN), jnp.float32),
            wk=nrm((HIDDEN, HIDDEN)), bk=jnp.zeros((1, HIDDEN), jnp.float32),
            wv=nrm((HIDDEN, HIDDEN)), bv=jnp.zeros((1, HIDDEN), jnp.float32),
            wo=nrm((HIDDEN, HIDDEN)), bo=jnp.zeros((1, HIDDEN), jnp.float32),
            ln1_g=jnp.ones((1, HIDDEN), jnp.float32),
            ln1_b=jnp.zeros((1, HIDDEN), jnp.float32),
            w1=nrm((HIDDEN, INTERMEDIATE)), b1=jnp.zeros((1, INTERMEDIATE), jnp.float32),
            w2=nrm((INTERMEDIATE, HIDDEN)), b2=jnp.zeros((1, HIDDEN), jnp.float32),
            ln2_g=jnp.ones((1, HIDDEN), jnp.float32),
            ln2_b=jnp.zeros((1, HIDDEN), jnp.float32),
        ))
    # QA output head (start/end logits); the classifier only uses end logits.
    p['w_qa'] = nrm((HIDDEN, 2))
    p['b_qa'] = jnp.zeros((1, 2), jnp.float32)
    # classifier head weights (stored as [in, out] == transposed nn.Linear weight)
    p['w_seq'] = nrm((MAX_SIZE, HIDDEN_DIM), 0.1)
    p['b_seq'] = nrm((1, HIDDEN_DIM), 0.1)
    p['w_cat'] = nrm((NUM_CATEGORIES, HIDDEN_DIM), 0.1)
    p['b_cat'] = nrm((1, HIDDEN_DIM), 0.1)
    p['w_comb'] = nrm((2 * HIDDEN_DIM, 1), 0.1)
    p['b_comb'] = nrm((1, 1), 0.1)
    return p


def pack_params(p):
    """Pack the many small tensors into 4 bulk VMEM operands (2 bf16, 2 f32)."""
    assert HIDDEN == HIDDEN_DIM
    scale = 1.0 / math.sqrt(HEAD_DIM)

    def zrow(n, w):
        return jnp.zeros((n, w), jnp.float32)

    # --- bf16 slab A: word emb + (pos+type) emb + FFN W2 per layer (width H) ---
    pos_pad = jnp.concatenate([p['pos_emb'], zrow(S_PAD - MAX_SIZE, HIDDEN)], axis=0)
    emb_base = pos_pad + p['type_emb'][0][None, :]
    wa = jnp.concatenate([p['word_emb'], emb_base] + [lp['w2'] for lp in p['layers']],
                         axis=0)
    assert wa.shape == (WA_ROWS, HIDDEN), wa.shape
    wa = wa.astype(jnp.bfloat16)

    # --- bf16 slab B: per-layer [Wq*scale | Wk | Wv] then per-layer [Wo | W1] ---
    wqkv = [jnp.concatenate([lp['wq'] * scale, lp['wk'], lp['wv']], axis=1)
            for lp in p['layers']]
    wow1 = [jnp.concatenate([lp['wo'], lp['w1']], axis=1) for lp in p['layers']]
    wb = jnp.concatenate(wqkv + wow1, axis=0)
    assert wb.shape == (WB_ROWS, 3 * HIDDEN), wb.shape
    wb = wb.astype(jnp.bfloat16)

    # --- f32 wide-bias slab: per-layer qkv bias row, per-layer FFN b1 row ---
    qkvb = [jnp.concatenate([lp['bq'] * scale, lp['bk'], lp['bv']], axis=1)
            for lp in p['layers']]
    b1p = [jnp.concatenate([lp['b1'], zrow(1, 3 * HIDDEN - INTERMEDIATE)], axis=1)
           for lp in p['layers']]
    constw = jnp.concatenate(qkvb + b1p, axis=0)
    assert constw.shape == (CW_ROWS, 3 * HIDDEN), constw.shape

    # --- f32 narrow const slab (width H): LN params + classifier/QA head ---
    lvecs = []
    for lp in p['layers']:
        lvecs.append(jnp.concatenate([lp['bo'], lp['ln1_g'], lp['ln1_b'],
                                      lp['b2'], lp['ln2_g'], lp['ln2_b']], axis=0))
    w_seq_pad = jnp.concatenate([p['w_seq'], zrow(S_PAD - MAX_SIZE, HIDDEN_DIM)], axis=0)
    b_qa_end = p['b_qa'][0, 1]
    # fold the QA end-logit bias into fc_sequence bias (valid while pad row is zero)
    b_seq_eff = p['b_seq'] + b_qa_end * jnp.sum(w_seq_pad, axis=0, keepdims=True)
    wcs_row = p['w_comb'][:HIDDEN_DIM, 0].reshape(1, HIDDEN_DIM)
    wcc_row = p['w_comb'][HIDDEN_DIM:, 0].reshape(1, HIDDEN_DIM)
    wqa_row = p['w_qa'][:, 1].reshape(1, HIDDEN)
    bcomb_row = jnp.concatenate([p['b_comb'], zrow(1, HIDDEN_DIM - 1)], axis=1)
    consth = jnp.concatenate(
        [p['emb_ln_g'].reshape(1, HIDDEN), p['emb_ln_b'].reshape(1, HIDDEN)]
        + lvecs
        + [w_seq_pad, p['w_cat'], b_seq_eff, p['b_cat'], wcs_row, wcc_row, wqa_row,
           bcomb_row, zrow(CH_ROWS_PAD - CH_ROWS, HIDDEN)],
        axis=0)
    assert consth.shape == (CH_ROWS_PAD, HIDDEN), consth.shape

    return dict(wa=wa, wb=wb, consth=consth, constw=constw)


# ------------------------------- forward ------------------------------------
@jax.jit
def tinybert_classifier_forward(packed, input_ids, attention_mask, input_categorical):
    ids = input_ids.reshape(-1, MAX_SIZE).astype(jnp.int32)          # (-1, 15) as in PyTorch
    mask = attention_mask.reshape(-1, MAX_SIZE).astype(jnp.float32)
    B = ids.shape[0]

    # pad seq 15 -> 16: the pad key is masked in-kernel ((1-0)*-1e4) and the
    # fc_sequence pad weight row is zero, so real-position results are unchanged.
    ids_col = jnp.pad(ids, ((0, 0), (0, S_PAD - MAX_SIZE))).reshape(B * S_PAD, 1)
    mask_p = jnp.pad(mask, ((0, 0), (0, S_PAD - MAX_SIZE)))
    cat2d = input_categorical.reshape(-1, NUM_CATEGORIES).astype(jnp.float32)

    vmem = pl.BlockSpec(memory_space=pltpu.MemorySpace.VMEM)
    out = pl.pallas_call(
        fused_forward_kernel,
        out_shape=jax.ShapeDtypeStruct((B, 1), jnp.float32),
        in_specs=[vmem] * 7,
        out_specs=vmem,
        scratch_shapes=[pltpu.VMEM((B * S_PAD, HIDDEN), jnp.float32),   # head contexts
                        pltpu.VMEM((B, HIDDEN_DIM), jnp.float32)],      # fc_sequence rows
    )(ids_col, mask_p, cat2d,
      packed['wa'], packed['wb'], packed['consth'], packed['constw'])

    return out.reshape(-1, 1, 1)                                     # (B, 1, 1)


# ----------------------- pure-JAX reference (f32) ----------------------------
def _ref_ln(x, g, b):
    mu = jnp.mean(x, axis=-1, keepdims=True)
    var = jnp.mean(jnp.square(x - mu), axis=-1, keepdims=True)
    return (x - mu) / jnp.sqrt(var + LN_EPS) * g + b


def reference_forward(p, input_ids, attention_mask, input_categorical):
    ids = input_ids.reshape(-1, MAX_SIZE)
    mask = attention_mask.reshape(-1, MAX_SIZE).astype(jnp.float32)
    B = ids.shape[0]
    scale = 1.0 / math.sqrt(HEAD_DIM)

    x = p['word_emb'][ids] + p['pos_emb'][None] + p['type_emb'][0][None, None, :]
    x = _ref_ln(x, p['emb_ln_g'], p['emb_ln_b'])
    bias = (1.0 - mask)[:, None, None, :] * (-1e4)

    def split_heads(t):
        return t.reshape(B, MAX_SIZE, NUM_HEADS, HEAD_DIM).transpose(0, 2, 1, 3)

    for lp in p['layers']:
        q = split_heads(x @ lp['wq'] + lp['bq'])
        k = split_heads(x @ lp['wk'] + lp['bk'])
        v = split_heads(x @ lp['wv'] + lp['bv'])
        s = jnp.einsum('bhqd,bhkd->bhqk', q, k) * scale + bias
        pattn = jax.nn.softmax(s, axis=-1)
        ctx = jnp.einsum('bhqk,bhkd->bhqd', pattn, v)
        ctx = ctx.transpose(0, 2, 1, 3).reshape(B, MAX_SIZE, HIDDEN)
        h1 = _ref_ln(x + ctx @ lp['wo'] + lp['bo'], lp['ln1_g'][0], lp['ln1_b'][0])
        ff = jax.nn.gelu(h1 @ lp['w1'] + lp['b1'], approximate=True)
        x = _ref_ln(h1 + ff @ lp['w2'] + lp['b2'], lp['ln2_g'][0], lp['ln2_b'][0])

    end_logits = (x @ p['w_qa'] + p['b_qa'])[..., 1]                  # (B, 15)
    x_seq = end_logits @ p['w_seq'] + p['b_seq']
    x_cat = input_categorical.reshape(-1, NUM_CATEGORIES) @ p['w_cat'] + p['b_cat']
    comb = jnp.concatenate([jnp.maximum(x_seq, 0.0), jnp.maximum(x_cat, 0.0)], axis=-1)
    z = comb @ p['w_comb'] + p['b_comb']
    return jax.nn.sigmoid(z).reshape(-1, 1, 1)


# --------------------------------- main --------------------------------------
if __name__ == "__main__":
    key = jax.random.PRNGKey(0)
    k_param, k_ids, k_cat = jax.random.split(key, 3)

    params = init_params(k_param)
    packed = pack_params(params)

    input_ids = jax.random.randint(k_ids, (BATCH, MAX_SIZE), 0, VOCAB, dtype=jnp.int32)
    attention_mask = jnp.ones((BATCH, MAX_SIZE), dtype=jnp.int32)
    input_categorical = jax.random.normal(k_cat, (BATCH, 1, NUM_CATEGORIES), dtype=jnp.float32)

    out = tinybert_classifier_forward(packed, input_ids, attention_mask, input_categorical)
    out = jax.block_until_ready(out)

    assert out.shape == (BATCH, 1, 1), out.shape
    assert bool(jnp.all(jnp.isfinite(out)))
    assert bool(jnp.all((out >= 0.0) & (out <= 1.0)))

    ref = reference_forward(params, input_ids, attention_mask, input_categorical)
    max_err = float(jnp.max(jnp.abs(out - ref)))
    assert max_err < 3e-2, f"kernel vs reference max abs err {max_err}"
    print("KERNEL_OK")
</pallas_src>

<mosaic_0001>
module attributes {stable_mosaic.version = 11 : i64} {
  func.func @fused_forward_kernel(%arg0: memref<32x1xi32, #tpu.memory_space<vmem>>, %arg1: memref<2x16xf32, #tpu.memory_space<vmem>>, %arg2: memref<2x8xf32, #tpu.memory_space<vmem>>, %arg3: memref<272x32xbf16, #tpu.memory_space<vmem>>, %arg4: memref<128x96xbf16, #tpu.memory_space<vmem>>, %arg5: memref<48x32xf32, #tpu.memory_space<vmem>>, %arg6: memref<4x96xf32, #tpu.memory_space<vmem>>, %arg7: memref<2x1xf32, #tpu.memory_space<vmem>>, %arg8: memref<32x32xf32, #tpu.memory_space<vmem>>, %arg9: memref<2x32xf32, #tpu.memory_space<vmem>>) attributes {dimension_semantics = [], scalar_prefetch = 0 : i64, scratch_operands = 2 : i64, tpu.core_type = #tpu.core_type<tc>} {
    %c0 = arith.constant 0 : index
    %c0_0 = arith.constant 0 : index
    %0 = vector.load %arg5[%c0, %c0_0] : memref<48x32xf32, #tpu.memory_space<vmem>>, vector<48x32xf32>
    %c0_1 = arith.constant 0 : index
    %c0_2 = arith.constant 0 : index
    %1 = vector.load %arg0[%c0_1, %c0_2] : memref<32x1xi32, #tpu.memory_space<vmem>>, vector<32x1xi32>
    %2 = tpu.iota {dimensions = array<i32: 1>} : vector<32x144xi32>
    %3 = tpu.iota {dimensions = array<i32: 0>} : vector<32x144xi32>
    %4 = vector.broadcast %1 : vector<32x1xi32> to vector<32x144xi32>
    %5 = arith.cmpi eq, %2, %4 : vector<32x144xi32>
    %c128_i32 = arith.constant 128 : i32
    %6 = vector.broadcast %c128_i32 : i32 to vector<32x144xi32>
    %7 = arith.subi %2, %6 : vector<32x144xi32>
    %c15_i32 = arith.constant 15 : i32
    %8 = vector.broadcast %c15_i32 : i32 to vector<32x144xi32>
    %9 = arith.andi %3, %8 : vector<32x144xi32>
    %10 = arith.cmpi eq, %7, %9 : vector<32x144xi32>
    %11 = arith.ori %5, %10 : vector<32x144xi1>
    %12 = arith.extui %11 : vector<32x144xi1> to vector<32x144xi32>
    %13 = arith.sitofp %12 : vector<32x144xi32> to vector<32x144xf32>
    %14 = arith.truncf %13 : vector<32x144xf32> to vector<32x144xbf16>
    %c0_3 = arith.constant 0 : index
    %c0_4 = arith.constant 0 : index
    %15 = vector.load %arg3[%c0_3, %c0_4] : memref<272x32xbf16, #tpu.memory_space<vmem>>, vector<144x32xbf16>
    %cst = arith.constant dense<0.000000e+00> : vector<32x32xf32>
    %16 = tpu.matmul %14, %15, %cst {dimension_numbers = #tpu.dot_dimension_numbers<[1], [0], [0], [1], [0, 0, 1, 1], [], []>} : vector<32x144xbf16>, vector<144x32xbf16>, vector<32x32xf32> -> vector<32x32xf32>
    %17 = vector.extract_strided_slice %0 {offsets = [0, 0], sizes = [1, 32], strides = [1, 1]} : vector<48x32xf32> to vector<1x32xf32>
    %18 = vector.extract_strided_slice %0 {offsets = [1, 0], sizes = [1, 32], strides = [1, 1]} : vector<48x32xf32> to vector<1x32xf32>
    %cst_5 = arith.constant dense<0.000000e+00> : vector<32xf32>
    %19 = vector.multi_reduction <add>, %16, %cst_5 [1] : vector<32x32xf32> to vector<32xf32>
    %20 = vector.shape_cast %19 : vector<32xf32> to vector<32x1xf32>
    %cst_6 = arith.constant 3.200000e+01 : f32
    %21 = vector.broadcast %cst_6 : f32 to vector<32x1xf32>
    %22 = arith.divf %20, %21 : vector<32x1xf32>
    %23 = arith.mulf %16, %16 : vector<32x32xf32>
    %cst_7 = arith.constant dense<0.000000e+00> : vector<32xf32>
    %24 = vector.multi_reduction <add>, %23, %cst_7 [1] : vector<32x32xf32> to vector<32xf32>
    %25 = vector.shape_cast %24 : vector<32xf32> to vector<32x1xf32>
    %cst_8 = arith.constant 3.200000e+01 : f32
    %26 = vector.broadcast %cst_8 : f32 to vector<32x1xf32>
    %27 = arith.divf %25, %26 : vector<32x1xf32>
    %28 = arith.mulf %22, %22 : vector<32x1xf32>
    %29 = arith.subf %27, %28 : vector<32x1xf32>
    %cst_9 = arith.constant 0.000000e+00 : f32
    %30 = vector.broadcast %cst_9 : f32 to vector<32x1xf32>
    %31 = arith.maximumf %29, %30 : vector<32x1xf32>
    %32 = vector.broadcast %22 : vector<32x1xf32> to vector<32x32xf32>
    %33 = arith.subf %16, %32 : vector<32x32xf32>
    %cst_10 = arith.constant 9.99999996E-13 : f32
    %34 = vector.broadcast %cst_10 : f32 to vector<32x1xf32>
    %35 = arith.addf %31, %34 : vector<32x1xf32>
    %36 = math.rsqrt %35 : vector<32x1xf32>
    %37 = vector.broadcast %36 : vector<32x1xf32> to vector<32x32xf32>
    %38 = arith.mulf %33, %37 : vector<32x32xf32>
    %39 = vector.broadcast %17 : vector<1x32xf32> to vector<32x32xf32>
    %40 = arith.mulf %38, %39 : vector<32x32xf32>
    %41 = vector.broadcast %18 : vector<1x32xf32> to vector<32x32xf32>
    %42 = arith.addf %40, %41 : vector<32x32xf32>
    %c0_11 = arith.constant 0 : index
    %c0_12 = arith.constant 0 : index
    %43 = vector.load %arg1[%c0_11, %c0_12] : memref<2x16xf32, #tpu.memory_space<vmem>>, vector<2x16xf32>
    %cst_13 = arith.constant 1.000000e+00 : f32
    %44 = vector.broadcast %cst_13 : f32 to vector<2x16xf32>
    %45 = arith.subf %44, %43 : vector<2x16xf32>
    %cst_14 = arith.constant -1.000000e+04 : f32
    %46 = vector.broadcast %cst_14 : f32 to vector<2x16xf32>
    %47 = arith.mulf %45, %46 : vector<2x16xf32>
    %48 = vector.extract_strided_slice %0 {offsets = [2, 0], sizes = [1, 32], strides = [1, 1]} : vector<48x32xf32> to vector<1x32xf32>
    %49 = vector.extract_strided_slice %0 {offsets = [3, 0], sizes = [1, 32], strides = [1, 1]} : vector<48x32xf32> to vector<1x32xf32>
    %50 = vector.extract_strided_slice %0 {offsets = [4, 0], sizes = [1, 32], strides = [1, 1]} : vector<48x32xf32> to vector<1x32xf32>
    %51 = vector.extract_strided_slice %0 {offsets = [5, 0], sizes = [1, 32], strides = [1, 1]} : vector<48x32xf32> to vector<1x32xf32>
    %52 = vector.extract_strided_slice %0 {offsets = [6, 0], sizes = [1, 32], strides = [1, 1]} : vector<48x32xf32> to vector<1x32xf32>
    %53 = vector.extract_strided_slice %0 {offsets = [7, 0], sizes = [1, 32], strides = [1, 1]} : vector<48x32xf32> to vector<1x32xf32>
    %c0_15 = arith.constant 0 : index
    %c0_16 = arith.constant 0 : index
    %54 = vector.load %arg4[%c0_15, %c0_16] : memref<128x96xbf16, #tpu.memory_space<vmem>>, vector<32x96xbf16>
    %55 = arith.truncf %42 : vector<32x32xf32> to vector<32x32xbf16>
    %cst_17 = arith.constant dense<0.000000e+00> : vector<32x96xf32>
    %56 = tpu.matmul %55, %54, %cst_17 {dimension_numbers = #tpu.dot_dimension_numbers<[1], [0], [0], [1], [0, 0, 1, 1], [], []>} : vector<32x32xbf16>, vector<32x96xbf16>, vector<32x96xf32> -> vector<32x96xf32>
    %c0_18 = arith.constant 0 : index
    %c0_19 = arith.constant 0 : index
    %57 = vector.load %arg6[%c0_18, %c0_19] : memref<4x96xf32, #tpu.memory_space<vmem>>, vector<1x96xf32>
    %58 = vector.broadcast %57 : vector<1x96xf32> to vector<32x96xf32>
    %59 = arith.addf %56, %58 : vector<32x96xf32>
    %60 = vector.extract_strided_slice %47 {offsets = [0, 0], sizes = [1, 16], strides = [1, 1]} : vector<2x16xf32> to vector<1x16xf32>
    %61 = vector.extract_strided_slice %59 {offsets = [0, 0], sizes = [16, 16], strides = [1, 1]} : vector<32x96xf32> to vector<16x16xf32>
    %62 = vector.extract_strided_slice %59 {offsets = [0, 32], sizes = [16, 16], strides = [1, 1]} : vector<32x96xf32> to vector<16x16xf32>
    %63 = vector.extract_strided_slice %59 {offsets = [0, 64], sizes = [16, 16], strides = [1, 1]} : vector<32x96xf32> to vector<16x16xf32>
    %64 = arith.truncf %61 : vector<16x16xf32> to vector<16x16xbf16>
    %65 = arith.truncf %62 : vector<16x16xf32> to vector<16x16xbf16>
    %cst_20 = arith.constant dense<0.000000e+00> : vector<16x16xf32>
    %66 = tpu.matmul %64, %65, %cst_20 {dimension_numbers = #tpu.dot_dimension_numbers<[1], [1], [0], [0], [0, 0, 1, 0], [], []>} : vector<16x16xbf16>, vector<16x16xbf16>, vector<16x16xf32> -> vector<16x16xf32>
    %67 = vector.broadcast %60 : vector<1x16xf32> to vector<16x16xf32>
    %68 = arith.addf %66, %67 : vector<16x16xf32>
    %cst_21 = arith.constant dense<0xFF800000> : vector<16xf32>
    %69 = vector.multi_reduction <maximumf>, %68, %cst_21 [1] : vector<16x16xf32> to vector<16xf32>
    %70 = vector.shape_cast %69 : vector<16xf32> to vector<16x1xf32>
    %71 = vector.broadcast %70 : vector<16x1xf32> to vector<16x16xf32>
    %72 = arith.subf %68, %71 : vector<16x16xf32>
    %73 = math.exp %72 : vector<16x16xf32>
    %cst_22 = arith.constant dense<0.000000e+00> : vector<16xf32>
    %74 = vector.multi_reduction <add>, %73, %cst_22 [1] : vector<16x16xf32> to vector<16xf32>
    %75 = vector.shape_cast %74 : vector<16xf32> to vector<16x1xf32>
    %76 = tpu.reciprocal %75 {approx = true} : vector<16x1xf32> -> vector<16x1xf32>
    %77 = vector.broadcast %76 : vector<16x1xf32> to vector<16x16xf32>
    %78 = arith.mulf %73, %77 : vector<16x16xf32>
    %79 = arith.truncf %78 : vector<16x16xf32> to vector<16x16xbf16>
    %80 = arith.truncf %63 : vector<16x16xf32> to vector<16x16xbf16>
    %cst_23 = arith.constant dense<0.000000e+00> : vector<16x16xf32>
    %81 = tpu.matmul %79, %80, %cst_23 {dimension_numbers = #tpu.dot_dimension_numbers<[1], [0], [0], [1], [0, 0, 1, 1], [], []>} : vector<16x16xbf16>, vector<16x16xbf16>, vector<16x16xf32> -> vector<16x16xf32>
    %c0_24 = arith.constant 0 : index
    %c0_25 = arith.constant 0 : index
    %82 = vector.load %arg8[%c0_24, %c0_25] : memref<32x32xf32, #tpu.memory_space<vmem>>, vector<16x16xf32>
    tpu.vector_store %arg8[%c0_24, %c0_25], %81 {strides = array<i32>} : memref<32x32xf32, #tpu.memory_space<vmem>>, vector<16x16xf32>,
    %83 = vector.extract_strided_slice %59 {offsets = [0, 16], sizes = [16, 16], strides = [1, 1]} : vector<32x96xf32> to vector<16x16xf32>
    %84 = vector.extract_strided_slice %59 {offsets = [0, 48], sizes = [16, 16], strides = [1, 1]} : vector<32x96xf32> to vector<16x16xf32>
    %85 = vector.extract_strided_slice %59 {offsets = [0, 80], sizes = [16, 16], strides = [1, 1]} : vector<32x96xf32> to vector<16x16xf32>
    %86 = arith.truncf %83 : vector<16x16xf32> to vector<16x16xbf16>
    %87 = arith.truncf %84 : vector<16x16xf32> to vector<16x16xbf16>
    %cst_26 = arith.constant dense<0.000000e+00> : vector<16x16xf32>
    %88 = tpu.matmul %86, %87, %cst_26 {dimension_numbers = #tpu.dot_dimension_numbers<[1], [1], [0], [0], [0, 0, 1, 0], [], []>} : vector<16x16xbf16>, vector<16x16xbf16>, vector<16x16xf32> -> vector<16x16xf32>
    %89 = vector.broadcast %60 : vector<1x16xf32> to vector<16x16xf32>
    %90 = arith.addf %88, %89 : vector<16x16xf32>
    %cst_27 = arith.constant dense<0xFF800000> : vector<16xf32>
    %91 = vector.multi_reduction <maximumf>, %90, %cst_27 [1] : vector<16x16xf32> to vector<16xf32>
    %92 = vector.shape_cast %91 : vector<16xf32> to vector<16x1xf32>
    %93 = vector.broadcast %92 : vector<16x1xf32> to vector<16x16xf32>
    %94 = arith.subf %90, %93 : vector<16x16xf32>
    %95 = math.exp %94 : vector<16x16xf32>
    %cst_28 = arith.constant dense<0.000000e+00> : vector<16xf32>
    %96 = vector.multi_reduction <add>, %95, %cst_28 [1] : vector<16x16xf32> to vector<16xf32>
    %97 = vector.shape_cast %96 : vector<16xf32> to vector<16x1xf32>
    %98 = tpu.reciprocal %97 {approx = true} : vector<16x1xf32> -> vector<16x1xf32>
    %99 = vector.broadcast %98 : vector<16x1xf32> to vector<16x16xf32>
    %100 = arith.mulf %95, %99 : vector<16x16xf32>
    %101 = arith.truncf %100 : vector<16x16xf32> to vector<16x16xbf16>
    %102 = arith.truncf %85 : vector<16x16xf32> to vector<16x16xbf16>
    %cst_29 = arith.constant dense<0.000000e+00> : vector<16x16xf32>
    %103 = tpu.matmul %101, %102, %cst_29 {dimension_numbers = #tpu.dot_dimension_numbers<[1], [0], [0], [1], [0, 0, 1, 1], [], []>} : vector<16x16xbf16>, vector<16x16xbf16>, vector<16x16xf32> -> vector<16x16xf32>
    %c0_30 = arith.constant 0 : index
    %c16 = arith.constant 16 : index
    %104 = vector.load %arg8[%c0_30, %c16] : memref<32x32xf32, #tpu.memory_space<vmem>>, vector<16x16xf32>
    tpu.vector_store %arg8[%c0_30, %c16], %103 {strides = array<i32>} : memref<32x32xf32, #tpu.memory_space<vmem>>, vector<16x16xf32>,
    %105 = vector.extract_strided_slice %47 {offsets = [1, 0], sizes = [1, 16], strides = [1, 1]} : vector<2x16xf32> to vector<1x16xf32>
    %106 = vector.extract_strided_slice %59 {offsets = [16, 0], sizes = [16, 16], strides = [1, 1]} : vector<32x96xf32> to vector<16x16xf32>
    %107 = vector.extract_strided_slice %59 {offsets = [16, 32], sizes = [16, 16], strides = [1, 1]} : vector<32x96xf32> to vector<16x16xf32>
    %108 = vector.extract_strided_slice %59 {offsets = [16, 64], sizes = [16, 16], strides = [1, 1]} : vector<32x96xf32> to vector<16x16xf32>
    %109 = arith.truncf %106 : vector<16x16xf32> to vector<16x16xbf16>
    %110 = arith.truncf %107 : vector<16x16xf32> to vector<16x16xbf16>
    %cst_31 = arith.constant dense<0.000000e+00> : vector<16x16xf32>
    %111 = tpu.matmul %109, %110, %cst_31 {dimension_numbers = #tpu.dot_dimension_numbers<[1], [1], [0], [0], [0, 0, 1, 0], [], []>} : vector<16x16xbf16>, vector<16x16xbf16>, vector<16x16xf32> -> vector<16x16xf32>
    %112 = vector.broadcast %105 : vector<1x16xf32> to vector<16x16xf32>
    %113 = arith.addf %111, %112 : vector<16x16xf32>
    %cst_32 = arith.constant dense<0xFF800000> : vector<16xf32>
    %114 = vector.multi_reduction <maximumf>, %113, %cst_32 [1] : vector<16x16xf32> to vector<16xf32>
    %115 = vector.shape_cast %114 : vector<16xf32> to vector<16x1xf32>
    %116 = vector.broadcast %115 : vector<16x1xf32> to vector<16x16xf32>
    %117 = arith.subf %113, %116 : vector<16x16xf32>
    %118 = math.exp %117 : vector<16x16xf32>
    %cst_33 = arith.constant dense<0.000000e+00> : vector<16xf32>
    %119 = vector.multi_reduction <add>, %118, %cst_33 [1] : vector<16x16xf32> to vector<16xf32>
    %120 = vector.shape_cast %119 : vector<16xf32> to vector<16x1xf32>
    %121 = tpu.reciprocal %120 {approx = true} : vector<16x1xf32> -> vector<16x1xf32>
    %122 = vector.broadcast %121 : vector<16x1xf32> to vector<16x16xf32>
    %123 = arith.mulf %118, %122 : vector<16x16xf32>
    %124 = arith.truncf %123 : vector<16x16xf32> to vector<16x16xbf16>
    %125 = arith.truncf %108 : vector<16x16xf32> to vector<16x16xbf16>
    %cst_34 = arith.constant dense<0.000000e+00> : vector<16x16xf32>
    %126 = tpu.matmul %124, %125, %cst_34 {dimension_numbers = #tpu.dot_dimension_numbers<[1], [0], [0], [1], [0, 0, 1, 1], [], []>} : vector<16x16xbf16>, vector<16x16xbf16>, vector<16x16xf32> -> vector<16x16xf32>
    %c16_35 = arith.constant 16 : index
    %c0_36 = arith.constant 0 : index
    %127 = vector.load %arg8[%c16_35, %c0_36] : memref<32x32xf32, #tpu.memory_space<vmem>>, vector<16x16xf32>
    tpu.vector_store %arg8[%c16_35, %c0_36], %126 {strides = array<i32>} : memref<32x32xf32, #tpu.memory_space<vmem>>, vector<16x16xf32>,
    %128 = vector.extract_strided_slice %59 {offsets = [16, 16], sizes = [16, 16], strides = [1, 1]} : vector<32x96xf32> to vector<16x16xf32>
    %129 = vector.extract_strided_slice %59 {offsets = [16, 48], sizes = [16, 16], strides = [1, 1]} : vector<32x96xf32> to vector<16x16xf32>
    %130 = vector.extract_strided_slice %59 {offsets = [16, 80], sizes = [16, 16], strides = [1, 1]} : vector<32x96xf32> to vector<16x16xf32>
    %131 = arith.truncf %128 : vector<16x16xf32> to vector<16x16xbf16>
    %132 = arith.truncf %129 : vector<16x16xf32> to vector<16x16xbf16>
    %cst_37 = arith.constant dense<0.000000e+00> : vector<16x16xf32>
    %133 = tpu.matmul %131, %132, %cst_37 {dimension_numbers = #tpu.dot_dimension_numbers<[1], [1], [0], [0], [0, 0, 1, 0], [], []>} : vector<16x16xbf16>, vector<16x16xbf16>, vector<16x16xf32> -> vector<16x16xf32>
    %134 = vector.broadcast %105 : vector<1x16xf32> to vector<16x16xf32>
    %135 = arith.addf %133, %134 : vector<16x16xf32>
    %cst_38 = arith.constant dense<0xFF800000> : vector<16xf32>
    %136 = vector.multi_reduction <maximumf>, %135, %cst_38 [1] : vector<16x16xf32> to vector<16xf32>
    %137 = vector.shape_cast %136 : vector<16xf32> to vector<16x1xf32>
    %138 = vector.broadcast %137 : vector<16x1xf32> to vector<16x16xf32>
    %139 = arith.subf %135, %138 : vector<16x16xf32>
    %140 = math.exp %139 : vector<16x16xf32>
    %cst_39 = arith.constant dense<0.000000e+00> : vector<16xf32>
    %141 = vector.multi_reduction <add>, %140, %cst_39 [1] : vector<16x16xf32> to vector<16xf32>
    %142 = vector.shape_cast %141 : vector<16xf32> to vector<16x1xf32>
    %143 = tpu.reciprocal %142 {approx = true} : vector<16x1xf32> -> vector<16x1xf32>
    %144 = vector.broadcast %143 : vector<16x1xf32> to vector<16x16xf32>
    %145 = arith.mulf %140, %144 : vector<16x16xf32>
    %146 = arith.truncf %145 : vector<16x16xf32> to vector<16x16xbf16>
    %147 = arith.truncf %130 : vector<16x16xf32> to vector<16x16xbf16>
    %cst_40 = arith.constant dense<0.000000e+00> : vector<16x16xf32>
    %148 = tpu.matmul %146, %147, %cst_40 {dimension_numbers = #tpu.dot_dimension_numbers<[1], [0], [0], [1], [0, 0, 1, 1], [], []>} : vector<16x16xbf16>, vector<16x16xbf16>, vector<16x16xf32> -> vector<16x16xf32>
    %c16_41 = arith.constant 16 : index
    %c16_42 = arith.constant 16 : index
    %149 = vector.load %arg8[%c16_41, %c16_42] : memref<32x32xf32, #tpu.memory_space<vmem>>, vector<16x16xf32>
    tpu.vector_store %arg8[%c16_41, %c16_42], %148 {strides = array<i32>} : memref<32x32xf32, #tpu.memory_space<vmem>>, vector<16x16xf32>,
    %c64 = arith.constant 64 : index
    %c0_43 = arith.constant 0 : index
    %150 = vector.load %arg4[%c64, %c0_43] : memref<128x96xbf16, #tpu.memory_space<vmem>>, vector<32x96xbf16>
    %c0_44 = arith.constant 0 : index
    %c0_45 = arith.constant 0 : index
    %151 = vector.load %arg8[%c0_44, %c0_45] : memref<32x32xf32, #tpu.memory_space<vmem>>, vector<32x32xf32>
    %152 = arith.truncf %151 : vector<32x32xf32> to vector<32x32xbf16>
    %153 = vector.extract_strided_slice %150 {offsets = [0, 0], sizes = [32, 32], strides = [1, 1]} : vector<32x96xbf16> to vector<32x32xbf16>
    %cst_46 = arith.constant dense<0.000000e+00> : vector<32x32xf32>
    %154 = tpu.matmul %152, %153, %cst_46 {dimension_numbers = #tpu.dot_dimension_numbers<[1], [0], [0], [1], [0, 0, 1, 1], [], []>} : vector<32x32xbf16>, vector<32x32xbf16>, vector<32x32xf32> -> vector<32x32xf32>
    %155 = vector.broadcast %48 : vector<1x32xf32> to vector<32x32xf32>
    %156 = arith.addf %154, %155 : vector<32x32xf32>
    %157 = arith.addf %42, %156 : vector<32x32xf32>
    %cst_47 = arith.constant dense<0.000000e+00> : vector<32xf32>
    %158 = vector.multi_reduction <add>, %157, %cst_47 [1] : vector<32x32xf32> to vector<32xf32>
    %159 = vector.shape_cast %158 : vector<32xf32> to vector<32x1xf32>
    %cst_48 = arith.constant 3.200000e+01 : f32
    %160 = vector.broadcast %cst_48 : f32 to vector<32x1xf32>
    %161 = arith.divf %159, %160 : vector<32x1xf32>
    %162 = arith.mulf %157, %157 : vector<32x32xf32>
    %cst_49 = arith.constant dense<0.000000e+00> : vector<32xf32>
    %163 = vector.multi_reduction <add>, %162, %cst_49 [1] : vector<32x32xf32> to vector<32xf32>
    %164 = vector.shape_cast %163 : vector<32xf32> to vector<32x1xf32>
    %cst_50 = arith.constant 3.200000e+01 : f32
    %165 = vector.broadcast %cst_50 : f32 to vector<32x1xf32>
    %166 = arith.divf %164, %165 : vector<32x1xf32>
    %167 = arith.mulf %161, %161 : vector<32x1xf32>
    %168 = arith.subf %166, %167 : vector<32x1xf32>
    %cst_51 = arith.constant 0.000000e+00 : f32
    %169 = vector.broadcast %cst_51 : f32 to vector<32x1xf32>
    %170 = arith.maximumf %168, %169 : vector<32x1xf32>
    %171 = vector.broadcast %161 : vector<32x1xf32> to vector<32x32xf32>
    %172 = arith.subf %157, %171 : vector<32x32xf32>
    %cst_52 = arith.constant 9.99999996E-13 : f32
    %173 = vector.broadcast %cst_52 : f32 to vector<32x1xf32>
    %174 = arith.addf %170, %173 : vector<32x1xf32>
    %175 = math.rsqrt %174 : vector<32x1xf32>
    %176 = vector.broadcast %175 : vector<32x1xf32> to vector<32x32xf32>
    %177 = arith.mulf %172, %176 : vector<32x32xf32>
    %178 = vector.broadcast %49 : vector<1x32xf32> to vector<32x32xf32>
    %179 = arith.mulf %177, %178 : vector<32x32xf32>
    %180 = vector.broadcast %50 : vector<1x32xf32> to vector<32x32xf32>
    %181 = arith.addf %179, %180 : vector<32x32xf32>
    %182 = arith.truncf %181 : vector<32x32xf32> to vector<32x32xbf16>
    %183 = vector.extract_strided_slice %150 {offsets = [0, 32], sizes = [32, 64], strides = [1, 1]} : vector<32x96xbf16> to vector<32x64xbf16>
    %cst_53 = arith.constant dense<0.000000e+00> : vector<32x64xf32>
    %184 = tpu.matmul %182, %183, %cst_53 {dimension_numbers = #tpu.dot_dimension_numbers<[1], [0], [0], [1], [0, 0, 1, 1], [], []>} : vector<32x32xbf16>, vector<32x64xbf16>, vector<32x64xf32> -> vector<32x64xf32>
    %c2 = arith.constant 2 : index
    %c0_54 = arith.constant 0 : index
    %185 = vector.load %arg6[%c2, %c0_54] : memref<4x96xf32, #tpu.memory_space<vmem>>, vector<1x64xf32>
    %186 = vector.broadcast %185 : vector<1x64xf32> to vector<32x64xf32>
    %187 = arith.addf %184, %186 : vector<32x64xf32>
    %188 = arith.mulf %187, %187 : vector<32x64xf32>
    %189 = arith.mulf %187, %188 : vector<32x64xf32>
    %cst_55 = arith.constant 4.471500e-02 : f32
    %190 = vector.broadcast %cst_55 : f32 to vector<32x64xf32>
    %191 = arith.mulf %190, %189 : vector<32x64xf32>
    %192 = arith.addf %187, %191 : vector<32x64xf32>
    %cst_56 = arith.constant 0.797884583 : f32
    %193 = vector.broadcast %cst_56 : f32 to vector<32x64xf32>
    %194 = arith.mulf %193, %192 : vector<32x64xf32>
    %195 = math.tanh %194 : vector<32x64xf32>
    %cst_57 = arith.constant 1.000000e+00 : f32
    %196 = vector.broadcast %cst_57 : f32 to vector<32x64xf32>
    %197 = arith.addf %196, %195 : vector<32x64xf32>
    %cst_58 = arith.constant 5.000000e-01 : f32
    %198 = vector.broadcast %cst_58 : f32 to vector<32x64xf32>
    %199 = arith.mulf %198, %197 : vector<32x64xf32>
    %200 = arith.mulf %187, %199 : vector<32x64xf32>
    %c144 = arith.constant 144 : index
    %c0_59 = arith.constant 0 : index
    %201 = vector.load %arg3[%c144, %c0_59] : memref<272x32xbf16, #tpu.memory_space<vmem>>, vector<64x32xbf16>
    %202 = arith.truncf %200 : vector<32x64xf32> to vector<32x64xbf16>
    %cst_60 = arith.constant dense<0.000000e+00> : vector<32x32xf32>
    %203 = tpu.matmul %202, %201, %cst_60 {dimension_numbers = #tpu.dot_dimension_numbers<[1], [0], [0], [1], [0, 0, 1, 1], [], []>} : vector<32x64xbf16>, vector<64x32xbf16>, vector<32x32xf32> -> vector<32x32xf32>
    %204 = vector.broadcast %51 : vector<1x32xf32> to vector<32x32xf32>
    %205 = arith.addf %203, %204 : vector<32x32xf32>
    %206 = arith.addf %181, %205 : vector<32x32xf32>
    %cst_61 = arith.constant dense<0.000000e+00> : vector<32xf32>
    %207 = vector.multi_reduction <add>, %206, %cst_61 [1] : vector<32x32xf32> to vector<32xf32>
    %208 = vector.shape_cast %207 : vector<32xf32> to vector<32x1xf32>
    %cst_62 = arith.constant 3.200000e+01 : f32
    %209 = vector.broadcast %cst_62 : f32 to vector<32x1xf32>
    %210 = arith.divf %208, %209 : vector<32x1xf32>
    %211 = arith.mulf %206, %206 : vector<32x32xf32>
    %cst_63 = arith.constant dense<0.000000e+00> : vector<32xf32>
    %212 = vector.multi_reduction <add>, %211, %cst_63 [1] : vector<32x32xf32> to vector<32xf32>
    %213 = vector.shape_cast %212 : vector<32xf32> to vector<32x1xf32>
    %cst_64 = arith.constant 3.200000e+01 : f32
    %214 = vector.broadcast %cst_64 : f32 to vector<32x1xf32>
    %215 = arith.divf %213, %214 : vector<32x1xf32>
    %216 = arith.mulf %210, %210 : vector<32x1xf32>
    %217 = arith.subf %215, %216 : vector<32x1xf32>
    %cst_65 = arith.constant 0.000000e+00 : f32
    %218 = vector.broadcast %cst_65 : f32 to vector<32x1xf32>
    %219 = arith.maximumf %217, %218 : vector<32x1xf32>
    %220 = vector.broadcast %210 : vector<32x1xf32> to vector<32x32xf32>
    %221 = arith.subf %206, %220 : vector<32x32xf32>
    %cst_66 = arith.constant 9.99999996E-13 : f32
    %222 = vector.broadcast %cst_66 : f32 to vector<32x1xf32>
    %223 = arith.addf %219, %222 : vector<32x1xf32>
    %224 = math.rsqrt %223 : vector<32x1xf32>
    %225 = vector.broadcast %224 : vector<32x1xf32> to vector<32x32xf32>
    %226 = arith.mulf %221, %225 : vector<32x32xf32>
    %227 = vector.broadcast %52 : vector<1x32xf32> to vector<32x32xf32>
    %228 = arith.mulf %226, %227 : vector<32x32xf32>
    %229 = vector.broadcast %53 : vector<1x32xf32> to vector<32x32xf32>
    %230 = arith.addf %228, %229 : vector<32x32xf32>
    %231 = vector.extract_strided_slice %0 {offsets = [8, 0], sizes = [1, 32], strides = [1, 1]} : vector<48x32xf32> to vector<1x32xf32>
    %232 = vector.extract_strided_slice %0 {offsets = [9, 0], sizes = [1, 32], strides = [1, 1]} : vector<48x32xf32> to vector<1x32xf32>
    %233 = vector.extract_strided_slice %0 {offsets = [10, 0], sizes = [1, 32], strides = [1, 1]} : vector<48x32xf32> to vector<1x32xf32>
    %234 = vector.extract_strided_slice %0 {offsets = [11, 0], sizes = [1, 32], strides = [1, 1]} : vector<48x32xf32> to vector<1x32xf32>
    %235 = vector.extract_strided_slice %0 {offsets = [12, 0], sizes = [1, 32], strides = [1, 1]} : vector<48x32xf32> to vector<1x32xf32>
    %236 = vector.extract_strided_slice %0 {offsets = [13, 0], sizes = [1, 32], strides = [1, 1]} : vector<48x32xf32> to vector<1x32xf32>
    %c32 = arith.constant 32 : index
    %c0_67 = arith.constant 0 : index
    %237 = vector.load %arg4[%c32, %c0_67] : memref<128x96xbf16, #tpu.memory_space<vmem>>, vector<32x96xbf16>
    %238 = arith.truncf %230 : vector<32x32xf32> to vector<32x32xbf16>
    %cst_68 = arith.constant dense<0.000000e+00> : vector<32x96xf32>
    %239 = tpu.matmul %238, %237, %cst_68 {dimension_numbers = #tpu.dot_dimension_numbers<[1], [0], [0], [1], [0, 0, 1, 1], [], []>} : vector<32x32xbf16>, vector<32x96xbf16>, vector<32x96xf32> -> vector<32x96xf32>
    %c1 = arith.constant 1 : index
    %c0_69 = arith.constant 0 : index
    %240 = vector.load %arg6[%c1, %c0_69] : memref<4x96xf32, #tpu.memory_space<vmem>>, vector<1x96xf32>
    %241 = vector.broadcast %240 : vector<1x96xf32> to vector<32x96xf32>
    %242 = arith.addf %239, %241 : vector<32x96xf32>
    %243 = vector.extract_strided_slice %47 {offsets = [0, 0], sizes = [1, 16], strides = [1, 1]} : vector<2x16xf32> to vector<1x16xf32>
    %244 = vector.extract_strided_slice %242 {offsets = [0, 0], sizes = [16, 16], strides = [1, 1]} : vector<32x96xf32> to vector<16x16xf32>
    %245 = vector.extract_strided_slice %242 {offsets = [0, 32], sizes = [16, 16], strides = [1, 1]} : vector<32x96xf32> to vector<16x16xf32>
    %246 = vector.extract_strided_slice %242 {offsets = [0, 64], sizes = [16, 16], strides = [1, 1]} : vector<32x96xf32> to vector<16x16xf32>
    %247 = arith.truncf %244 : vector<16x16xf32> to vector<16x16xbf16>
    %248 = arith.truncf %245 : vector<16x16xf32> to vector<16x16xbf16>
    %cst_70 = arith.constant dense<0.000000e+00> : vector<16x16xf32>
    %249 = tpu.matmul %247, %248, %cst_70 {dimension_numbers = #tpu.dot_dimension_numbers<[1], [1], [0], [0], [0, 0, 1, 0], [], []>} : vector<16x16xbf16>, vector<16x16xbf16>, vector<16x16xf32> -> vector<16x16xf32>
    %250 = vector.broadcast %243 : vector<1x16xf32> to vector<16x16xf32>
    %251 = arith.addf %249, %250 : vector<16x16xf32>
    %cst_71 = arith.constant dense<0xFF800000> : vector<16xf32>
    %252 = vector.multi_reduction <maximumf>, %251, %cst_71 [1] : vector<16x16xf32> to vector<16xf32>
    %253 = vector.shape_cast %252 : vector<16xf32> to vector<16x1xf32>
    %254 = vector.broadcast %253 : vector<16x1xf32> to vector<16x16xf32>
    %255 = arith.subf %251, %254 : vector<16x16xf32>
    %256 = math.exp %255 : vector<16x16xf32>
    %cst_72 = arith.constant dense<0.000000e+00> : vector<16xf32>
    %257 = vector.multi_reduction <add>, %256, %cst_72 [1] : vector<16x16xf32> to vector<16xf32>
    %258 = vector.shape_cast %257 : vector<16xf32> to vector<16x1xf32>
    %259 = tpu.reciprocal %258 {approx = true} : vector<16x1xf32> -> vector<16x1xf32>
    %260 = vector.broadcast %259 : vector<16x1xf32> to vector<16x16xf32>
    %261 = arith.mulf %256, %260 : vector<16x16xf32>
    %262 = arith.truncf %261 : vector<16x16xf32> to vector<16x16xbf16>
    %263 = arith.truncf %246 : vector<16x16xf32> to vector<16x16xbf16>
    %cst_73 = arith.constant dense<0.000000e+00> : vector<16x16xf32>
    %264 = tpu.matmul %262, %263, %cst_73 {dimension_numbers = #tpu.dot_dimension_numbers<[1], [0], [0], [1], [0, 0, 1, 1], [], []>} : vector<16x16xbf16>, vector<16x16xbf16>, vector<16x16xf32> -> vector<16x16xf32>
    %c0_74 = arith.constant 0 : index
    %c0_75 = arith.constant 0 : index
    %265 = vector.load %arg8[%c0_74, %c0_75] : memref<32x32xf32, #tpu.memory_space<vmem>>, vector<16x16xf32>
    tpu.vector_store %arg8[%c0_74, %c0_75], %264 {strides = array<i32>} : memref<32x32xf32, #tpu.memory_space<vmem>>, vector<16x16xf32>,
    %266 = vector.extract_strided_slice %242 {offsets = [0, 16], sizes = [16, 16], strides = [1, 1]} : vector<32x96xf32> to vector<16x16xf32>
    %267 = vector.extract_strided_slice %242 {offsets = [0, 48], sizes = [16, 16], strides = [1, 1]} : vector<32x96xf32> to vector<16x16xf32>
    %268 = vector.extract_strided_slice %242 {offsets = [0, 80], sizes = [16, 16], strides = [1, 1]} : vector<32x96xf32> to vector<16x16xf32>
    %269 = arith.truncf %266 : vector<16x16xf32> to vector<16x16xbf16>
    %270 = arith.truncf %267 : vector<16x16xf32> to vector<16x16xbf16>
    %cst_76 = arith.constant dense<0.000000e+00> : vector<16x16xf32>
    %271 = tpu.matmul %269, %270, %cst_76 {dimension_numbers = #tpu.dot_dimension_numbers<[1], [1], [0], [0], [0, 0, 1, 0], [], []>} : vector<16x16xbf16>, vector<16x16xbf16>, vector<16x16xf32> -> vector<16x16xf32>
    %272 = vector.broadcast %243 : vector<1x16xf32> to vector<16x16xf32>
    %273 = arith.addf %271, %272 : vector<16x16xf32>
    %cst_77 = arith.constant dense<0xFF800000> : vector<16xf32>
    %274 = vector.multi_reduction <maximumf>, %273, %cst_77 [1] : vector<16x16xf32> to vector<16xf32>
    %275 = vector.shape_cast %274 : vector<16xf32> to vector<16x1xf32>
    %276 = vector.broadcast %275 : vector<16x1xf32> to vector<16x16xf32>
    %277 = arith.subf %273, %276 : vector<16x16xf32>
    %278 = math.exp %277 : vector<16x16xf32>
    %cst_78 = arith.constant dense<0.000000e+00> : vector<16xf32>
    %279 = vector.multi_reduction <add>, %278, %cst_78 [1] : vector<16x16xf32> to vector<16xf32>
    %280 = vector.shape_cast %279 : vector<16xf32> to vector<16x1xf32>
    %281 = tpu.reciprocal %280 {approx = true} : vector<16x1xf32> -> vector<16x1xf32>
    %282 = vector.broadcast %281 : vector<16x1xf32> to vector<16x16xf32>
    %283 = arith.mulf %278, %282 : vector<16x16xf32>
    %284 = arith.truncf %283 : vector<16x16xf32> to vector<16x16xbf16>
    %285 = arith.truncf %268 : vector<16x16xf32> to vector<16x16xbf16>
    %cst_79 = arith.constant dense<0.000000e+00> : vector<16x16xf32>
    %286 = tpu.matmul %284, %285, %cst_79 {dimension_numbers = #tpu.dot_dimension_numbers<[1], [0], [0], [1], [0, 0, 1, 1], [], []>} : vector<16x16xbf16>, vector<16x16xbf16>, vector<16x16xf32> -> vector<16x16xf32>
    %c0_80 = arith.constant 0 : index
    %c16_81 = arith.constant 16 : index
    %287 = vector.load %arg8[%c0_80, %c16_81] : memref<32x32xf32, #tpu.memory_space<vmem>>, vector<16x16xf32>
    tpu.vector_store %arg8[%c0_80, %c16_81], %286 {strides = array<i32>} : memref<32x32xf32, #tpu.memory_space<vmem>>, vector<16x16xf32>,
    %288 = vector.extract_strided_slice %47 {offsets = [1, 0], sizes = [1, 16], strides = [1, 1]} : vector<2x16xf32> to vector<1x16xf32>
    %289 = vector.extract_strided_slice %242 {offsets = [16, 0], sizes = [16, 16], strides = [1, 1]} : vector<32x96xf32> to vector<16x16xf32>
    %290 = vector.extract_strided_slice %242 {offsets = [16, 32], sizes = [16, 16], strides = [1, 1]} : vector<32x96xf32> to vector<16x16xf32>
    %291 = vector.extract_strided_slice %242 {offsets = [16, 64], sizes = [16, 16], strides = [1, 1]} : vector<32x96xf32> to vector<16x16xf32>
    %292 = arith.truncf %289 : vector<16x16xf32> to vector<16x16xbf16>
    %293 = arith.truncf %290 : vector<16x16xf32> to vector<16x16xbf16>
    %cst_82 = arith.constant dense<0.000000e+00> : vector<16x16xf32>
    %294 = tpu.matmul %292, %293, %cst_82 {dimension_numbers = #tpu.dot_dimension_numbers<[1], [1], [0], [0], [0, 0, 1, 0], [], []>} : vector<16x16xbf16>, vector<16x16xbf16>, vector<16x16xf32> -> vector<16x16xf32>
    %295 = vector.broadcast %288 : vector<1x16xf32> to vector<16x16xf32>
    %296 = arith.addf %294, %295 : vector<16x16xf32>
    %cst_83 = arith.constant dense<0xFF800000> : vector<16xf32>
    %297 = vector.multi_reduction <maximumf>, %296, %cst_83 [1] : vector<16x16xf32> to vector<16xf32>
    %298 = vector.shape_cast %297 : vector<16xf32> to vector<16x1xf32>
    %299 = vector.broadcast %298 : vector<16x1xf32> to vector<16x16xf32>
    %300 = arith.subf %296, %299 : vector<16x16xf32>
    %301 = math.exp %300 : vector<16x16xf32>
    %cst_84 = arith.constant dense<0.000000e+00> : vector<16xf32>
    %302 = vector.multi_reduction <add>, %301, %cst_84 [1] : vector<16x16xf32> to vector<16xf32>
    %303 = vector.shape_cast %302 : vector<16xf32> to vector<16x1xf32>
    %304 = tpu.reciprocal %303 {approx = true} : vector<16x1xf32> -> vector<16x1xf32>
    %305 = vector.broadcast %304 : vector<16x1xf32> to vector<16x16xf32>
    %306 = arith.mulf %301, %305 : vector<16x16xf32>
    %307 = arith.truncf %306 : vector<16x16xf32> to vector<16x16xbf16>
    %308 = arith.truncf %291 : vector<16x16xf32> to vector<16x16xbf16>
    %cst_85 = arith.constant dense<0.000000e+00> : vector<16x16xf32>
    %309 = tpu.matmul %307, %308, %cst_85 {dimension_numbers = #tpu.dot_dimension_numbers<[1], [0], [0], [1], [0, 0, 1, 1], [], []>} : vector<16x16xbf16>, vector<16x16xbf16>, vector<16x16xf32> -> vector<16x16xf32>
    %c16_86 = arith.constant 16 : index
    %c0_87 = arith.constant 0 : index
    %310 = vector.load %arg8[%c16_86, %c0_87] : memref<32x32xf32, #tpu.memory_space<vmem>>, vector<16x16xf32>
    tpu.vector_store %arg8[%c16_86, %c0_87], %309 {strides = array<i32>} : memref<32x32xf32, #tpu.memory_space<vmem>>, vector<16x16xf32>,
    %311 = vector.extract_strided_slice %242 {offsets = [16, 16], sizes = [16, 16], strides = [1, 1]} : vector<32x96xf32> to vector<16x16xf32>
    %312 = vector.extract_strided_slice %242 {offsets = [16, 48], sizes = [16, 16], strides = [1, 1]} : vector<32x96xf32> to vector<16x16xf32>
    %313 = vector.extract_strided_slice %242 {offsets = [16, 80], sizes = [16, 16], strides = [1, 1]} : vector<32x96xf32> to vector<16x16xf32>
    %314 = arith.truncf %311 : vector<16x16xf32> to vector<16x16xbf16>
    %315 = arith.truncf %312 : vector<16x16xf32> to vector<16x16xbf16>
    %cst_88 = arith.constant dense<0.000000e+00> : vector<16x16xf32>
    %316 = tpu.matmul %314, %315, %cst_88 {dimension_numbers = #tpu.dot_dimension_numbers<[1], [1], [0], [0], [0, 0, 1, 0], [], []>} : vector<16x16xbf16>, vector<16x16xbf16>, vector<16x16xf32> -> vector<16x16xf32>
    %317 = vector.broadcast %288 : vector<1x16xf32> to vector<16x16xf32>
    %318 = arith.addf %316, %317 : vector<16x16xf32>
    %cst_89 = arith.constant dense<0xFF800000> : vector<16xf32>
    %319 = vector.multi_reduction <maximumf>, %318, %cst_89 [1] : vector<16x16xf32> to vector<16xf32>
    %320 = vector.shape_cast %319 : vector<16xf32> to vector<16x1xf32>
    %321 = vector.broadcast %320 : vector<16x1xf32> to vector<16x16xf32>
    %322 = arith.subf %318, %321 : vector<16x16xf32>
    %323 = math.exp %322 : vector<16x16xf32>
    %cst_90 = arith.constant dense<0.000000e+00> : vector<16xf32>
    %324 = vector.multi_reduction <add>, %323, %cst_90 [1] : vector<16x16xf32> to vector<16xf32>
    %325 = vector.shape_cast %324 : vector<16xf32> to vector<16x1xf32>
    %326 = tpu.reciprocal %325 {approx = true} : vector<16x1xf32> -> vector<16x1xf32>
    %327 = vector.broadcast %326 : vector<16x1xf32> to vector<16x16xf32>
    %328 = arith.mulf %323, %327 : vector<16x16xf32>
    %329 = arith.truncf %328 : vector<16x16xf32> to vector<16x16xbf16>
    %330 = arith.truncf %313 : vector<16x16xf32> to vector<16x16xbf16>
    %cst_91 = arith.constant dense<0.000000e+00> : vector<16x16xf32>
    %331 = tpu.matmul %329, %330, %cst_91 {dimension_numbers = #tpu.dot_dimension_numbers<[1], [0], [0], [1], [0, 0, 1, 1], [], []>} : vector<16x16xbf16>, vector<16x16xbf16>, vector<16x16xf32> -> vector<16x16xf32>
    %c16_92 = arith.constant 16 : index
    %c16_93 = arith.constant 16 : index
    %332 = vector.load %arg8[%c16_92, %c16_93] : memref<32x32xf32, #tpu.memory_space<vmem>>, vector<16x16xf32>
    tpu.vector_store %arg8[%c16_92, %c16_93], %331 {strides = array<i32>} : memref<32x32xf32, #tpu.memory_space<vmem>>, vector<16x16xf32>,
    %c96 = arith.constant 96 : index
    %c0_94 = arith.constant 0 : index
    %333 = vector.load %arg4[%c96, %c0_94] : memref<128x96xbf16, #tpu.memory_space<vmem>>, vector<32x96xbf16>
    %c0_95 = arith.constant 0 : index
    %c0_96 = arith.constant 0 : index
    %334 = vector.load %arg8[%c0_95, %c0_96] : memref<32x32xf32, #tpu.memory_space<vmem>>, vector<32x32xf32>
    %335 = arith.truncf %334 : vector<32x32xf32> to vector<32x32xbf16>
    %336 = vector.extract_strided_slice %333 {offsets = [0, 0], sizes = [32, 32], strides = [1, 1]} : vector<32x96xbf16> to vector<32x32xbf16>
    %cst_97 = arith.constant dense<0.000000e+00> : vector<32x32xf32>
    %337 = tpu.matmul %335, %336, %cst_97 {dimension_numbers = #tpu.dot_dimension_numbers<[1], [0], [0], [1], [0, 0, 1, 1], [], []>} : vector<32x32xbf16>, vector<32x32xbf16>, vector<32x32xf32> -> vector<32x32xf32>
    %338 = vector.broadcast %231 : vector<1x32xf32> to vector<32x32xf32>
    %339 = arith.addf %337, %338 : vector<32x32xf32>
    %340 = arith.addf %230, %339 : vector<32x32xf32>
    %cst_98 = arith.constant dense<0.000000e+00> : vector<32xf32>
    %341 = vector.multi_reduction <add>, %340, %cst_98 [1] : vector<32x32xf32> to vector<32xf32>
    %342 = vector.shape_cast %341 : vector<32xf32> to vector<32x1xf32>
    %cst_99 = arith.constant 3.200000e+01 : f32
    %343 = vector.broadcast %cst_99 : f32 to vector<32x1xf32>
    %344 = arith.divf %342, %343 : vector<32x1xf32>
    %345 = arith.mulf %340, %340 : vector<32x32xf32>
    %cst_100 = arith.constant dense<0.000000e+00> : vector<32xf32>
    %346 = vector.multi_reduction <add>, %345, %cst_100 [1] : vector<32x32xf32> to vector<32xf32>
    %347 = vector.shape_cast %346 : vector<32xf32> to vector<32x1xf32>
    %cst_101 = arith.constant 3.200000e+01 : f32
    %348 = vector.broadcast %cst_101 : f32 to vector<32x1xf32>
    %349 = arith.divf %347, %348 : vector<32x1xf32>
    %350 = arith.mulf %344, %344 : vector<32x1xf32>
    %351 = arith.subf %349, %350 : vector<32x1xf32>
    %cst_102 = arith.constant 0.000000e+00 : f32
    %352 = vector.broadcast %cst_102 : f32 to vector<32x1xf32>
    %353 = arith.maximumf %351, %352 : vector<32x1xf32>
    %354 = vector.broadcast %344 : vector<32x1xf32> to vector<32x32xf32>
    %355 = arith.subf %340, %354 : vector<32x32xf32>
    %cst_103 = arith.constant 9.99999996E-13 : f32
    %356 = vector.broadcast %cst_103 : f32 to vector<32x1xf32>
    %357 = arith.addf %353, %356 : vector<32x1xf32>
    %358 = math.rsqrt %357 : vector<32x1xf32>
    %359 = vector.broadcast %358 : vector<32x1xf32> to vector<32x32xf32>
    %360 = arith.mulf %355, %359 : vector<32x32xf32>
    %361 = vector.broadcast %232 : vector<1x32xf32> to vector<32x32xf32>
    %362 = arith.mulf %360, %361 : vector<32x32xf32>
    %363 = vector.broadcast %233 : vector<1x32xf32> to vector<32x32xf32>
    %364 = arith.addf %362, %363 : vector<32x32xf32>
    %365 = arith.truncf %364 : vector<32x32xf32> to vector<32x32xbf16>
    %366 = vector.extract_strided_slice %333 {offsets = [0, 32], sizes = [32, 64], strides = [1, 1]} : vector<32x96xbf16> to vector<32x64xbf16>
    %cst_104 = arith.constant dense<0.000000e+00> : vector<32x64xf32>
    %367 = tpu.matmul %365, %366, %cst_104 {dimension_numbers = #tpu.dot_dimension_numbers<[1], [0], [0], [1], [0, 0, 1, 1], [], []>} : vector<32x32xbf16>, vector<32x64xbf16>, vector<32x64xf32> -> vector<32x64xf32>
    %c3 = arith.constant 3 : index
    %c0_105 = arith.constant 0 : index
    %368 = vector.load %arg6[%c3, %c0_105] : memref<4x96xf32, #tpu.memory_space<vmem>>, vector<1x64xf32>
    %369 = vector.broadcast %368 : vector<1x64xf32> to vector<32x64xf32>
    %370 = arith.addf %367, %369 : vector<32x64xf32>
    %371 = arith.mulf %370, %370 : vector<32x64xf32>
    %372 = arith.mulf %370, %371 : vector<32x64xf32>
    %cst_106 = arith.constant 4.471500e-02 : f32
    %373 = vector.broadcast %cst_106 : f32 to vector<32x64xf32>
    %374 = arith.mulf %373, %372 : vector<32x64xf32>
    %375 = arith.addf %370, %374 : vector<32x64xf32>
    %cst_107 = arith.constant 0.797884583 : f32
    %376 = vector.broadcast %cst_107 : f32 to vector<32x64xf32>
    %377 = arith.mulf %376, %375 : vector<32x64xf32>
    %378 = math.tanh %377 : vector<32x64xf32>
    %cst_108 = arith.constant 1.000000e+00 : f32
    %379 = vector.broadcast %cst_108 : f32 to vector<32x64xf32>
    %380 = arith.addf %379, %378 : vector<32x64xf32>
    %cst_109 = arith.constant 5.000000e-01 : f32
    %381 = vector.broadcast %cst_109 : f32 to vector<32x64xf32>
    %382 = arith.mulf %381, %380 : vector<32x64xf32>
    %383 = arith.mulf %370, %382 : vector<32x64xf32>
    %c208 = arith.constant 208 : index
    %c0_110 = arith.constant 0 : index
    %384 = vector.load %arg3[%c208, %c0_110] : memref<272x32xbf16, #tpu.memory_space<vmem>>, vector<64x32xbf16>
    %385 = arith.truncf %383 : vector<32x64xf32> to vector<32x64xbf16>
    %cst_111 = arith.constant dense<0.000000e+00> : vector<32x32xf32>
    %386 = tpu.matmul %385, %384, %cst_111 {dimension_numbers = #tpu.dot_dimension_numbers<[1], [0], [0], [1], [0, 0, 1, 1], [], []>} : vector<32x64xbf16>, vector<64x32xbf16>, vector<32x32xf32> -> vector<32x32xf32>
    %387 = vector.broadcast %234 : vector<1x32xf32> to vector<32x32xf32>
    %388 = arith.addf %386, %387 : vector<32x32xf32>
    %389 = arith.addf %364, %388 : vector<32x32xf32>
    %cst_112 = arith.constant dense<0.000000e+00> : vector<32xf32>
    %390 = vector.multi_reduction <add>, %389, %cst_112 [1] : vector<32x32xf32> to vector<32xf32>
    %391 = vector.shape_cast %390 : vector<32xf32> to vector<32x1xf32>
    %cst_113 = arith.constant 3.200000e+01 : f32
    %392 = vector.broadcast %cst_113 : f32 to vector<32x1xf32>
    %393 = arith.divf %391, %392 : vector<32x1xf32>
    %394 = arith.mulf %389, %389 : vector<32x32xf32>
    %cst_114 = arith.constant dense<0.000000e+00> : vector<32xf32>
    %395 = vector.multi_reduction <add>, %394, %cst_114 [1] : vector<32x32xf32> to vector<32xf32>
    %396 = vector.shape_cast %395 : vector<32xf32> to vector<32x1xf32>
    %cst_115 = arith.constant 3.200000e+01 : f32
    %397 = vector.broadcast %cst_115 : f32 to vector<32x1xf32>
    %398 = arith.divf %396, %397 : vector<32x1xf32>
    %399 = arith.mulf %393, %393 : vector<32x1xf32>
    %400 = arith.subf %398, %399 : vector<32x1xf32>
    %cst_116 = arith.constant 0.000000e+00 : f32
    %401 = vector.broadcast %cst_116 : f32 to vector<32x1xf32>
    %402 = arith.maximumf %400, %401 : vector<32x1xf32>
    %403 = vector.broadcast %393 : vector<32x1xf32> to vector<32x32xf32>
    %404 = arith.subf %389, %403 : vector<32x32xf32>
    %cst_117 = arith.constant 9.99999996E-13 : f32
    %405 = vector.broadcast %cst_117 : f32 to vector<32x1xf32>
    %406 = arith.addf %402, %405 : vector<32x1xf32>
    %407 = math.rsqrt %406 : vector<32x1xf32>
    %408 = vector.broadcast %407 : vector<32x1xf32> to vector<32x32xf32>
    %409 = arith.mulf %404, %408 : vector<32x32xf32>
    %410 = vector.broadcast %235 : vector<1x32xf32> to vector<32x32xf32>
    %411 = arith.mulf %409, %410 : vector<32x32xf32>
    %412 = vector.broadcast %236 : vector<1x32xf32> to vector<32x32xf32>
    %413 = arith.addf %411, %412 : vector<32x32xf32>
    %414 = vector.extract_strided_slice %0 {offsets = [14, 0], sizes = [16, 32], strides = [1, 1]} : vector<48x32xf32> to vector<16x32xf32>
    %415 = vector.extract_strided_slice %0 {offsets = [42, 0], sizes = [1, 32], strides = [1, 1]} : vector<48x32xf32> to vector<1x32xf32>
    %416 = vector.extract_strided_slice %413 {offsets = [0, 0], sizes = [16, 32], strides = [1, 1]} : vector<32x32xf32> to vector<16x32xf32>
    %cst_118 = arith.constant dense<0.000000e+00> : vector<1x16xf32>
    %417 = tpu.matmul %415, %416, %cst_118 {dimension_numbers = #tpu.dot_dimension_numbers<[1], [1], [0], [0], [0, 0, 1, 0], [], []>} : vector<1x32xf32>, vector<16x32xf32>, vector<1x16xf32> -> vector<1x16xf32>
    %cst_119 = arith.constant dense<0.000000e+00> : vector<1x32xf32>
    %418 = tpu.matmul %417, %414, %cst_119 {dimension_numbers = #tpu.dot_dimension_numbers<[1], [0], [0], [1], [0, 0, 1, 1], [], []>} : vector<1x16xf32>, vector<16x32xf32>, vector<1x32xf32> -> vector<1x32xf32>
    %c0_120 = arith.constant 0 : index
    %c0_121 = arith.constant 0 : index
    %419 = vector.load %arg9[%c0_120, %c0_121] : memref<2x32xf32, #tpu.memory_space<vmem>>, vector<1x32xf32>
    tpu.vector_store %arg9[%c0_120, %c0_121], %418 {strides = array<i32>} : memref<2x32xf32, #tpu.memory_space<vmem>>, vector<1x32xf32>,
    %420 = vector.extract_strided_slice %413 {offsets = [16, 0], sizes = [16, 32], strides = [1, 1]} : vector<32x32xf32> to vector<16x32xf32>
    %cst_122 = arith.constant dense<0.000000e+00> : vector<1x16xf32>
    %421 = tpu.matmul %415, %420, %cst_122 {dimension_numbers = #tpu.dot_dimension_numbers<[1], [1], [0], [0], [0, 0, 1, 0], [], []>} : vector<1x32xf32>, vector<16x32xf32>, vector<1x16xf32> -> vector<1x16xf32>
    %cst_123 = arith.constant dense<0.000000e+00> : vector<1x32xf32>
    %422 = tpu.matmul %421, %414, %cst_123 {dimension_numbers = #tpu.dot_dimension_numbers<[1], [0], [0], [1], [0, 0, 1, 1], [], []>} : vector<1x16xf32>, vector<16x32xf32>, vector<1x32xf32> -> vector<1x32xf32>
    %c1_124 = arith.constant 1 : index
    %c0_125 = arith.constant 0 : index
    %423 = vector.load %arg9[%c1_124, %c0_125] : memref<2x32xf32, #tpu.memory_space<vmem>>, vector<1x32xf32>
    tpu.vector_store %arg9[%c1_124, %c0_125], %422 {strides = array<i32>} : memref<2x32xf32, #tpu.memory_space<vmem>>, vector<1x32xf32>,
    %c0_126 = arith.constant 0 : index
    %c0_127 = arith.constant 0 : index
    %424 = vector.load %arg9[%c0_126, %c0_127] : memref<2x32xf32, #tpu.memory_space<vmem>>, vector<2x32xf32>
    %425 = vector.extract_strided_slice %0 {offsets = [38, 0], sizes = [1, 32], strides = [1, 1]} : vector<48x32xf32> to vector<1x32xf32>
    %426 = vector.broadcast %425 : vector<1x32xf32> to vector<2x32xf32>
    %427 = arith.addf %424, %426 : vector<2x32xf32>
    %c0_128 = arith.constant 0 : index
    %c0_129 = arith.constant 0 : index
    %428 = vector.load %arg2[%c0_128, %c0_129] : memref<2x8xf32, #tpu.memory_space<vmem>>, vector<2x8xf32>
    %429 = vector.extract_strided_slice %0 {offsets = [30, 0], sizes = [8, 32], strides = [1, 1]} : vector<48x32xf32> to vector<8x32xf32>
    %cst_130 = arith.constant dense<0.000000e+00> : vector<2x32xf32>
    %430 = tpu.matmul %428, %429, %cst_130 {dimension_numbers = #tpu.dot_dimension_numbers<[1], [0], [0], [1], [0, 0, 1, 1], [], []>} : vector<2x8xf32>, vector<8x32xf32>, vector<2x32xf32> -> vector<2x32xf32>
    %431 = vector.extract_strided_slice %0 {offsets = [39, 0], sizes = [1, 32], strides = [1, 1]} : vector<48x32xf32> to vector<1x32xf32>
    %432 = vector.broadcast %431 : vector<1x32xf32> to vector<2x32xf32>
    %433 = arith.addf %430, %432 : vector<2x32xf32>
    %cst_131 = arith.constant 0.000000e+00 : f32
    %434 = vector.broadcast %cst_131 : f32 to vector<2x32xf32>
    %435 = arith.maximumf %427, %434 : vector<2x32xf32>
    %cst_132 = arith.constant 0.000000e+00 : f32
    %436 = vector.broadcast %cst_132 : f32 to vector<2x32xf32>
    %437 = arith.maximumf %433, %436 : vector<2x32xf32>
    %438 = vector.extract_strided_slice %0 {offsets = [40, 0], sizes = [1, 32], strides = [1, 1]} : vector<48x32xf32> to vector<1x32xf32>
    %cst_133 = arith.constant dense<0.000000e+00> : vector<2x1xf32>
    %439 = tpu.matmul %435, %438, %cst_133 {dimension_numbers = #tpu.dot_dimension_numbers<[1], [1], [0], [0], [0, 0, 1, 0], [], []>} : vector<2x32xf32>, vector<1x32xf32>, vector<2x1xf32> -> vector<2x1xf32>
    %440 = vector.extract_strided_slice %0 {offsets = [41, 0], sizes = [1, 32], strides = [1, 1]} : vector<48x32xf32> to vector<1x32xf32>
    %cst_134 = arith.constant dense<0.000000e+00> : vector<2x1xf32>
    %441 = tpu.matmul %437, %440, %cst_134 {dimension_numbers = #tpu.dot_dimension_numbers<[1], [1], [0], [0], [0, 0, 1, 0], [], []>} : vector<2x32xf32>, vector<1x32xf32>, vector<2x1xf32> -> vector<2x1xf32>
    %442 = arith.addf %439, %441 : vector<2x1xf32>
    %443 = vector.extract_strided_slice %0 {offsets = [43, 0], sizes = [1, 1], strides = [1, 1]} : vector<48x32xf32> to vector<1x1xf32>
    %444 = vector.broadcast %443 : vector<1x1xf32> to vector<2x1xf32>
    %445 = arith.addf %442, %444 : vector<2x1xf32>
    %446 = arith.negf %445 : vector<2x1xf32>
    %447 = math.exp %446 : vector<2x1xf32>
    %cst_135 = arith.constant 1.000000e+00 : f32
    %448 = vector.broadcast %cst_135 : f32 to vector<2x1xf32>
    %449 = arith.addf %448, %447 : vector<2x1xf32>
    %450 = arith.divf %448, %449 : vector<2x1xf32>
    %c0_136 = arith.constant 0 : index
    %c0_137 = arith.constant 0 : index
    %451 = vector.load %arg7[%c0_136, %c0_137] : memref<2x1xf32, #tpu.memory_space<vmem>>, vector<2x1xf32>
    tpu.vector_store %arg7[%c0_136, %c0_137], %450 {strides = array<i32>} : memref<2x1xf32, #tpu.memory_space<vmem>>, vector<2x1xf32>,
    return
  }
}

</mosaic_0001>

<llo_original>
// kernel: tinybert_classifier_forward.1
$region0: #{tinybert_classifier_forward.1}
  #allocation0 [shape = 'u32[]', space=smem, size = 0x4, offset = 0x4, fixed_abs, tag = 'smem constant byte address 0x4 - core index']
  #allocation1 [shape = 'u32[144,128]{1,0:T(1,128)}', space=vmem, size = 0x12000, scoped, tag = 'internal scratch']
  #allocation2 [shape = 'f32[32,32]{1,0:T(8,128)}', space=vmem, size = 0x4000, scoped, tag = 'scratch operand']
  #allocation3 [shape = 'f32[2,32]{1,0:T(2,128)}', space=vmem, size = 0x400, scoped, tag = 'scratch operand']
  %s0 = inlined_call_operand.vmem [shape: s32[32,1], index: 0, kind: input, shape index: {}]
  %s1 = inlined_call_operand.vmem [shape: f32[2,16], index: 1, kind: input, shape index: {}]
  %s2 = inlined_call_operand.vmem [shape: f32[2,8], index: 2, kind: input, shape index: {}]
  %s3 = inlined_call_operand.vmem [shape: bf16[272,32], index: 3, kind: input, shape index: {}]
  %s4 = inlined_call_operand.vmem [shape: bf16[128,96], index: 4, kind: input, shape index: {}]
  %s5 = inlined_call_operand.vmem [shape: f32[48,32], index: 5, kind: input, shape index: {}]
  %s6 = inlined_call_operand.vmem [shape: f32[4,96], index: 6, kind: input, shape index: {}]
  %s7 = inlined_call_operand.vmem [shape: f32[2,1], index: 7, kind: output, shape index: {}]
  %s8 = sld [smem:[#allocation0]]
  $region38: #{tinybert_classifier_forward.1} parent=0
    _
  %s10 = ssub.s32 1, %s8
  %s11 = scalar_select 0, %s10, %s8
  // Predicated region
  $region2: #{tinybert_classifier_forward.1} parent=0 // pred_check
    _
  $region3: #{tinybert_classifier_forward.1} parent=0 // pred_check_branch
    %13 = sbr.rel (0) target = $region5
  $region4: #{tinybert_classifier_forward.1} parent=0 // pred_region
    _
  $region5: #{tinybert_classifier_forward.1} parent=0 // pred_fallthru
    _
  // Predicated region
  $region6: #{tinybert_classifier_forward.1} parent=0 // pred_check
    _
  $region7: #{tinybert_classifier_forward.1} parent=0 // pred_check_branch
    %15 = sbr.rel (0) target = $region9
  $region8: #{tinybert_classifier_forward.1} parent=0 // pred_region
    _
  $region9: #{tinybert_classifier_forward.1} parent=0 // pred_fallthru
    _
  // Predicated region
  $region10: #{tinybert_classifier_forward.1} parent=0 // pred_check
    _
  $region11: #{tinybert_classifier_forward.1} parent=0 // pred_check_branch
    %17 = sbr.rel (0) target = $region13
  $region12: #{tinybert_classifier_forward.1} parent=0 // pred_region
    _
  $region13: #{tinybert_classifier_forward.1} parent=0 // pred_fallthru
    _
  // Predicated region
  $region14: #{tinybert_classifier_forward.1} parent=0 // pred_check
    _
  $region15: #{tinybert_classifier_forward.1} parent=0 // pred_check_branch
    %19 = sbr.rel (0) target = $region17
  $region16: #{tinybert_classifier_forward.1} parent=0 // pred_region
    _
  $region17: #{tinybert_classifier_forward.1} parent=0 // pred_fallthru
    _
  // Predicated region
  $region18: #{tinybert_classifier_forward.1} parent=0 // pred_check
    _
  $region19: #{tinybert_classifier_forward.1} parent=0 // pred_check_branch
    %21 = sbr.rel (0) target = $region21
  $region20: #{tinybert_classifier_forward.1} parent=0 // pred_region
    _
  $region21: #{tinybert_classifier_forward.1} parent=0 // pred_fallthru
    _
  // Predicated region
  $region22: #{tinybert_classifier_forward.1} parent=0 // pred_check
    _
  $region23: #{tinybert_classifier_forward.1} parent=0 // pred_check_branch
    %23 = sbr.rel (0) target = $region25
  $region24: #{tinybert_classifier_forward.1} parent=0 // pred_region
    _
  $region25: #{tinybert_classifier_forward.1} parent=0 // pred_fallthru
    _
  // Predicated region
  $region26: #{tinybert_classifier_forward.1} parent=0 // pred_check
    _
  $region27: #{tinybert_classifier_forward.1} parent=0 // pred_check_branch
    %25 = sbr.rel (0) target = $region29
  $region28: #{tinybert_classifier_forward.1} parent=0 // pred_region
    _
  $region29: #{tinybert_classifier_forward.1} parent=0 // pred_fallthru
    _
  %v27 = vld [vmem:[%s5] sm:$0xff]
  %v28 = vld [vmem:[%s5 + $0x8] sm:$0xff]
  %v29 = vld [vmem:[%s5 + $0x10] sm:$0xff]
  %v30 = vld [vmem:[%s5 + $0x18] sm:$0xff]
  %v31 = vld [vmem:[%s5 + $0x20] sm:$0xff]
  %v32 = vld [vmem:[%s5 + $0x28] sm:$0xff]
  %v33 = vld [vmem:[%s0] sm:$0xff]
  %v34 = vld [vmem:[%s0 + $0x8] sm:$0xff]
  %v35 = vld [vmem:[%s0 + $0x10] sm:$0xff]
  %v36 = vld [vmem:[%s0 + $0x18] sm:$0xff]
  %v37 = vlaneseq
  %v38 = vand.u32 %v37, 127
  %v39 = vadd.s32 %v38, 128
  %v40 = vlaneseq
  %v41 = vshrl.u32 %v40, 7
  %v42 = vadd.s32 %v41, 8
  %v43 = vadd.s32 %v41, 16
  %v44 = vadd.s32 %v41, 24
  %45 = vset.pattern.permute.xlu0 0
  %46 = vperm.xlu0 %45, %v33
  %v47 = vpop.permute.xlu0 %46
  %48 = vset.pattern.permute.xlu0 0
  %49 = vperm.xlu0 %48, %v34
  %v50 = vpop.permute.xlu0 %49
  %51 = vset.pattern.permute.xlu0 0
  %52 = vperm.xlu0 %51, %v35
  %v53 = vpop.permute.xlu0 %52
  %54 = vset.pattern.permute.xlu0 0
  %55 = vperm.xlu0 %54, %v36
  %v56 = vpop.permute.xlu0 %55
  %vm57 = vcmp.eq.s32.totalorder %v38, %v47
  %vm58 = vcmp.eq.s32.totalorder %v39, %v47
  %vm59 = vcmp.eq.s32.totalorder %v38, %v50
  %vm60 = vcmp.eq.s32.totalorder %v39, %v50
  %vm61 = vcmp.eq.s32.totalorder %v38, %v53
  %vm62 = vcmp.eq.s32.totalorder %v39, %v53
  %vm63 = vcmp.eq.s32.totalorder %v38, %v56
  %vm64 = vcmp.eq.s32.totalorder %v39, %v56
  %v65 = vsub.s32 %v38, 128
  %v66 = vand.u32 %v41, 15
  %v67 = vand.u32 %v42, 15
  %v68 = vand.u32 %v43, 15
  %v69 = vand.u32 %v44, 15
  %vm70 = vcmp.eq.s32.totalorder %v65, %v66
  %vm71 = vcmp.eq.s32.totalorder %v38, %v66
  %vm72 = vcmp.eq.s32.totalorder %v65, %v67
  %vm73 = vcmp.eq.s32.totalorder %v38, %v67
  %vm74 = vcmp.eq.s32.totalorder %v65, %v68
  %vm75 = vcmp.eq.s32.totalorder %v38, %v68
  %vm76 = vcmp.eq.s32.totalorder %v65, %v69
  %vm77 = vcmp.eq.s32.totalorder %v38, %v69
  %vm78 = vmor %vm57, %vm70
  %vm79 = vmor %vm58, %vm71
  %vm80 = vmor %vm59, %vm72
  %vm81 = vmor %vm60, %vm73
  %vm82 = vmor %vm61, %vm74
  %vm83 = vmor %vm62, %vm75
  %vm84 = vmor %vm63, %vm76
  %vm85 = vmor %vm64, %vm77
  %v86 = vsel %vm78, 1, 0
  %v87 = vsel %vm79, 1, 0
  %v88 = vsel %vm80, 1, 0
  %v89 = vsel %vm81, 1, 0
  %v90 = vsel %vm82, 1, 0
  %v91 = vsel %vm83, 1, 0
  %v92 = vsel %vm84, 1, 0
  %v93 = vsel %vm85, 1, 0
  %v94 = vcvt.s32.f32 %v86
  %v95 = vcvt.s32.f32 %v87
  %v96 = vcvt.s32.f32 %v88
  %v97 = vcvt.s32.f32 %v89
  %v98 = vcvt.s32.f32 %v90
  %v99 = vcvt.s32.f32 %v91
  %v100 = vcvt.s32.f32 %v92
  %v101 = vcvt.s32.f32 %v93
  %v102 = vpack.c.bf16 %v96, %v94
  %v103 = vpack.c.bf16 %v97, %v95
  %v104 = vpack.c.bf16 %v100, %v98
  %v105 = vpack.c.bf16 %v101, %v99
  %v106 = vld [vmem:[%s3] sm:$0xf]
  %v107 = vld [vmem:[%s3 + $0x4] sm:$0xf]
  %v108 = vld [vmem:[%s3 + $0x8] sm:$0xf]
  %v109 = vld [vmem:[%s3 + $0xc] sm:$0xf]
  %v110 = vld [vmem:[%s3 + $0x10] sm:$0xf]
  %v111 = vld [vmem:[%s3 + $0x14] sm:$0xf]
  %v112 = vld [vmem:[%s3 + $0x18] sm:$0xf]
  %v113 = vld [vmem:[%s3 + $0x1c] sm:$0xf]
  %v114 = vld [vmem:[%s3 + $0x20] sm:$0xf]
  %v115 = vld [vmem:[%s3 + $0x24] sm:$0xf]
  %v116 = vld [vmem:[%s3 + $0x28] sm:$0xf]
  %v117 = vld [vmem:[%s3 + $0x2c] sm:$0xf]
  %v118 = vld [vmem:[%s3 + $0x30] sm:$0xf]
  %v119 = vld [vmem:[%s3 + $0x34] sm:$0xf]
  %v120 = vld [vmem:[%s3 + $0x38] sm:$0xf]
  %v121 = vld [vmem:[%s3 + $0x3c] sm:$0xf]
  %v122 = vld [vmem:[%s3 + $0x40] sm:$0xf]
  %v123 = vld [vmem:[%s3 + $0x44] sm:$0xf]
  %v142 = vunpack.c.l.b16 %v106
  %v143 = vunpack.c.l.b16 %v107
  %v144 = vunpack.c.l.b16 %v108
  %v145 = vunpack.c.l.b16 %v109
  %v146 = vunpack.c.l.b16 %v110
  %v147 = vunpack.c.l.b16 %v111
  %v148 = vunpack.c.l.b16 %v112
  %v149 = vunpack.c.l.b16 %v113
  %v150 = vunpack.c.l.b16 %v114
  %v151 = vunpack.c.l.b16 %v115
  %v152 = vunpack.c.l.b16 %v116
  %v153 = vunpack.c.l.b16 %v117
  %v154 = vunpack.c.l.b16 %v118
  %v155 = vunpack.c.l.b16 %v119
  %v156 = vunpack.c.l.b16 %v120
  %v157 = vunpack.c.l.b16 %v121
  %v158 = vunpack.c.l.b16 %v122
  %v159 = vunpack.c.l.b16 %v123
  %v160 = vpack.c.b16 %v143, %v142
  %v161 = vpack.c.b16 %v145, %v144
  %v162 = vpack.c.b16 %v147, %v146
  %v163 = vpack.c.b16 %v149, %v148
  %v164 = vpack.c.b16 %v151, %v150
  %v165 = vpack.c.b16 %v153, %v152
  %v166 = vpack.c.b16 %v155, %v154
  %v167 = vpack.c.b16 %v157, %v156
  %v168 = vpack.c.b16 %v159, %v158
  %vm178 = vcmask 130048
  %v180 = vsel %vm178, %v103, 0
  %v183 = vsel %vm178, %v105, 0
  %185 = vmatprep.subr.bf16.mxu0 0
  %186 = vmatpush1.bf16.msra.mxu0 %v160
  %187 = vmatprep.subr.bf16.mxu0 0
  %188 = vmatpush1.bf16.msra.mxu0 %v161
  %189 = vmatprep.subr.bf16.mxu0 0
  %190 = vmatpush1.bf16.msra.mxu0 %v162
  %191 = vmatprep.subr.bf16.mxu0 0
  %192 = vmatpush1.bf16.msra.mxu0 %v163
  %193 = vmatprep.subr.bf16.mxu0 0
  %194 = vmatpush1.bf16.msra.mxu0 %v164
  %195 = vmatprep.subr.bf16.mxu0 0
  %196 = vmatpush1.bf16.msra.mxu0 %v165
  %197 = vmatprep.subr.bf16.mxu0 0
  %198 = vmatpush1.bf16.msra.mxu0 %v166
  %199 = vmatprep.subr.bf16.mxu0 0
  %200 = vmatpush1.bf16.msra.mxu0 %v167
  %201 = vmatprep.subr.bf16.mxu0 0
  %202 = vmatpush1.bf16.msra.mxu0 %v168
  %203 = vmatprep.subr.bf16.mxu0 0
  %204 = vmatpush1.bf16.msra.mxu0 0
  %205 = vmatprep.subr.bf16.mxu0 0
  %206 = vmatpush1.bf16.msra.mxu0 0
  %207 = vmatprep.subr.bf16.mxu0 0
  %208 = vmatpush1.bf16.msra.mxu0 0
  %209 = vmatprep.subr.bf16.mxu0 0
  %210 = vmatpush1.bf16.msra.mxu0 0
  %211 = vmatprep.subr.bf16.mxu0 0
  %212 = vmatpush1.bf16.msra.mxu0 0
  %213 = vmatprep.subr.bf16.mxu0 0
  %214 = vmatpush1.bf16.msra.mxu0 0
  %215 = vmatprep.subr.bf16.mxu0 0
  %216 = vmatpush1.bf16.msra.mxu0 0
  %217 = vmatprep.mubr.bf16.mxu0 %v180
  %218 = vmatmul.mubr.bf16.gmra.mrb[0].mxu0 %v102
  %v219 = vpop.f32.mrb[0].mxu0
  %v220 = vadd.f32 0.0, %v219
  %v221 = vpop.f32.mrb[0].mxu0
  %v222 = vpop.f32.mrb[0].mxu0
  %v223 = vadd.f32 0.0, %v222
  %v224 = vpop.f32.mrb[0].mxu0
  %225 = vmatprep.mubr.bf16.mxu0 %v183
  %226 = vmatmul.mubr.bf16.gmra.mrb[0].mxu0 %v104
  %v227 = vpop.f32.mrb[0].mxu0
  %v228 = vadd.f32 0.0, %v227
  %v229 = vpop.f32.mrb[0].mxu0
  %v230 = vpop.f32.mrb[0].mxu0
  %v231 = vadd.f32 0.0, %v230
  %v232 = vpop.f32.mrb[0].mxu0
  %233 = vdwg.mxu0
  %vm234 = vcmask 261120
  %v235 = vsel %vm234, %v220, 0.0
  %236 = vadd.xlane.f32.xlu0 %v235
  %v237 = vpop.xlane.xlu0 %236
  %v238 = vsel %vm234, %v223, 0.0
  %239 = vadd.xlane.f32.xlu0 %v238
  %v240 = vpop.xlane.xlu0 %239
  %v241 = vsel %vm234, %v228, 0.0
  %242 = vadd.xlane.f32.xlu0 %v241
  %v243 = vpop.xlane.xlu0 %242
  %v244 = vsel %vm234, %v231, 0.0
  %245 = vadd.xlane.f32.xlu0 %v244
  %v246 = vpop.xlane.xlu0 %245
  %v247 = vrcp.pop 32.0
  %v248 = vmul.f32 %v237, %v247
  %v249 = vmul.f32 %v240, %v247
  %v250 = vmul.f32 %v243, %v247
  %v251 = vmul.f32 %v246, %v247
  %v252 = vmul.f32 %v220, %v220
  %v253 = vmul.f32 %v223, %v223
  %v254 = vmul.f32 %v228, %v228
  %v255 = vmul.f32 %v231, %v231
  %v256 = vsel %vm234, %v252, 0.0
  %257 = vadd.xlane.f32.xlu0 %v256
  %v258 = vpop.xlane.xlu0 %257
  %v259 = vsel %vm234, %v253, 0.0
  %260 = vadd.xlane.f32.xlu0 %v259
  %v261 = vpop.xlane.xlu0 %260
  %v262 = vsel %vm234, %v254, 0.0
  %263 = vadd.xlane.f32.xlu0 %v262
  %v264 = vpop.xlane.xlu0 %263
  %v265 = vsel %vm234, %v255, 0.0
  %266 = vadd.xlane.f32.xlu0 %v265
  %v267 = vpop.xlane.xlu0 %266
  %v268 = vmul.f32 %v258, %v247
  %v269 = vmul.f32 %v261, %v247
  %v270 = vmul.f32 %v264, %v247
  %v271 = vmul.f32 %v267, %v247
  %v272 = vmul.f32 %v248, %v248
  %v273 = vmul.f32 %v249, %v249
  %v274 = vmul.f32 %v250, %v250
  %v275 = vmul.f32 %v251, %v251
  %v276 = vsub.f32 %v268, %v272
  %v277 = vsub.f32 %v269, %v273
  %v278 = vsub.f32 %v270, %v274
  %v279 = vsub.f32 %v271, %v275
  %v280 = vmax.f32 %v276, 0.0
  %v281 = vmax.f32 %v277, 0.0
  %v282 = vmax.f32 %v278, 0.0
  %v283 = vmax.f32 %v279, 0.0
  %v284 = vsub.f32 %v220, %v248
  %v285 = vsub.f32 %v223, %v249
  %v286 = vsub.f32 %v228, %v250
  %v287 = vsub.f32 %v231, %v251
  %v288 = vadd.f32 %v280, 1e-12
  %v289 = vadd.f32 %v281, 1e-12
  %v290 = vadd.f32 %v282, 1e-12
  %v291 = vadd.f32 %v283, 1e-12
  %v292 = vrsqrt.pop %v288
  %v293 = vrsqrt.pop %v289
  %v294 = vrsqrt.pop %v290
  %v295 = vrsqrt.pop %v291
  %v296 = vmul.f32 %v284, %v292
  %v297 = vmul.f32 %v285, %v293
  %v298 = vmul.f32 %v286, %v294
  %v299 = vmul.f32 %v287, %v295
  %v300 = vlaneseq
  %v301 = vshrl.u32 %v300, 7
  %v302 = vsub.s32 0, %v301
  %v303 = vrot.slane %v27, %v302
  %v304 = vmul.f32 %v296, %v303
  %v305 = vmul.f32 %v297, %v303
  %v306 = vmul.f32 %v298, %v303
  %v307 = vmul.f32 %v299, %v303
  %v308 = vlaneseq
  %v309 = vshrl.u32 %v308, 7
  %v310 = vsub.s32 1, %v309
  %v311 = vrot.slane %v27, %v310
  %v312 = vadd.f32 %v304, %v311
  %v313 = vadd.f32 %v305, %v311
  %v314 = vadd.f32 %v306, %v311
  %v315 = vadd.f32 %v307, %v311
  %v316 = vld [vmem:[%s1] sm:$0x3]
  %v317 = vsub.f32 1.0, %v316
  %v318 = vmul.f32 %v317, -10000.0
  %v319 = vld [vmem:[%s4] sm:$0xf]
  %v320 = vld [vmem:[%s4 + $0x4] sm:$0xf]
  %v321 = vld [vmem:[%s4 + $0x8] sm:$0xf]
  %v322 = vld [vmem:[%s4 + $0xc] sm:$0xf]
  %v323 = vpack.c.bf16 %v313, %v312
  %v324 = vpack.c.bf16 %v315, %v314
  %v325 = vld [vmem:[%s6] sm:$0x1]
  %v326 = vlaneseq
  %v327 = vshrl.u32 %v326, 7
  %v328 = vsub.s32 0, %v327
  %v329 = vrot.slane %v325, %v328
  %v334 = vunpack.c.l.b16 %v319
  %v335 = vunpack.c.l.b16 %v320
  %v336 = vunpack.c.l.b16 %v321
  %v337 = vunpack.c.l.b16 %v322
  %v338 = vpack.c.b16 %v335, %v334
  %v339 = vpack.c.b16 %v337, %v336
  %v343 = vsel %vm234, %v323, 0
  %v346 = vsel %vm234, %v324, 0
  %348 = vmatprep.subr.bf16.mxu0 0
  %349 = vmatpush1.bf16.msra.mxu0 %v338
  %350 = vmatprep.subr.bf16.mxu0 0
  %351 = vmatpush1.bf16.msra.mxu0 %v339
  %352 = vmatprep.subr.bf16.mxu0 0
  %353 = vmatpush1.bf16.msra.mxu0 0
  %354 = vmatprep.subr.bf16.mxu0 0
  %355 = vmatpush1.bf16.msra.mxu0 0
  %356 = vmatprep.subr.bf16.mxu0 0
  %357 = vmatpush1.bf16.msra.mxu0 0
  %358 = vmatprep.subr.bf16.mxu0 0
  %359 = vmatpush1.bf16.msra.mxu0 0
  %360 = vmatprep.subr.bf16.mxu0 0
  %361 = vmatpush1.bf16.msra.mxu0 0
  %362 = vmatprep.subr.bf16.mxu0 0
  %363 = vmatpush1.bf16.msra.mxu0 0
  %364 = vmatprep.subr.bf16.mxu0 0
  %365 = vmatpush1.bf16.msra.mxu0 0
  %366 = vmatprep.subr.bf16.mxu0 0
  %367 = vmatpush1.bf16.msra.mxu0 0
  %368 = vmatprep.subr.bf16.mxu0 0
  %369 = vmatpush1.bf16.msra.mxu0 0
  %370 = vmatprep.subr.bf16.mxu0 0
  %371 = vmatpush1.bf16.msra.mxu0 0
  %372 = vmatprep.subr.bf16.mxu0 0
  %373 = vmatpush1.bf16.msra.mxu0 0
  %374 = vmatprep.subr.bf16.mxu0 0
  %375 = vmatpush1.bf16.msra.mxu0 0
  %376 = vmatprep.subr.bf16.mxu0 0
  %377 = vmatpush1.bf16.msra.mxu0 0
  %378 = vmatprep.subr.bf16.mxu0 0
  %379 = vmatpush1.bf16.msra.mxu0 0
  %380 = vmatprep.mubr.bf16.mxu0 0
  %381 = vmatmul.mubr.bf16.gmra.mrb[0].mxu0 %v343
  %v382 = vpop.f32.mrb[0].mxu0
  %v383 = vadd.f32 %v329, %v382
  %v384 = vpop.f32.mrb[0].mxu0
  %v385 = vpop.f32.mrb[0].mxu0
  %v386 = vadd.f32 %v329, %v385
  %v387 = vpop.f32.mrb[0].mxu0
  %388 = vmatprep.mubr.bf16.mxu0 0
  %389 = vmatmul.mubr.bf16.gmra.mrb[0].mxu0 %v346
  %v390 = vpop.f32.mrb[0].mxu0
  %v391 = vadd.f32 %v329, %v390
  %v392 = vpop.f32.mrb[0].mxu0
  %v393 = vpop.f32.mrb[0].mxu0
  %v394 = vadd.f32 %v329, %v393
  %v395 = vpop.f32.mrb[0].mxu0
  %396 = vdwg.mxu0
  %v397 = vpack.c.bf16 %v386, %v383
  %v398 = vlaneseq
  %v399 = vshrl.u32 %v398, 7
  %v400 = vsub.s32 0, %v399
  %v401 = vrot.slane %v318, %v400
  %403 = vrot.lane.b32.xlu0 %v397, 96
  %v404 = vpop.permute.xlu0 %403
  %v406 = vsel %vm178, %v397, 0
  %v409 = vsel %vm178, %v404, 0
  %411 = vmatprep.subr.bf16.mxu0 0
  %412 = vmatpush1.bf16.xpose.msra.mxu0 %v409
  %413 = vmatprep.subr.bf16.mxu0 0
  %414 = vmatpush1.bf16.xpose.msra.mxu0 0
  %415 = vmatprep.subr.bf16.mxu0 0
  %416 = vmatpush1.bf16.xpose.msra.mxu0 0
  %417 = vmatprep.subr.bf16.mxu0 0
  %418 = vmatpush1.bf16.xpose.msra.mxu0 0
  %419 = vmatprep.subr.bf16.mxu0 0
  %420 = vmatpush1.bf16.xpose.msra.mxu0 0
  %421 = vmatprep.subr.bf16.mxu0 0
  %422 = vmatpush1.bf16.xpose.msra.mxu0 0
  %423 = vmatprep.subr.bf16.mxu0 0
  %424 = vmatpush1.bf16.xpose.msra.mxu0 0
  %425 = vmatprep.subr.bf16.mxu0 0
  %426 = vmatpush1.bf16.xpose.msra.mxu0 0
  %427 = vmatprep.subr.bf16.mxu0 0
  %428 = vmatpush1.bf16.xpose.msra.mxu0 0
  %429 = vmatprep.subr.bf16.mxu0 0
  %430 = vmatpush1.bf16.xpose.msra.mxu0 0
  %431 = vmatprep.subr.bf16.mxu0 0
  %432 = vmatpush1.bf16.xpose.msra.mxu0 0
  %433 = vmatprep.subr.bf16.mxu0 0
  %434 = vmatpush1.bf16.xpose.msra.mxu0 0
  %435 = vmatprep.subr.bf16.mxu0 0
  %436 = vmatpush1.bf16.xpose.msra.mxu0 0
  %437 = vmatprep.subr.bf16.mxu0 0
  %438 = vmatpush1.bf16.xpose.msra.mxu0 0
  %439 = vmatprep.subr.bf16.mxu0 0
  %440 = vmatpush1.bf16.xpose.msra.mxu0 0
  %441 = vmatprep.subr.bf16.mxu0 0
  %442 = vmatpush1.bf16.xpose.msra.mxu0 0
  %443 = vmatprep.mubr.bf16.mxu0 0
  %444 = vmatmul.mubr.bf16.gmra.mrb[0].mxu0 %v406
  %v445 = vpop.f32.mrb[0].mxu0
  %v446 = vadd.f32 %v401, %v445
  %v447 = vpop.f32.mrb[0].mxu0
  %v448 = vpop.f32.mrb[0].mxu0
  %v449 = vadd.f32 %v401, %v448
  %v450 = vpop.f32.mrb[0].mxu0
  %451 = vdwg.mxu0
  %v452 = vsel %vm178, %v446, -inf
  %453 = vmax.xlane.f32.xlu0 %v452
  %v454 = vpop.xlane.xlu0 %453
  %v455 = vsel %vm178, %v449, -inf
  %456 = vmax.xlane.f32.xlu0 %v455
  %v457 = vpop.xlane.xlu0 %456
  %v458 = vsub.f32 %v446, %v454
  %v459 = vsub.f32 %v449, %v457
  %v460 = vmul.f32 %v458, 1.442695
  %v461 = vpow.pop %v460
  %v462 = vmul.f32 %v459, 1.442695
  %v463 = vpow.pop %v462
  %v464 = vsel %vm178, %v461, 0.0
  %465 = vadd.xlane.f32.xlu0 %v464
  %v466 = vpop.xlane.xlu0 %465
  %v467 = vsel %vm178, %v463, 0.0
  %468 = vadd.xlane.f32.xlu0 %v467
  %v469 = vpop.xlane.xlu0 %468
  %v470 = vrcp.pop %v466
  %v471 = vrcp.pop %v469
  %v472 = vmul.f32 %v461, %v470
  %v473 = vmul.f32 %v463, %v471
  %v474 = vpack.c.bf16 %v473, %v472
  %475 = vrot.lane.b32.xlu0 %v397, 64
  %v476 = vpop.permute.xlu0 %475
  %v479 = vsel %vm178, %v474, 0
  %481 = vmatprep.subr.bf16.mxu0 0
  %482 = vmatpush1.bf16.msra.mxu0 %v476
  %483 = vmatprep.subr.bf16.mxu0 0
  %484 = vmatpush1.bf16.msra.mxu0 0
  %485 = vmatprep.subr.bf16.mxu0 0
  %486 = vmatpush1.bf16.msra.mxu0 0
  %487 = vmatprep.subr.bf16.mxu0 0
  %488 = vmatpush1.bf16.msra.mxu0 0
  %489 = vmatprep.subr.bf16.mxu0 0
  %490 = vmatpush1.bf16.msra.mxu0 0
  %491 = vmatprep.subr.bf16.mxu0 0
  %492 = vmatpush1.bf16.msra.mxu0 0
  %493 = vmatprep.subr.bf16.mxu0 0
  %494 = vmatpush1.bf16.msra.mxu0 0
  %495 = vmatprep.subr.bf16.mxu0 0
  %496 = vmatpush1.bf16.msra.mxu0 0
  %497 = vmatprep.subr.bf16.mxu0 0
  %498 = vmatpush1.bf16.msra.mxu0 0
  %499 = vmatprep.subr.bf16.mxu0 0
  %500 = vmatpush1.bf16.msra.mxu0 0
  %501 = vmatprep.subr.bf16.mxu0 0
  %502 = vmatpush1.bf16.msra.mxu0 0
  %503 = vmatprep.subr.bf16.mxu0 0
  %504 = vmatpush1.bf16.msra.mxu0 0
  %505 = vmatprep.subr.bf16.mxu0 0
  %506 = vmatpush1.bf16.msra.mxu0 0
  %507 = vmatprep.subr.bf16.mxu0 0
  %508 = vmatpush1.bf16.msra.mxu0 0
  %509 = vmatprep.subr.bf16.mxu0 0
  %510 = vmatpush1.bf16.msra.mxu0 0
  %511 = vmatprep.subr.bf16.mxu0 0
  %512 = vmatpush1.bf16.msra.mxu0 0
  %513 = vmatprep.mubr.bf16.mxu0 0
  %514 = vmatmul.mubr.bf16.gmra.mrb[0].mxu0 %v479
  %v515 = vpop.f32.mrb[0].mxu0
  %v516 = vadd.f32 0.0, %v515
  %v517 = vpop.f32.mrb[0].mxu0
  %v518 = vpop.f32.mrb[0].mxu0
  %v519 = vadd.f32 0.0, %v518
  %v520 = vpop.f32.mrb[0].mxu0
  %521 = vdwg.mxu0
  %522 = vst.msk [vmem:[#allocation2] sm:$0xff] %vm178, %v516
  %523 = vst.msk [vmem:[#allocation2 + $0x8] sm:$0xff] %vm178, %v519
  %524 = vrot.lane.b32.xlu0 %v397, 112
  %v525 = vpop.permute.xlu0 %524
  %526 = vrot.lane.b32.xlu0 %v397, 80
  %v527 = vpop.permute.xlu0 %526
  %v529 = vsel %vm178, %v525, 0
  %v532 = vsel %vm178, %v527, 0
  %534 = vmatprep.subr.bf16.mxu0 0
  %535 = vmatpush1.bf16.xpose.msra.mxu0 %v532
  %536 = vmatprep.subr.bf16.mxu0 0
  %537 = vmatpush1.bf16.xpose.msra.mxu0 0
  %538 = vmatprep.subr.bf16.mxu0 0
  %539 = vmatpush1.bf16.xpose.msra.mxu0 0
  %540 = vmatprep.subr.bf16.mxu0 0
  %541 = vmatpush1.bf16.xpose.msra.mxu0 0
  %542 = vmatprep.subr.bf16.mxu0 0
  %543 = vmatpush1.bf16.xpose.msra.mxu0 0
  %544 = vmatprep.subr.bf16.mxu0 0
  %545 = vmatpush1.bf16.xpose.msra.mxu0 0
  %546 = vmatprep.subr.bf16.mxu0 0
  %547 = vmatpush1.bf16.xpose.msra.mxu0 0
  %548 = vmatprep.subr.bf16.mxu0 0
  %549 = vmatpush1.bf16.xpose.msra.mxu0 0
  %550 = vmatprep.subr.bf16.mxu0 0
  %551 = vmatpush1.bf16.xpose.msra.mxu0 0
  %552 = vmatprep.subr.bf16.mxu0 0
  %553 = vmatpush1.bf16.xpose.msra.mxu0 0
  %554 = vmatprep.subr.bf16.mxu0 0
  %555 = vmatpush1.bf16.xpose.msra.mxu0 0
  %556 = vmatprep.subr.bf16.mxu0 0
  %557 = vmatpush1.bf16.xpose.msra.mxu0 0
  %558 = vmatprep.subr.bf16.mxu0 0
  %559 = vmatpush1.bf16.xpose.msra.mxu0 0
  %560 = vmatprep.subr.bf16.mxu0 0
  %561 = vmatpush1.bf16.xpose.msra.mxu0 0
  %562 = vmatprep.subr.bf16.mxu0 0
  %563 = vmatpush1.bf16.xpose.msra.mxu0 0
  %564 = vmatprep.subr.bf16.mxu0 0
  %565 = vmatpush1.bf16.xpose.msra.mxu0 0
  %566 = vmatprep.mubr.bf16.mxu0 0
  %567 = vmatmul.mubr.bf16.gmra.mrb[0].mxu0 %v529
  %v568 = vpop.f32.mrb[0].mxu0
  %v569 = vadd.f32 %v401, %v568
  %v570 = vpop.f32.mrb[0].mxu0
  %v571 = vpop.f32.mrb[0].mxu0
  %v572 = vadd.f32 %v401, %v571
  %v573 = vpop.f32.mrb[0].mxu0
  %574 = vdwg.mxu0
  %v575 = vsel %vm178, %v569, -inf
  %576 = vmax.xlane.f32.xlu0 %v575
  %v577 = vpop.xlane.xlu0 %576
  %v578 = vsel %vm178, %v572, -inf
  %579 = vmax.xlane.f32.xlu0 %v578
  %v580 = vpop.xlane.xlu0 %579
  %v581 = vsub.f32 %v569, %v577
  %v582 = vsub.f32 %v572, %v580
  %v583 = vmul.f32 %v581, 1.442695
  %v584 = vpow.pop %v583
  %v585 = vmul.f32 %v582, 1.442695
  %v586 = vpow.pop %v585
  %v587 = vsel %vm178, %v584, 0.0
  %588 = vadd.xlane.f32.xlu0 %v587
  %v589 = vpop.xlane.xlu0 %588
  %v590 = vsel %vm178, %v586, 0.0
  %591 = vadd.xlane.f32.xlu0 %v590
  %v592 = vpop.xlane.xlu0 %591
  %v593 = vrcp.pop %v589
  %v594 = vrcp.pop %v592
  %v595 = vmul.f32 %v584, %v593
  %v596 = vmul.f32 %v586, %v594
  %v597 = vpack.c.bf16 %v596, %v595
  %598 = vrot.lane.b32.xlu0 %v397, 48
  %v599 = vpop.permute.xlu0 %598
  %v602 = vsel %vm178, %v597, 0
  %604 = vmatprep.subr.bf16.mxu0 0
  %605 = vmatpush1.bf16.msra.mxu0 %v599
  %606 = vmatprep.subr.bf16.mxu0 0
  %607 = vmatpush1.bf16.msra.mxu0 0
  %608 = vmatprep.subr.bf16.mxu0 0
  %609 = vmatpush1.bf16.msra.mxu0 0
  %610 = vmatprep.subr.bf16.mxu0 0
  %611 = vmatpush1.bf16.msra.mxu0 0
  %612 = vmatprep.subr.bf16.mxu0 0
  %613 = vmatpush1.bf16.msra.mxu0 0
  %614 = vmatprep.subr.bf16.mxu0 0
  %615 = vmatpush1.bf16.msra.mxu0 0
  %616 = vmatprep.subr.bf16.mxu0 0
  %617 = vmatpush1.bf16.msra.mxu0 0
  %618 = vmatprep.subr.bf16.mxu0 0
  %619 = vmatpush1.bf16.msra.mxu0 0
  %620 = vmatprep.subr.bf16.mxu0 0
  %621 = vmatpush1.bf16.msra.mxu0 0
  %622 = vmatprep.subr.bf16.mxu0 0
  %623 = vmatpush1.bf16.msra.mxu0 0
  %624 = vmatprep.subr.bf16.mxu0 0
  %625 = vmatpush1.bf16.msra.mxu0 0
  %626 = vmatprep.subr.bf16.mxu0 0
  %627 = vmatpush1.bf16.msra.mxu0 0
  %628 = vmatprep.subr.bf16.mxu0 0
  %629 = vmatpush1.bf16.msra.mxu0 0
  %630 = vmatprep.subr.bf16.mxu0 0
  %631 = vmatpush1.bf16.msra.mxu0 0
  %632 = vmatprep.subr.bf16.mxu0 0
  %633 = vmatpush1.bf16.msra.mxu0 0
  %634 = vmatprep.subr.bf16.mxu0 0
  %635 = vmatpush1.bf16.msra.mxu0 0
  %636 = vmatprep.mubr.bf16.mxu0 0
  %637 = vmatmul.mubr.bf16.gmra.mrb[0].mxu0 %v602
  %v638 = vpop.f32.mrb[0].mxu0
  %v639 = vadd.f32 0.0, %v638
  %v640 = vpop.f32.mrb[0].mxu0
  %v641 = vpop.f32.mrb[0].mxu0
  %v642 = vadd.f32 0.0, %v641
  %v643 = vpop.f32.mrb[0].mxu0
  %644 = vdwg.mxu0
  %647 = vrot.lane.b32.xlu0 %v639, 16
  %v648 = vpop.permute.xlu0 %647
  %649 = vrot.lane.b32.xlu0 %v642, 16
  %v650 = vpop.permute.xlu0 %649
  %vm653 = vcmask 261248
  %654 = vst.msk [vmem:[#allocation2] sm:$0xff] %vm653, %v648
  %655 = vst.msk [vmem:[#allocation2 + $0x8] sm:$0xff] %vm653, %v650
  %v656 = vpack.c.bf16 %v394, %v391
  %v657 = vlaneseq
  %v658 = vshrl.u32 %v657, 7
  %v659 = vsub.s32 1, %v658
  %v660 = vrot.slane %v318, %v659
  %662 = vrot.lane.b32.xlu0 %v656, 96
  %v663 = vpop.permute.xlu0 %662
  %v665 = vsel %vm178, %v656, 0
  %v668 = vsel %vm178, %v663, 0
  %670 = vmatprep.subr.bf16.mxu0 0
  %671 = vmatpush1.bf16.xpose.msra.mxu0 %v668
  %672 = vmatprep.subr.bf16.mxu0 0
  %673 = vmatpush1.bf16.xpose.msra.mxu0 0
  %674 = vmatprep.subr.bf16.mxu0 0
  %675 = vmatpush1.bf16.xpose.msra.mxu0 0
  %676 = vmatprep.subr.bf16.mxu0 0
  %677 = vmatpush1.bf16.xpose.msra.mxu0 0
  %678 = vmatprep.subr.bf16.mxu0 0
  %679 = vmatpush1.bf16.xpose.msra.mxu0 0
  %680 = vmatprep.subr.bf16.mxu0 0
  %681 = vmatpush1.bf16.xpose.msra.mxu0 0
  %682 = vmatprep.subr.bf16.mxu0 0
  %683 = vmatpush1.bf16.xpose.msra.mxu0 0
  %684 = vmatprep.subr.bf16.mxu0 0
  %685 = vmatpush1.bf16.xpose.msra.mxu0 0
  %686 = vmatprep.subr.bf16.mxu0 0
  %687 = vmatpush1.bf16.xpose.msra.mxu0 0
  %688 = vmatprep.subr.bf16.mxu0 0
  %689 = vmatpush1.bf16.xpose.msra.mxu0 0
  %690 = vmatprep.subr.bf16.mxu0 0
  %691 = vmatpush1.bf16.xpose.msra.mxu0 0
  %692 = vmatprep.subr.bf16.mxu0 0
  %693 = vmatpush1.bf16.xpose.msra.mxu0 0
  %694 = vmatprep.subr.bf16.mxu0 0
  %695 = vmatpush1.bf16.xpose.msra.mxu0 0
  %696 = vmatprep.subr.bf16.mxu0 0
  %697 = vmatpush1.bf16.xpose.msra.mxu0 0
  %698 = vmatprep.subr.bf16.mxu0 0
  %699 = vmatpush1.bf16.xpose.msra.mxu0 0
  %700 = vmatprep.subr.bf16.mxu0 0
  %701 = vmatpush1.bf16.xpose.msra.mxu0 0
  %702 = vmatprep.mubr.bf16.mxu0 0
  %703 = vmatmul.mubr.bf16.gmra.mrb[0].mxu0 %v665
  %v704 = vpop.f32.mrb[0].mxu0
  %v705 = vadd.f32 %v660, %v704
  %v706 = vpop.f32.mrb[0].mxu0
  %v707 = vpop.f32.mrb[0].mxu0
  %v708 = vadd.f32 %v660, %v707
  %v709 = vpop.f32.mrb[0].mxu0
  %710 = vdwg.mxu0
  %v711 = vsel %vm178, %v705, -inf
  %712 = vmax.xlane.f32.xlu0 %v711
  %v713 = vpop.xlane.xlu0 %712
  %v714 = vsel %vm178, %v708, -inf
  %715 = vmax.xlane.f32.xlu0 %v714
  %v716 = vpop.xlane.xlu0 %715
  %v717 = vsub.f32 %v705, %v713
  %v718 = vsub.f32 %v708, %v716
  %v719 = vmul.f32 %v717, 1.442695
  %v720 = vpow.pop %v719
  %v721 = vmul.f32 %v718, 1.442695
  %v722 = vpow.pop %v721
  %v723 = vsel %vm178, %v720, 0.0
  %724 = vadd.xlane.f32.xlu0 %v723
  %v725 = vpop.xlane.xlu0 %724
  %v726 = vsel %vm178, %v722, 0.0
  %727 = vadd.xlane.f32.xlu0 %v726
  %v728 = vpop.xlane.xlu0 %727
  %v729 = vrcp.pop %v725
  %v730 = vrcp.pop %v728
  %v731 = vmul.f32 %v720, %v729
  %v732 = vmul.f32 %v722, %v730
  %v733 = vpack.c.bf16 %v732, %v731
  %734 = vrot.lane.b32.xlu0 %v656, 64
  %v735 = vpop.permute.xlu0 %734
  %v738 = vsel %vm178, %v733, 0
  %740 = vmatprep.subr.bf16.mxu0 0
  %741 = vmatpush1.bf16.msra.mxu0 %v735
  %742 = vmatprep.subr.bf16.mxu0 0
  %743 = vmatpush1.bf16.msra.mxu0 0
  %744 = vmatprep.subr.bf16.mxu0 0
  %745 = vmatpush1.bf16.msra.mxu0 0
  %746 = vmatprep.subr.bf16.mxu0 0
  %747 = vmatpush1.bf16.msra.mxu0 0
  %748 = vmatprep.subr.bf16.mxu0 0
  %749 = vmatpush1.bf16.msra.mxu0 0
  %750 = vmatprep.subr.bf16.mxu0 0
  %751 = vmatpush1.bf16.msra.mxu0 0
  %752 = vmatprep.subr.bf16.mxu0 0
  %753 = vmatpush1.bf16.msra.mxu0 0
  %754 = vmatprep.subr.bf16.mxu0 0
  %755 = vmatpush1.bf16.msra.mxu0 0
  %756 = vmatprep.subr.bf16.mxu0 0
  %757 = vmatpush1.bf16.msra.mxu0 0
  %758 = vmatprep.subr.bf16.mxu0 0
  %759 = vmatpush1.bf16.msra.mxu0 0
  %760 = vmatprep.subr.bf16.mxu0 0
  %761 = vmatpush1.bf16.msra.mxu0 0
  %762 = vmatprep.subr.bf16.mxu0 0
  %763 = vmatpush1.bf16.msra.mxu0 0
  %764 = vmatprep.subr.bf16.mxu0 0
  %765 = vmatpush1.bf16.msra.mxu0 0
  %766 = vmatprep.subr.bf16.mxu0 0
  %767 = vmatpush1.bf16.msra.mxu0 0
  %768 = vmatprep.subr.bf16.mxu0 0
  %769 = vmatpush1.bf16.msra.mxu0 0
  %770 = vmatprep.subr.bf16.mxu0 0
  %771 = vmatpush1.bf16.msra.mxu0 0
  %772 = vmatprep.mubr.bf16.mxu0 0
  %773 = vmatmul.mubr.bf16.gmra.mrb[0].mxu0 %v738
  %v774 = vpop.f32.mrb[0].mxu0
  %v775 = vadd.f32 0.0, %v774
  %v776 = vpop.f32.mrb[0].mxu0
  %v777 = vpop.f32.mrb[0].mxu0
  %v778 = vadd.f32 0.0, %v777
  %v779 = vpop.f32.mrb[0].mxu0
  %780 = vdwg.mxu0
  %781 = vst.msk [vmem:[#allocation2 + $0x10] sm:$0xff] %vm178, %v775
  %782 = vst.msk [vmem:[#allocation2 + $0x18] sm:$0xff] %vm178, %v778
  %783 = vrot.lane.b32.xlu0 %v656, 112
  %v784 = vpop.permute.xlu0 %783
  %785 = vrot.lane.b32.xlu0 %v656, 80
  %v786 = vpop.permute.xlu0 %785
  %v788 = vsel %vm178, %v784, 0
  %v791 = vsel %vm178, %v786, 0
  %793 = vmatprep.subr.bf16.mxu0 0
  %794 = vmatpush1.bf16.xpose.msra.mxu0 %v791
  %795 = vmatprep.subr.bf16.mxu0 0
  %796 = vmatpush1.bf16.xpose.msra.mxu0 0
  %797 = vmatprep.subr.bf16.mxu0 0
  %798 = vmatpush1.bf16.xpose.msra.mxu0 0
  %799 = vmatprep.subr.bf16.mxu0 0
  %800 = vmatpush1.bf16.xpose.msra.mxu0 0
  %801 = vmatprep.subr.bf16.mxu0 0
  %802 = vmatpush1.bf16.xpose.msra.mxu0 0
  %803 = vmatprep.subr.bf16.mxu0 0
  %804 = vmatpush1.bf16.xpose.msra.mxu0 0
  %805 = vmatprep.subr.bf16.mxu0 0
  %806 = vmatpush1.bf16.xpose.msra.mxu0 0
  %807 = vmatprep.subr.bf16.mxu0 0
  %808 = vmatpush1.bf16.xpose.msra.mxu0 0
  %809 = vmatprep.subr.bf16.mxu0 0
  %810 = vmatpush1.bf16.xpose.msra.mxu0 0
  %811 = vmatprep.subr.bf16.mxu0 0
  %812 = vmatpush1.bf16.xpose.msra.mxu0 0
  %813 = vmatprep.subr.bf16.mxu0 0
  %814 = vmatpush1.bf16.xpose.msra.mxu0 0
  %815 = vmatprep.subr.bf16.mxu0 0
  %816 = vmatpush1.bf16.xpose.msra.mxu0 0
  %817 = vmatprep.subr.bf16.mxu0 0
  %818 = vmatpush1.bf16.xpose.msra.mxu0 0
  %819 = vmatprep.subr.bf16.mxu0 0
  %820 = vmatpush1.bf16.xpose.msra.mxu0 0
  %821 = vmatprep.subr.bf16.mxu0 0
  %822 = vmatpush1.bf16.xpose.msra.mxu0 0
  %823 = vmatprep.subr.bf16.mxu0 0
  %824 = vmatpush1.bf16.xpose.msra.mxu0 0
  %825 = vmatprep.mubr.bf16.mxu0 0
  %826 = vmatmul.mubr.bf16.gmra.mrb[0].mxu0 %v788
  %v827 = vpop.f32.mrb[0].mxu0
  %v828 = vadd.f32 %v660, %v827
  %v829 = vpop.f32.mrb[0].mxu0
  %v830 = vpop.f32.mrb[0].mxu0
  %v831 = vadd.f32 %v660, %v830
  %v832 = vpop.f32.mrb[0].mxu0
  %833 = vdwg.mxu0
  %v834 = vsel %vm178, %v828, -inf
  %835 = vmax.xlane.f32.xlu0 %v834
  %v836 = vpop.xlane.xlu0 %835
  %v837 = vsel %vm178, %v831, -inf
  %838 = vmax.xlane.f32.xlu0 %v837
  %v839 = vpop.xlane.xlu0 %838
  %v840 = vsub.f32 %v828, %v836
  %v841 = vsub.f32 %v831, %v839
  %v842 = vmul.f32 %v840, 1.442695
  %v843 = vpow.pop %v842
  %v844 = vmul.f32 %v841, 1.442695
  %v845 = vpow.pop %v844
  %v846 = vsel %vm178, %v843, 0.0
  %847 = vadd.xlane.f32.xlu0 %v846
  %v848 = vpop.xlane.xlu0 %847
  %v849 = vsel %vm178, %v845, 0.0
  %850 = vadd.xlane.f32.xlu0 %v849
  %v851 = vpop.xlane.xlu0 %850
  %v852 = vrcp.pop %v848
  %v853 = vrcp.pop %v851
  %v854 = vmul.f32 %v843, %v852
  %v855 = vmul.f32 %v845, %v853
  %v856 = vpack.c.bf16 %v855, %v854
  %857 = vrot.lane.b32.xlu0 %v656, 48
  %v858 = vpop.permute.xlu0 %857
  %v861 = vsel %vm178, %v856, 0
  %863 = vmatprep.subr.bf16.mxu0 0
  %864 = vmatpush1.bf16.msra.mxu0 %v858
  %865 = vmatprep.subr.bf16.mxu0 0
  %866 = vmatpush1.bf16.msra.mxu0 0
  %867 = vmatprep.subr.bf16.mxu0 0
  %868 = vmatpush1.bf16.msra.mxu0 0
  %869 = vmatprep.subr.bf16.mxu0 0
  %870 = vmatpush1.bf16.msra.mxu0 0
  %871 = vmatprep.subr.bf16.mxu0 0
  %872 = vmatpush1.bf16.msra.mxu0 0
  %873 = vmatprep.subr.bf16.mxu0 0
  %874 = vmatpush1.bf16.msra.mxu0 0
  %875 = vmatprep.subr.bf16.mxu0 0
  %876 = vmatpush1.bf16.msra.mxu0 0
  %877 = vmatprep.subr.bf16.mxu0 0
  %878 = vmatpush1.bf16.msra.mxu0 0
  %879 = vmatprep.subr.bf16.mxu0 0
  %880 = vmatpush1.bf16.msra.mxu0 0
  %881 = vmatprep.subr.bf16.mxu0 0
  %882 = vmatpush1.bf16.msra.mxu0 0
  %883 = vmatprep.subr.bf16.mxu0 0
  %884 = vmatpush1.bf16.msra.mxu0 0
  %885 = vmatprep.subr.bf16.mxu0 0
  %886 = vmatpush1.bf16.msra.mxu0 0
  %887 = vmatprep.subr.bf16.mxu0 0
  %888 = vmatpush1.bf16.msra.mxu0 0
  %889 = vmatprep.subr.bf16.mxu0 0
  %890 = vmatpush1.bf16.msra.mxu0 0
  %891 = vmatprep.subr.bf16.mxu0 0
  %892 = vmatpush1.bf16.msra.mxu0 0
  %893 = vmatprep.subr.bf16.mxu0 0
  %894 = vmatpush1.bf16.msra.mxu0 0
  %895 = vmatprep.mubr.bf16.mxu0 0
  %896 = vmatmul.mubr.bf16.gmra.mrb[0].mxu0 %v861
  %v897 = vpop.f32.mrb[0].mxu0
  %v898 = vadd.f32 0.0, %v897
  %v899 = vpop.f32.mrb[0].mxu0
  %v900 = vpop.f32.mrb[0].mxu0
  %v901 = vadd.f32 0.0, %v900
  %v902 = vpop.f32.mrb[0].mxu0
  %903 = vdwg.mxu0
  %906 = vrot.lane.b32.xlu0 %v898, 16
  %v907 = vpop.permute.xlu0 %906
  %908 = vrot.lane.b32.xlu0 %v901, 16
  %v909 = vpop.permute.xlu0 %908
  %912 = vst.msk [vmem:[#allocation2 + $0x10] sm:$0xff] %vm653, %v907
  %913 = vst.msk [vmem:[#allocation2 + $0x18] sm:$0xff] %vm653, %v909
  %v914 = vld [vmem:[%s4 + $0x20] sm:$0xf]
  %v915 = vld [vmem:[%s4 + $0x24] sm:$0xf]
  %v916 = vld [vmem:[%s4 + $0x28] sm:$0xf]
  %v917 = vld [vmem:[%s4 + $0x2c] sm:$0xf]
  %v918 = vld [vmem:[#allocation2] sm:$0xff]
  %v919 = vld [vmem:[#allocation2 + $0x8] sm:$0xff]
  %v920 = vld [vmem:[#allocation2 + $0x10] sm:$0xff]
  %v921 = vld [vmem:[#allocation2 + $0x18] sm:$0xff]
  %v922 = vpack.c.bf16 %v919, %v918
  %v923 = vpack.c.bf16 %v921, %v920
  %v924 = vlaneseq
  %v925 = vshrl.u32 %v924, 7
  %v926 = vsub.s32 2, %v925
  %v927 = vrot.slane %v27, %v926
  %v932 = vunpack.c.l.b16 %v914
  %v933 = vunpack.c.l.b16 %v915
  %v934 = vunpack.c.l.b16 %v916
  %v935 = vunpack.c.l.b16 %v917
  %v936 = vpack.c.b16 %v933, %v932
  %v937 = vpack.c.b16 %v935, %v934
  %v941 = vsel %vm234, %v922, 0
  %v944 = vsel %vm234, %v923, 0
  %946 = vmatprep.subr.bf16.mxu0 0
  %947 = vmatpush1.bf16.msra.mxu0 %v936
  %948 = vmatprep.subr.bf16.mxu0 0
  %949 = vmatpush1.bf16.msra.mxu0 %v937
  %950 = vmatprep.subr.bf16.mxu0 0
  %951 = vmatpush1.bf16.msra.mxu0 0
  %952 = vmatprep.subr.bf16.mxu0 0
  %953 = vmatpush1.bf16.msra.mxu0 0
  %954 = vmatprep.subr.bf16.mxu0 0
  %955 = vmatpush1.bf16.msra.mxu0 0
  %956 = vmatprep.subr.bf16.mxu0 0
  %957 = vmatpush1.bf16.msra.mxu0 0
  %958 = vmatprep.subr.bf16.mxu0 0
  %959 = vmatpush1.bf16.msra.mxu0 0
  %960 = vmatprep.subr.bf16.mxu0 0
  %961 = vmatpush1.bf16.msra.mxu0 0
  %962 = vmatprep.subr.bf16.mxu0 0
  %963 = vmatpush1.bf16.msra.mxu0 0
  %964 = vmatprep.subr.bf16.mxu0 0
  %965 = vmatpush1.bf16.msra.mxu0 0
  %966 = vmatprep.subr.bf16.mxu0 0
  %967 = vmatpush1.bf16.msra.mxu0 0
  %968 = vmatprep.subr.bf16.mxu0 0
  %969 = vmatpush1.bf16.msra.mxu0 0
  %970 = vmatprep.subr.bf16.mxu0 0
  %971 = vmatpush1.bf16.msra.mxu0 0
  %972 = vmatprep.subr.bf16.mxu0 0
  %973 = vmatpush1.bf16.msra.mxu0 0
  %974 = vmatprep.subr.bf16.mxu0 0
  %975 = vmatpush1.bf16.msra.mxu0 0
  %976 = vmatprep.subr.bf16.mxu0 0
  %977 = vmatpush1.bf16.msra.mxu0 0
  %978 = vmatprep.mubr.bf16.mxu0 0
  %979 = vmatmul.mubr.bf16.gmra.mrb[0].mxu0 %v941
  %v980 = vpop.f32.mrb[0].mxu0
  %v981 = vadd.f32 %v927, %v980
  %v982 = vpop.f32.mrb[0].mxu0
  %v983 = vpop.f32.mrb[0].mxu0
  %v984 = vadd.f32 %v927, %v983
  %v985 = vpop.f32.mrb[0].mxu0
  %986 = vmatprep.mubr.bf16.mxu0 0
  %987 = vmatmul.mubr.bf16.gmra.mrb[0].mxu0 %v944
  %v988 = vpop.f32.mrb[0].mxu0
  %v989 = vadd.f32 %v927, %v988
  %v990 = vpop.f32.mrb[0].mxu0
  %v991 = vpop.f32.mrb[0].mxu0
  %v992 = vadd.f32 %v927, %v991
  %v993 = vpop.f32.mrb[0].mxu0
  %994 = vdwg.mxu0
  %v995 = vadd.f32 %v312, %v981
  %v996 = vadd.f32 %v313, %v984
  %v997 = vadd.f32 %v314, %v989
  %v998 = vadd.f32 %v315, %v992
  %v999 = vsel %vm234, %v995, 0.0
  %1000 = vadd.xlane.f32.xlu0 %v999
  %v1001 = vpop.xlane.xlu0 %1000
  %v1002 = vsel %vm234, %v996, 0.0
  %1003 = vadd.xlane.f32.xlu0 %v1002
  %v1004 = vpop.xlane.xlu0 %1003
  %v1005 = vsel %vm234, %v997, 0.0
  %1006 = vadd.xlane.f32.xlu0 %v1005
  %v1007 = vpop.xlane.xlu0 %1006
  %v1008 = vsel %vm234, %v998, 0.0
  %1009 = vadd.xlane.f32.xlu0 %v1008
  %v1010 = vpop.xlane.xlu0 %1009
  %v1011 = vmul.f32 %v1001, %v247
  %v1012 = vmul.f32 %v1004, %v247
  %v1013 = vmul.f32 %v1007, %v247
  %v1014 = vmul.f32 %v1010, %v247
  %v1015 = vmul.f32 %v995, %v995
  %v1016 = vmul.f32 %v996, %v996
  %v1017 = vmul.f32 %v997, %v997
  %v1018 = vmul.f32 %v998, %v998
  %v1019 = vsel %vm234, %v1015, 0.0
  %1020 = vadd.xlane.f32.xlu0 %v1019
  %v1021 = vpop.xlane.xlu0 %1020
  %v1022 = vsel %vm234, %v1016, 0.0
  %1023 = vadd.xlane.f32.xlu0 %v1022
  %v1024 = vpop.xlane.xlu0 %1023
  %v1025 = vsel %vm234, %v1017, 0.0
  %1026 = vadd.xlane.f32.xlu0 %v1025
  %v1027 = vpop.xlane.xlu0 %1026
  %v1028 = vsel %vm234, %v1018, 0.0
  %1029 = vadd.xlane.f32.xlu0 %v1028
  %v1030 = vpop.xlane.xlu0 %1029
  %v1031 = vmul.f32 %v1021, %v247
  %v1032 = vmul.f32 %v1024, %v247
  %v1033 = vmul.f32 %v1027, %v247
  %v1034 = vmul.f32 %v1030, %v247
  %v1035 = vmul.f32 %v1011, %v1011
  %v1036 = vmul.f32 %v1012, %v1012
  %v1037 = vmul.f32 %v1013, %v1013
  %v1038 = vmul.f32 %v1014, %v1014
  %v1039 = vsub.f32 %v1031, %v1035
  %v1040 = vsub.f32 %v1032, %v1036
  %v1041 = vsub.f32 %v1033, %v1037
  %v1042 = vsub.f32 %v1034, %v1038
  %v1043 = vmax.f32 %v1039, 0.0
  %v1044 = vmax.f32 %v1040, 0.0
  %v1045 = vmax.f32 %v1041, 0.0
  %v1046 = vmax.f32 %v1042, 0.0
  %v1047 = vsub.f32 %v995, %v1011
  %v1048 = vsub.f32 %v996, %v1012
  %v1049 = vsub.f32 %v997, %v1013
  %v1050 = vsub.f32 %v998, %v1014
  %v1051 = vadd.f32 %v1043, 1e-12
  %v1052 = vadd.f32 %v1044, 1e-12
  %v1053 = vadd.f32 %v1045, 1e-12
  %v1054 = vadd.f32 %v1046, 1e-12
  %v1055 = vrsqrt.pop %v1051
  %v1056 = vrsqrt.pop %v1052
  %v1057 = vrsqrt.pop %v1053
  %v1058 = vrsqrt.pop %v1054
  %v1059 = vmul.f32 %v1047, %v1055
  %v1060 = vmul.f32 %v1048, %v1056
  %v1061 = vmul.f32 %v1049, %v1057
  %v1062 = vmul.f32 %v1050, %v1058
  %v1063 = vlaneseq
  %v1064 = vshrl.u32 %v1063, 7
  %v1065 = vsub.s32 3, %v1064
  %v1066 = vrot.slane %v27, %v1065
  %v1067 = vmul.f32 %v1059, %v1066
  %v1068 = vmul.f32 %v1060, %v1066
  %v1069 = vmul.f32 %v1061, %v1066
  %v1070 = vmul.f32 %v1062, %v1066
  %v1071 = vlaneseq
  %v1072 = vshrl.u32 %v1071, 7
  %v1073 = vsub.s32 4, %v1072
  %v1074 = vrot.slane %v27, %v1073
  %v1075 = vadd.f32 %v1067, %v1074
  %v1076 = vadd.f32 %v1068, %v1074
  %v1077 = vadd.f32 %v1069, %v1074
  %v1078 = vadd.f32 %v1070, %v1074
  %v1079 = vpack.c.bf16 %v1076, %v1075
  %v1080 = vpack.c.bf16 %v1078, %v1077
  %v1081 = vld [vmem:[%s6 + $0x2] sm:$0x1]
  %v1082 = vlaneseq
  %v1083 = vshrl.u32 %v1082, 7
  %v1084 = vsub.s32 0, %v1083
  %v1085 = vrot.slane %v1081, %v1084
  %1086 = vrot.lane.b32.xlu0 %v936, 96
  %v1087 = vpop.permute.xlu0 %1086
  %1088 = vrot.lane.b32.xlu0 %v937, 96
  %v1089 = vpop.permute.xlu0 %1088
  %v1093 = vsel %vm234, %v1079, 0
  %v1096 = vsel %vm234, %v1080, 0
  %1098 = vmatprep.subr.bf16.mxu0 0
  %1099 = vmatpush1.bf16.msra.mxu0 %v1087
  %1100 = vmatprep.subr.bf16.mxu0 0
  %1101 = vmatpush1.bf16.msra.mxu0 %v1089
  %1102 = vmatprep.subr.bf16.mxu0 0
  %1103 = vmatpush1.bf16.msra.mxu0 0
  %1104 = vmatprep.subr.bf16.mxu0 0
  %1105 = vmatpush1.bf16.msra.mxu0 0
  %1106 = vmatprep.subr.bf16.mxu0 0
  %1107 = vmatpush1.bf16.msra.mxu0 0
  %1108 = vmatprep.subr.bf16.mxu0 0
  %1109 = vmatpush1.bf16.msra.mxu0 0
  %1110 = vmatprep.subr.bf16.mxu0 0
  %1111 = vmatpush1.bf16.msra.mxu0 0
  %1112 = vmatprep.subr.bf16.mxu0 0
  %1113 = vmatpush1.bf16.msra.mxu0 0
  %1114 = vmatprep.subr.bf16.mxu0 0
  %1115 = vmatpush1.bf16.msra.mxu0 0
  %1116 = vmatprep.subr.bf16.mxu0 0
  %1117 = vmatpush1.bf16.msra.mxu0 0
  %1118 = vmatprep.subr.bf16.mxu0 0
  %1119 = vmatpush1.bf16.msra.mxu0 0
  %1120 = vmatprep.subr.bf16.mxu0 0
  %1121 = vmatpush1.bf16.msra.mxu0 0
  %1122 = vmatprep.subr.bf16.mxu0 0
  %1123 = vmatpush1.bf16.msra.mxu0 0
  %1124 = vmatprep.subr.bf16.mxu0 0
  %1125 = vmatpush1.bf16.msra.mxu0 0
  %1126 = vmatprep.subr.bf16.mxu0 0
  %1127 = vmatpush1.bf16.msra.mxu0 0
  %1128 = vmatprep.subr.bf16.mxu0 0
  %1129 = vmatpush1.bf16.msra.mxu0 0
  %1130 = vmatprep.mubr.bf16.mxu0 0
  %1131 = vmatmul.mubr.bf16.gmra.mrb[0].mxu0 %v1093
  %v1132 = vpop.f32.mrb[0].mxu0
  %v1133 = vadd.f32 %v1085, %v1132
  %v1134 = vpop.f32.mrb[0].mxu0
  %v1135 = vpop.f32.mrb[0].mxu0
  %v1136 = vadd.f32 %v1085, %v1135
  %v1137 = vpop.f32.mrb[0].mxu0
  %1138 = vmatprep.mubr.bf16.mxu0 0
  %1139 = vmatmul.mubr.bf16.gmra.mrb[0].mxu0 %v1096
  %v1140 = vpop.f32.mrb[0].mxu0
  %v1141 = vadd.f32 %v1085, %v1140
  %v1142 = vpop.f32.mrb[0].mxu0
  %v1143 = vpop.f32.mrb[0].mxu0
  %v1144 = vadd.f32 %v1085, %v1143
  %v1145 = vpop.f32.mrb[0].mxu0
  %1146 = vdwg.mxu0
  %v1147 = vmul.f32 %v1133, %v1133
  %v1148 = vmul.f32 %v1136, %v1136
  %v1149 = vmul.f32 %v1141, %v1141
  %v1150 = vmul.f32 %v1144, %v1144
  %v1151 = vmul.f32 %v1133, %v1147
  %v1152 = vmul.f32 %v1136, %v1148
  %v1153 = vmul.f32 %v1141, %v1149
  %v1154 = vmul.f32 %v1144, %v1150
  %v1155 = vmul.f32 %v1151, 0.044715
  %v1156 = vmul.f32 %v1152, 0.044715
  %v1157 = vmul.f32 %v1153, 0.044715
  %v1158 = vmul.f32 %v1154, 0.044715
  %v1159 = vadd.f32 %v1133, %v1155
  %v1160 = vadd.f32 %v1136, %v1156
  %v1161 = vadd.f32 %v1141, %v1157
  %v1162 = vadd.f32 %v1144, %v1158
  %v1163 = vmul.f32 %v1159, 0.7978846
  %v1164 = vmul.f32 %v1160, 0.7978846
  %v1165 = vmul.f32 %v1161, 0.7978846
  %v1166 = vmul.f32 %v1162, 0.7978846
  %v1167 = vtanh.pop %v1163
  %v1168 = vtanh.pop %v1164
  %v1169 = vtanh.pop %v1165
  %v1170 = vtanh.pop %v1166
  %v1171 = vadd.f32 %v1167, 1.0
  %v1172 = vadd.f32 %v1168, 1.0
  %v1173 = vadd.f32 %v1169, 1.0
  %v1174 = vadd.f32 %v1170, 1.0
  %v1175 = vmul.f32 %v1171, 0.5
  %v1176 = vmul.f32 %v1172, 0.5
  %v1177 = vmul.f32 %v1173, 0.5
  %v1178 = vmul.f32 %v1174, 0.5
  %v1179 = vmul.f32 %v1133, %v1175
  %v1180 = vmul.f32 %v1136, %v1176
  %v1181 = vmul.f32 %v1141, %v1177
  %v1182 = vmul.f32 %v1144, %v1178
  %v1183 = vld [vmem:[%s3 + $0x48] sm:$0xf]
  %v1184 = vld [vmem:[%s3 + $0x4c] sm:$0xf]
  %v1185 = vld [vmem:[%s3 + $0x50] sm:$0xf]
  %v1186 = vld [vmem:[%s3 + $0x54] sm:$0xf]
  %v1187 = vld [vmem:[%s3 + $0x58] sm:$0xf]
  %v1188 = vld [vmem:[%s3 + $0x5c] sm:$0xf]
  %v1189 = vld [vmem:[%s3 + $0x60] sm:$0xf]
  %v1190 = vld [vmem:[%s3 + $0x64] sm:$0xf]
  %v1191 = vpack.c.bf16 %v1180, %v1179
  %v1192 = vpack.c.bf16 %v1182, %v1181
  %v1193 = vlaneseq
  %v1194 = vshrl.u32 %v1193, 7
  %v1195 = vsub.s32 5, %v1194
  %v1196 = vrot.slane %v27, %v1195
  %v1205 = vunpack.c.l.b16 %v1183
  %v1206 = vunpack.c.l.b16 %v1184
  %v1207 = vunpack.c.l.b16 %v1185
  %v1208 = vunpack.c.l.b16 %v1186
  %v1209 = vunpack.c.l.b16 %v1187
  %v1210 = vunpack.c.l.b16 %v1188
  %v1211 = vunpack.c.l.b16 %v1189
  %v1212 = vunpack.c.l.b16 %v1190
  %v1213 = vpack.c.b16 %v1206, %v1205
  %v1214 = vpack.c.b16 %v1208, %v1207
  %v1215 = vpack.c.b16 %v1210, %v1209
  %v1216 = vpack.c.b16 %v1212, %v1211
  %vm1221 = vcmask 523264
  %v1223 = vsel %vm1221, %v1191, 0
  %v1226 = vsel %vm1221, %v1192, 0
  %1228 = vmatprep.subr.bf16.mxu0 0
  %1229 = vmatpush1.bf16.msra.mxu0 %v1213
  %1230 = vmatprep.subr.bf16.mxu0 0
  %1231 = vmatpush1.bf16.msra.mxu0 %v1214
  %1232 = vmatprep.subr.bf16.mxu0 0
  %1233 = vmatpush1.bf16.msra.mxu0 %v1215
  %1234 = vmatprep.subr.bf16.mxu0 0
  %1235 = vmatpush1.bf16.msra.mxu0 %v1216
  %1236 = vmatprep.subr.bf16.mxu0 0
  %1237 = vmatpush1.bf16.msra.mxu0 0
  %1238 = vmatprep.subr.bf16.mxu0 0
  %1239 = vmatpush1.bf16.msra.mxu0 0
  %1240 = vmatprep.subr.bf16.mxu0 0
  %1241 = vmatpush1.bf16.msra.mxu0 0
  %1242 = vmatprep.subr.bf16.mxu0 0
  %1243 = vmatpush1.bf16.msra.mxu0 0
  %1244 = vmatprep.subr.bf16.mxu0 0
  %1245 = vmatpush1.bf16.msra.mxu0 0
  %1246 = vmatprep.subr.bf16.mxu0 0
  %1247 = vmatpush1.bf16.msra.mxu0 0
  %1248 = vmatprep.subr.bf16.mxu0 0
  %1249 = vmatpush1.bf16.msra.mxu0 0
  %1250 = vmatprep.subr.bf16.mxu0 0
  %1251 = vmatpush1.bf16.msra.mxu0 0
  %1252 = vmatprep.subr.bf16.mxu0 0
  %1253 = vmatpush1.bf16.msra.mxu0 0
  %1254 = vmatprep.subr.bf16.mxu0 0
  %1255 = vmatpush1.bf16.msra.mxu0 0
  %1256 = vmatprep.subr.bf16.mxu0 0
  %1257 = vmatpush1.bf16.msra.mxu0 0
  %1258 = vmatprep.subr.bf16.mxu0 0
  %1259 = vmatpush1.bf16.msra.mxu0 0
  %1260 = vmatprep.mubr.bf16.mxu0 0
  %1261 = vmatmul.mubr.bf16.gmra.mrb[0].mxu0 %v1223
  %v1262 = vpop.f32.mrb[0].mxu0
  %v1263 = vadd.f32 %v1196, %v1262
  %v1264 = vpop.f32.mrb[0].mxu0
  %v1265 = vpop.f32.mrb[0].mxu0
  %v1266 = vadd.f32 %v1196, %v1265
  %v1267 = vpop.f32.mrb[0].mxu0
  %1268 = vmatprep.mubr.bf16.mxu0 0
  %1269 = vmatmul.mubr.bf16.gmra.mrb[0].mxu0 %v1226
  %v1270 = vpop.f32.mrb[0].mxu0
  %v1271 = vadd.f32 %v1196, %v1270
  %v1272 = vpop.f32.mrb[0].mxu0
  %v1273 = vpop.f32.mrb[0].mxu0
  %v1274 = vadd.f32 %v1196, %v1273
  %v1275 = vpop.f32.mrb[0].mxu0
  %1276 = vdwg.mxu0
  %v1277 = vadd.f32 %v1075, %v1263
  %v1278 = vadd.f32 %v1076, %v1266
  %v1279 = vadd.f32 %v1077, %v1271
  %v1280 = vadd.f32 %v1078, %v1274
  %v1281 = vsel %vm234, %v1277, 0.0
  %1282 = vadd.xlane.f32.xlu0 %v1281
  %v1283 = vpop.xlane.xlu0 %1282
  %v1284 = vsel %vm234, %v1278, 0.0
  %1285 = vadd.xlane.f32.xlu0 %v1284
  %v1286 = vpop.xlane.xlu0 %1285
  %v1287 = vsel %vm234, %v1279, 0.0
  %1288 = vadd.xlane.f32.xlu0 %v1287
  %v1289 = vpop.xlane.xlu0 %1288
  %v1290 = vsel %vm234, %v1280, 0.0
  %1291 = vadd.xlane.f32.xlu0 %v1290
  %v1292 = vpop.xlane.xlu0 %1291
  %v1293 = vmul.f32 %v1283, %v247
  %v1294 = vmul.f32 %v1286, %v247
  %v1295 = vmul.f32 %v1289, %v247
  %v1296 = vmul.f32 %v1292, %v247
  %v1297 = vmul.f32 %v1277, %v1277
  %v1298 = vmul.f32 %v1278, %v1278
  %v1299 = vmul.f32 %v1279, %v1279
  %v1300 = vmul.f32 %v1280, %v1280
  %v1301 = vsel %vm234, %v1297, 0.0
  %1302 = vadd.xlane.f32.xlu0 %v1301
  %v1303 = vpop.xlane.xlu0 %1302
  %v1304 = vsel %vm234, %v1298, 0.0
  %1305 = vadd.xlane.f32.xlu0 %v1304
  %v1306 = vpop.xlane.xlu0 %1305
  %v1307 = vsel %vm234, %v1299, 0.0
  %1308 = vadd.xlane.f32.xlu0 %v1307
  %v1309 = vpop.xlane.xlu0 %1308
  %v1310 = vsel %vm234, %v1300, 0.0
  %1311 = vadd.xlane.f32.xlu0 %v1310
  %v1312 = vpop.xlane.xlu0 %1311
  %v1313 = vmul.f32 %v1303, %v247
  %v1314 = vmul.f32 %v1306, %v247
  %v1315 = vmul.f32 %v1309, %v247
  %v1316 = vmul.f32 %v1312, %v247
  %v1317 = vmul.f32 %v1293, %v1293
  %v1318 = vmul.f32 %v1294, %v1294
  %v1319 = vmul.f32 %v1295, %v1295
  %v1320 = vmul.f32 %v1296, %v1296
  %v1321 = vsub.f32 %v1313, %v1317
  %v1322 = vsub.f32 %v1314, %v1318
  %v1323 = vsub.f32 %v1315, %v1319
  %v1324 = vsub.f32 %v1316, %v1320
  %v1325 = vmax.f32 %v1321, 0.0
  %v1326 = vmax.f32 %v1322, 0.0
  %v1327 = vmax.f32 %v1323, 0.0
  %v1328 = vmax.f32 %v1324, 0.0
  %v1329 = vsub.f32 %v1277, %v1293
  %v1330 = vsub.f32 %v1278, %v1294
  %v1331 = vsub.f32 %v1279, %v1295
  %v1332 = vsub.f32 %v1280, %v1296
  %v1333 = vadd.f32 %v1325, 1e-12
  %v1334 = vadd.f32 %v1326, 1e-12
  %v1335 = vadd.f32 %v1327, 1e-12
  %v1336 = vadd.f32 %v1328, 1e-12
  %v1337 = vrsqrt.pop %v1333
  %v1338 = vrsqrt.pop %v1334
  %v1339 = vrsqrt.pop %v1335
  %v1340 = vrsqrt.pop %v1336
  %v1341 = vmul.f32 %v1329, %v1337
  %v1342 = vmul.f32 %v1330, %v1338
  %v1343 = vmul.f32 %v1331, %v1339
  %v1344 = vmul.f32 %v1332, %v1340
  %v1345 = vlaneseq
  %v1346 = vshrl.u32 %v1345, 7
  %v1347 = vsub.s32 6, %v1346
  %v1348 = vrot.slane %v27, %v1347
  %v1349 = vmul.f32 %v1341, %v1348
  %v1350 = vmul.f32 %v1342, %v1348
  %v1351 = vmul.f32 %v1343, %v1348
  %v1352 = vmul.f32 %v1344, %v1348
  %v1353 = vlaneseq
  %v1354 = vshrl.u32 %v1353, 7
  %v1355 = vsub.s32 7, %v1354
  %v1356 = vrot.slane %v27, %v1355
  %v1357 = vadd.f32 %v1349, %v1356
  %v1358 = vadd.f32 %v1350, %v1356
  %v1359 = vadd.f32 %v1351, %v1356
  %v1360 = vadd.f32 %v1352, %v1356
  %v1361 = vld [vmem:[%s4 + $0x10] sm:$0xf]
  %v1362 = vld [vmem:[%s4 + $0x14] sm:$0xf]
  %v1363 = vld [vmem:[%s4 + $0x18] sm:$0xf]
  %v1364 = vld [vmem:[%s4 + $0x1c] sm:$0xf]
  %v1365 = vpack.c.bf16 %v1358, %v1357
  %v1366 = vpack.c.bf16 %v1360, %v1359
  %v1367 = vld [vmem:[%s6 + $0x1] sm:$0x1]
  %v1368 = vlaneseq
  %v1369 = vshrl.u32 %v1368, 7
  %v1370 = vsub.s32 0, %v1369
  %v1371 = vrot.slane %v1367, %v1370
  %v1376 = vunpack.c.l.b16 %v1361
  %v1377 = vunpack.c.l.b16 %v1362
  %v1378 = vunpack.c.l.b16 %v1363
  %v1379 = vunpack.c.l.b16 %v1364
  %v1380 = vpack.c.b16 %v1377, %v1376
  %v1381 = vpack.c.b16 %v1379, %v1378
  %v1385 = vsel %vm234, %v1365, 0
  %v1388 = vsel %vm234, %v1366, 0
  %1390 = vmatprep.subr.bf16.mxu0 0
  %1391 = vmatpush1.bf16.msra.mxu0 %v1380
  %1392 = vmatprep.subr.bf16.mxu0 0
  %1393 = vmatpush1.bf16.msra.mxu0 %v1381
  %1394 = vmatprep.subr.bf16.mxu0 0
  %1395 = vmatpush1.bf16.msra.mxu0 0
  %1396 = vmatprep.subr.bf16.mxu0 0
  %1397 = vmatpush1.bf16.msra.mxu0 0
  %1398 = vmatprep.subr.bf16.mxu0 0
  %1399 = vmatpush1.bf16.msra.mxu0 0
  %1400 = vmatprep.subr.bf16.mxu0 0
  %1401 = vmatpush1.bf16.msra.mxu0 0
  %1402 = vmatprep.subr.bf16.mxu0 0
  %1403 = vmatpush1.bf16.msra.mxu0 0
  %1404 = vmatprep.subr.bf16.mxu0 0
  %1405 = vmatpush1.bf16.msra.mxu0 0
  %1406 = vmatprep.subr.bf16.mxu0 0
  %1407 = vmatpush1.bf16.msra.mxu0 0
  %1408 = vmatprep.subr.bf16.mxu0 0
  %1409 = vmatpush1.bf16.msra.mxu0 0
  %1410 = vmatprep.subr.bf16.mxu0 0
  %1411 = vmatpush1.bf16.msra.mxu0 0
  %1412 = vmatprep.subr.bf16.mxu0 0
  %1413 = vmatpush1.bf16.msra.mxu0 0
  %1414 = vmatprep.subr.bf16.mxu0 0
  %1415 = vmatpush1.bf16.msra.mxu0 0
  %1416 = vmatprep.subr.bf16.mxu0 0
  %1417 = vmatpush1.bf16.msra.mxu0 0
  %1418 = vmatprep.subr.bf16.mxu0 0
  %1419 = vmatpush1.bf16.msra.mxu0 0
  %1420 = vmatprep.subr.bf16.mxu0 0
  %1421 = vmatpush1.bf16.msra.mxu0 0
  %1422 = vmatprep.mubr.bf16.mxu0 0
  %1423 = vmatmul.mubr.bf16.gmra.mrb[0].mxu0 %v1385
  %v1424 = vpop.f32.mrb[0].mxu0
  %v1425 = vadd.f32 %v1371, %v1424
  %v1426 = vpop.f32.mrb[0].mxu0
  %v1427 = vpop.f32.mrb[0].mxu0
  %v1428 = vadd.f32 %v1371, %v1427
  %v1429 = vpop.f32.mrb[0].mxu0
  %1430 = vmatprep.mubr.bf16.mxu0 0
  %1431 = vmatmul.mubr.bf16.gmra.mrb[0].mxu0 %v1388
  %v1432 = vpop.f32.mrb[0].mxu0
  %v1433 = vadd.f32 %v1371, %v1432
  %v1434 = vpop.f32.mrb[0].mxu0
  %v1435 = vpop.f32.mrb[0].mxu0
  %v1436 = vadd.f32 %v1371, %v1435
  %v1437 = vpop.f32.mrb[0].mxu0
  %1438 = vdwg.mxu0
  %v1439 = vpack.c.bf16 %v1428, %v1425
  %1441 = vrot.lane.b32.xlu0 %v1439, 96
  %v1442 = vpop.permute.xlu0 %1441
  %v1444 = vsel %vm178, %v1439, 0
  %v1447 = vsel %vm178, %v1442, 0
  %1449 = vmatprep.subr.bf16.mxu0 0
  %1450 = vmatpush1.bf16.xpose.msra.mxu0 %v1447
  %1451 = vmatprep.subr.bf16.mxu0 0
  %1452 = vmatpush1.bf16.xpose.msra.mxu0 0
  %1453 = vmatprep.subr.bf16.mxu0 0
  %1454 = vmatpush1.bf16.xpose.msra.mxu0 0
  %1455 = vmatprep.subr.bf16.mxu0 0
  %1456 = vmatpush1.bf16.xpose.msra.mxu0 0
  %1457 = vmatprep.subr.bf16.mxu0 0
  %1458 = vmatpush1.bf16.xpose.msra.mxu0 0
  %1459 = vmatprep.subr.bf16.mxu0 0
  %1460 = vmatpush1.bf16.xpose.msra.mxu0 0
  %1461 = vmatprep.subr.bf16.mxu0 0
  %1462 = vmatpush1.bf16.xpose.msra.mxu0 0
  %1463 = vmatprep.subr.bf16.mxu0 0
  %1464 = vmatpush1.bf16.xpose.msra.mxu0 0
  %1465 = vmatprep.subr.bf16.mxu0 0
  %1466 = vmatpush1.bf16.xpose.msra.mxu0 0
  %1467 = vmatprep.subr.bf16.mxu0 0
  %1468 = vmatpush1.bf16.xpose.msra.mxu0 0
  %1469 = vmatprep.subr.bf16.mxu0 0
  %1470 = vmatpush1.bf16.xpose.msra.mxu0 0
  %1471 = vmatprep.subr.bf16.mxu0 0
  %1472 = vmatpush1.bf16.xpose.msra.mxu0 0
  %1473 = vmatprep.subr.bf16.mxu0 0
  %1474 = vmatpush1.bf16.xpose.msra.mxu0 0
  %1475 = vmatprep.subr.bf16.mxu0 0
  %1476 = vmatpush1.bf16.xpose.msra.mxu0 0
  %1477 = vmatprep.subr.bf16.mxu0 0
  %1478 = vmatpush1.bf16.xpose.msra.mxu0 0
  %1479 = vmatprep.subr.bf16.mxu0 0
  %1480 = vmatpush1.bf16.xpose.msra.mxu0 0
  %1481 = vmatprep.mubr.bf16.mxu0 0
  %1482 = vmatmul.mubr.bf16.gmra.mrb[0].mxu0 %v1444
  %v1483 = vpop.f32.mrb[0].mxu0
  %v1484 = vadd.f32 %v401, %v1483
  %v1485 = vpop.f32.mrb[0].mxu0
  %v1486 = vpop.f32.mrb[0].mxu0
  %v1487 = vadd.f32 %v401, %v1486
  %v1488 = vpop.f32.mrb[0].mxu0
  %1489 = vdwg.mxu0
  %v1490 = vsel %vm178, %v1484, -inf
  %1491 = vmax.xlane.f32.xlu0 %v1490
  %v1492 = vpop.xlane.xlu0 %1491
  %v1493 = vsel %vm178, %v1487, -inf
  %1494 = vmax.xlane.f32.xlu0 %v1493
  %v1495 = vpop.xlane.xlu0 %1494
  %v1496 = vsub.f32 %v1484, %v1492
  %v1497 = vsub.f32 %v1487, %v1495
  %v1498 = vmul.f32 %v1496, 1.442695
  %v1499 = vpow.pop %v1498
  %v1500 = vmul.f32 %v1497, 1.442695
  %v1501 = vpow.pop %v1500
  %v1502 = vsel %vm178, %v1499, 0.0
  %1503 = vadd.xlane.f32.xlu0 %v1502
  %v1504 = vpop.xlane.xlu0 %1503
  %v1505 = vsel %vm178, %v1501, 0.0
  %1506 = vadd.xlane.f32.xlu0 %v1505
  %v1507 = vpop.xlane.xlu0 %1506
  %v1508 = vrcp.pop %v1504
  %v1509 = vrcp.pop %v1507
  %v1510 = vmul.f32 %v1499, %v1508
  %v1511 = vmul.f32 %v1501, %v1509
  %v1512 = vpack.c.bf16 %v1511, %v1510
  %1513 = vrot.lane.b32.xlu0 %v1439, 64
  %v1514 = vpop.permute.xlu0 %1513
  %v1517 = vsel %vm178, %v1512, 0
  %1519 = vmatprep.subr.bf16.mxu0 0
  %1520 = vmatpush1.bf16.msra.mxu0 %v1514
  %1521 = vmatprep.subr.bf16.mxu0 0
  %1522 = vmatpush1.bf16.msra.mxu0 0
  %1523 = vmatprep.subr.bf16.mxu0 0
  %1524 = vmatpush1.bf16.msra.mxu0 0
  %1525 = vmatprep.subr.bf16.mxu0 0
  %1526 = vmatpush1.bf16.msra.mxu0 0
  %1527 = vmatprep.subr.bf16.mxu0 0
  %1528 = vmatpush1.bf16.msra.mxu0 0
  %1529 = vmatprep.subr.bf16.mxu0 0
  %1530 = vmatpush1.bf16.msra.mxu0 0
  %1531 = vmatprep.subr.bf16.mxu0 0
  %1532 = vmatpush1.bf16.msra.mxu0 0
  %1533 = vmatprep.subr.bf16.mxu0 0
  %1534 = vmatpush1.bf16.msra.mxu0 0
  %1535 = vmatprep.subr.bf16.mxu0 0
  %1536 = vmatpush1.bf16.msra.mxu0 0
  %1537 = vmatprep.subr.bf16.mxu0 0
  %1538 = vmatpush1.bf16.msra.mxu0 0
  %1539 = vmatprep.subr.bf16.mxu0 0
  %1540 = vmatpush1.bf16.msra.mxu0 0
  %1541 = vmatprep.subr.bf16.mxu0 0
  %1542 = vmatpush1.bf16.msra.mxu0 0
  %1543 = vmatprep.subr.bf16.mxu0 0
  %1544 = vmatpush1.bf16.msra.mxu0 0
  %1545 = vmatprep.subr.bf16.mxu0 0
  %1546 = vmatpush1.bf16.msra.mxu0 0
  %1547 = vmatprep.subr.bf16.mxu0 0
  %1548 = vmatpush1.bf16.msra.mxu0 0
  %1549 = vmatprep.subr.bf16.mxu0 0
  %1550 = vmatpush1.bf16.msra.mxu0 0
  %1551 = vmatprep.mubr.bf16.mxu0 0
  %1552 = vmatmul.mubr.bf16.gmra.mrb[0].mxu0 %v1517
  %v1553 = vpop.f32.mrb[0].mxu0
  %v1554 = vadd.f32 0.0, %v1553
  %v1555 = vpop.f32.mrb[0].mxu0
  %v1556 = vpop.f32.mrb[0].mxu0
  %v1557 = vadd.f32 0.0, %v1556
  %v1558 = vpop.f32.mrb[0].mxu0
  %1559 = vdwg.mxu0
  %1560 = vst.msk [vmem:[#allocation2] sm:$0xff] %vm178, %v1554
  %1561 = vst.msk [vmem:[#allocation2 + $0x8] sm:$0xff] %vm178, %v1557
  %1562 = vrot.lane.b32.xlu0 %v1439, 112
  %v1563 = vpop.permute.xlu0 %1562
  %1564 = vrot.lane.b32.xlu0 %v1439, 80
  %v1565 = vpop.permute.xlu0 %1564
  %v1567 = vsel %vm178, %v1563, 0
  %v1570 = vsel %vm178, %v1565, 0
  %1572 = vmatprep.subr.bf16.mxu0 0
  %1573 = vmatpush1.bf16.xpose.msra.mxu0 %v1570
  %1574 = vmatprep.subr.bf16.mxu0 0
  %1575 = vmatpush1.bf16.xpose.msra.mxu0 0
  %1576 = vmatprep.subr.bf16.mxu0 0
  %1577 = vmatpush1.bf16.xpose.msra.mxu0 0
  %1578 = vmatprep.subr.bf16.mxu0 0
  %1579 = vmatpush1.bf16.xpose.msra.mxu0 0
  %1580 = vmatprep.subr.bf16.mxu0 0
  %1581 = vmatpush1.bf16.xpose.msra.mxu0 0
  %1582 = vmatprep.subr.bf16.mxu0 0
  %1583 = vmatpush1.bf16.xpose.msra.mxu0 0
  %1584 = vmatprep.subr.bf16.mxu0 0
  %1585 = vmatpush1.bf16.xpose.msra.mxu0 0
  %1586 = vmatprep.subr.bf16.mxu0 0
  %1587 = vmatpush1.bf16.xpose.msra.mxu0 0
  %1588 = vmatprep.subr.bf16.mxu0 0
  %1589 = vmatpush1.bf16.xpose.msra.mxu0 0
  %1590 = vmatprep.subr.bf16.mxu0 0
  %1591 = vmatpush1.bf16.xpose.msra.mxu0 0
  %1592 = vmatprep.subr.bf16.mxu0 0
  %1593 = vmatpush1.bf16.xpose.msra.mxu0 0
  %1594 = vmatprep.subr.bf16.mxu0 0
  %1595 = vmatpush1.bf16.xpose.msra.mxu0 0
  %1596 = vmatprep.subr.bf16.mxu0 0
  %1597 = vmatpush1.bf16.xpose.msra.mxu0 0
  %1598 = vmatprep.subr.bf16.mxu0 0
  %1599 = vmatpush1.bf16.xpose.msra.mxu0 0
  %1600 = vmatprep.subr.bf16.mxu0 0
  %1601 = vmatpush1.bf16.xpose.msra.mxu0 0
  %1602 = vmatprep.subr.bf16.mxu0 0
  %1603 = vmatpush1.bf16.xpose.msra.mxu0 0
  %1604 = vmatprep.mubr.bf16.mxu0 0
  %1605 = vmatmul.mubr.bf16.gmra.mrb[0].mxu0 %v1567
  %v1606 = vpop.f32.mrb[0].mxu0
  %v1607 = vadd.f32 %v401, %v1606
  %v1608 = vpop.f32.mrb[0].mxu0
  %v1609 = vpop.f32.mrb[0].mxu0
  %v1610 = vadd.f32 %v401, %v1609
  %v1611 = vpop.f32.mrb[0].mxu0
  %1612 = vdwg.mxu0
  %v1613 = vsel %vm178, %v1607, -inf
  %1614 = vmax.xlane.f32.xlu0 %v1613
  %v1615 = vpop.xlane.xlu0 %1614
  %v1616 = vsel %vm178, %v1610, -inf
  %1617 = vmax.xlane.f32.xlu0 %v1616
  %v1618 = vpop.xlane.xlu0 %1617
  %v1619 = vsub.f32 %v1607, %v1615
  %v1620 = vsub.f32 %v1610, %v1618
  %v1621 = vmul.f32 %v1619, 1.442695
  %v1622 = vpow.pop %v1621
  %v1623 = vmul.f32 %v1620, 1.442695
  %v1624 = vpow.pop %v1623
  %v1625 = vsel %vm178, %v1622, 0.0
  %1626 = vadd.xlane.f32.xlu0 %v1625
  %v1627 = vpop.xlane.xlu0 %1626
  %v1628 = vsel %vm178, %v1624, 0.0
  %1629 = vadd.xlane.f32.xlu0 %v1628
  %v1630 = vpop.xlane.xlu0 %1629
  %v1631 = vrcp.pop %v1627
  %v1632 = vrcp.pop %v1630
  %v1633 = vmul.f32 %v1622, %v1631
  %v1634 = vmul.f32 %v1624, %v1632
  %v1635 = vpack.c.bf16 %v1634, %v1633
  %1636 = vrot.lane.b32.xlu0 %v1439, 48
  %v1637 = vpop.permute.xlu0 %1636
  %v1640 = vsel %vm178, %v1635, 0
  %1642 = vmatprep.subr.bf16.mxu0 0
  %1643 = vmatpush1.bf16.msra.mxu0 %v1637
  %1644 = vmatprep.subr.bf16.mxu0 0
  %1645 = vmatpush1.bf16.msra.mxu0 0
  %1646 = vmatprep.subr.bf16.mxu0 0
  %1647 = vmatpush1.bf16.msra.mxu0 0
  %1648 = vmatprep.subr.bf16.mxu0 0
  %1649 = vmatpush1.bf16.msra.mxu0 0
  %1650 = vmatprep.subr.bf16.mxu0 0
  %1651 = vmatpush1.bf16.msra.mxu0 0
  %1652 = vmatprep.subr.bf16.mxu0 0
  %1653 = vmatpush1.bf16.msra.mxu0 0
  %1654 = vmatprep.subr.bf16.mxu0 0
  %1655 = vmatpush1.bf16.msra.mxu0 0
  %1656 = vmatprep.subr.bf16.mxu0 0
  %1657 = vmatpush1.bf16.msra.mxu0 0
  %1658 = vmatprep.subr.bf16.mxu0 0
  %1659 = vmatpush1.bf16.msra.mxu0 0
  %1660 = vmatprep.subr.bf16.mxu0 0
  %1661 = vmatpush1.bf16.msra.mxu0 0
  %1662 = vmatprep.subr.bf16.mxu0 0
  %1663 = vmatpush1.bf16.msra.mxu0 0
  %1664 = vmatprep.subr.bf16.mxu0 0
  %1665 = vmatpush1.bf16.msra.mxu0 0
  %1666 = vmatprep.subr.bf16.mxu0 0
  %1667 = vmatpush1.bf16.msra.mxu0 0
  %1668 = vmatprep.subr.bf16.mxu0 0
  %1669 = vmatpush1.bf16.msra.mxu0 0
  %1670 = vmatprep.subr.bf16.mxu0 0
  %1671 = vmatpush1.bf16.msra.mxu0 0
  %1672 = vmatprep.subr.bf16.mxu0 0
  %1673 = vmatpush1.bf16.msra.mxu0 0
  %1674 = vmatprep.mubr.bf16.mxu0 0
  %1675 = vmatmul.mubr.bf16.gmra.mrb[0].mxu0 %v1640
  %v1676 = vpop.f32.mrb[0].mxu0
  %v1677 = vadd.f32 0.0, %v1676
  %v1678 = vpop.f32.mrb[0].mxu0
  %v1679 = vpop.f32.mrb[0].mxu0
  %v1680 = vadd.f32 0.0, %v1679
  %v1681 = vpop.f32.mrb[0].mxu0
  %1682 = vdwg.mxu0
  %1685 = vrot.lane.b32.xlu0 %v1677, 16
  %v1686 = vpop.permute.xlu0 %1685
  %1687 = vrot.lane.b32.xlu0 %v1680, 16
  %v1688 = vpop.permute.xlu0 %1687
  %1691 = vst.msk [vmem:[#allocation2] sm:$0xff] %vm653, %v1686
  %1692 = vst.msk [vmem:[#allocation2 + $0x8] sm:$0xff] %vm653, %v1688
  %v1693 = vpack.c.bf16 %v1436, %v1433
  %1695 = vrot.lane.b32.xlu0 %v1693, 96
  %v1696 = vpop.permute.xlu0 %1695
  %v1698 = vsel %vm178, %v1693, 0
  %v1701 = vsel %vm178, %v1696, 0
  %1703 = vmatprep.subr.bf16.mxu0 0
  %1704 = vmatpush1.bf16.xpose.msra.mxu0 %v1701
  %1705 = vmatprep.subr.bf16.mxu0 0
  %1706 = vmatpush1.bf16.xpose.msra.mxu0 0
  %1707 = vmatprep.subr.bf16.mxu0 0
  %1708 = vmatpush1.bf16.xpose.msra.mxu0 0
  %1709 = vmatprep.subr.bf16.mxu0 0
  %1710 = vmatpush1.bf16.xpose.msra.mxu0 0
  %1711 = vmatprep.subr.bf16.mxu0 0
  %1712 = vmatpush1.bf16.xpose.msra.mxu0 0
  %1713 = vmatprep.subr.bf16.mxu0 0
  %1714 = vmatpush1.bf16.xpose.msra.mxu0 0
  %1715 = vmatprep.subr.bf16.mxu0 0
  %1716 = vmatpush1.bf16.xpose.msra.mxu0 0
  %1717 = vmatprep.subr.bf16.mxu0 0
  %1718 = vmatpush1.bf16.xpose.msra.mxu0 0
  %1719 = vmatprep.subr.bf16.mxu0 0
  %1720 = vmatpush1.bf16.xpose.msra.mxu0 0
  %1721 = vmatprep.subr.bf16.mxu0 0
  %1722 = vmatpush1.bf16.xpose.msra.mxu0 0
  %1723 = vmatprep.subr.bf16.mxu0 0
  %1724 = vmatpush1.bf16.xpose.msra.mxu0 0
  %1725 = vmatprep.subr.bf16.mxu0 0
  %1726 = vmatpush1.bf16.xpose.msra.mxu0 0
  %1727 = vmatprep.subr.bf16.mxu0 0
  %1728 = vmatpush1.bf16.xpose.msra.mxu0 0
  %1729 = vmatprep.subr.bf16.mxu0 0
  %1730 = vmatpush1.bf16.xpose.msra.mxu0 0
  %1731 = vmatprep.subr.bf16.mxu0 0
  %1732 = vmatpush1.bf16.xpose.msra.mxu0 0
  %1733 = vmatprep.subr.bf16.mxu0 0
  %1734 = vmatpush1.bf16.xpose.msra.mxu0 0
  %1735 = vmatprep.mubr.bf16.mxu0 0
  %1736 = vmatmul.mubr.bf16.gmra.mrb[0].mxu0 %v1698
  %v1737 = vpop.f32.mrb[0].mxu0
  %v1738 = vadd.f32 %v660, %v1737
  %v1739 = vpop.f32.mrb[0].mxu0
  %v1740 = vpop.f32.mrb[0].mxu0
  %v1741 = vadd.f32 %v660, %v1740
  %v1742 = vpop.f32.mrb[0].mxu0
  %1743 = vdwg.mxu0
  %v1744 = vsel %vm178, %v1738, -inf
  %1745 = vmax.xlane.f32.xlu0 %v1744
  %v1746 = vpop.xlane.xlu0 %1745
  %v1747 = vsel %vm178, %v1741, -inf
  %1748 = vmax.xlane.f32.xlu0 %v1747
  %v1749 = vpop.xlane.xlu0 %1748
  %v1750 = vsub.f32 %v1738, %v1746
  %v1751 = vsub.f32 %v1741, %v1749
  %v1752 = vmul.f32 %v1750, 1.442695
  %v1753 = vpow.pop %v1752
  %v1754 = vmul.f32 %v1751, 1.442695
  %v1755 = vpow.pop %v1754
  %v1756 = vsel %vm178, %v1753, 0.0
  %1757 = vadd.xlane.f32.xlu0 %v1756
  %v1758 = vpop.xlane.xlu0 %1757
  %v1759 = vsel %vm178, %v1755, 0.0
  %1760 = vadd.xlane.f32.xlu0 %v1759
  %v1761 = vpop.xlane.xlu0 %1760
  %v1762 = vrcp.pop %v1758
  %v1763 = vrcp.pop %v1761
  %v1764 = vmul.f32 %v1753, %v1762
  %v1765 = vmul.f32 %v1755, %v1763
  %v1766 = vpack.c.bf16 %v1765, %v1764
  %1767 = vrot.lane.b32.xlu0 %v1693, 64
  %v1768 = vpop.permute.xlu0 %1767
  %v1771 = vsel %vm178, %v1766, 0
  %1773 = vmatprep.subr.bf16.mxu0 0
  %1774 = vmatpush1.bf16.msra.mxu0 %v1768
  %1775 = vmatprep.subr.bf16.mxu0 0
  %1776 = vmatpush1.bf16.msra.mxu0 0
  %1777 = vmatprep.subr.bf16.mxu0 0
  %1778 = vmatpush1.bf16.msra.mxu0 0
  %1779 = vmatprep.subr.bf16.mxu0 0
  %1780 = vmatpush1.bf16.msra.mxu0 0
  %1781 = vmatprep.subr.bf16.mxu0 0
  %1782 = vmatpush1.bf16.msra.mxu0 0
  %1783 = vmatprep.subr.bf16.mxu0 0
  %1784 = vmatpush1.bf16.msra.mxu0 0
  %1785 = vmatprep.subr.bf16.mxu0 0
  %1786 = vmatpush1.bf16.msra.mxu0 0
  %1787 = vmatprep.subr.bf16.mxu0 0
  %1788 = vmatpush1.bf16.msra.mxu0 0
  %1789 = vmatprep.subr.bf16.mxu0 0
  %1790 = vmatpush1.bf16.msra.mxu0 0
  %1791 = vmatprep.subr.bf16.mxu0 0
  %1792 = vmatpush1.bf16.msra.mxu0 0
  %1793 = vmatprep.subr.bf16.mxu0 0
  %1794 = vmatpush1.bf16.msra.mxu0 0
  %1795 = vmatprep.subr.bf16.mxu0 0
  %1796 = vmatpush1.bf16.msra.mxu0 0
  %1797 = vmatprep.subr.bf16.mxu0 0
  %1798 = vmatpush1.bf16.msra.mxu0 0
  %1799 = vmatprep.subr.bf16.mxu0 0
  %1800 = vmatpush1.bf16.msra.mxu0 0
  %1801 = vmatprep.subr.bf16.mxu0 0
  %1802 = vmatpush1.bf16.msra.mxu0 0
  %1803 = vmatprep.subr.bf16.mxu0 0
  %1804 = vmatpush1.bf16.msra.mxu0 0
  %1805 = vmatprep.mubr.bf16.mxu0 0
  %1806 = vmatmul.mubr.bf16.gmra.mrb[0].mxu0 %v1771
  %v1807 = vpop.f32.mrb[0].mxu0
  %v1808 = vadd.f32 0.0, %v1807
  %v1809 = vpop.f32.mrb[0].mxu0
  %v1810 = vpop.f32.mrb[0].mxu0
  %v1811 = vadd.f32 0.0, %v1810
  %v1812 = vpop.f32.mrb[0].mxu0
  %1813 = vdwg.mxu0
  %1814 = vst.msk [vmem:[#allocation2 + $0x10] sm:$0xff] %vm178, %v1808
  %1815 = vst.msk [vmem:[#allocation2 + $0x18] sm:$0xff] %vm178, %v1811
  %1816 = vrot.lane.b32.xlu0 %v1693, 112
  %v1817 = vpop.permute.xlu0 %1816
  %1818 = vrot.lane.b32.xlu0 %v1693, 80
  %v1819 = vpop.permute.xlu0 %1818
  %v1821 = vsel %vm178, %v1817, 0
  %v1824 = vsel %vm178, %v1819, 0
  %1826 = vmatprep.subr.bf16.mxu0 0
  %1827 = vmatpush1.bf16.xpose.msra.mxu0 %v1824
  %1828 = vmatprep.subr.bf16.mxu0 0
  %1829 = vmatpush1.bf16.xpose.msra.mxu0 0
  %1830 = vmatprep.subr.bf16.mxu0 0
  %1831 = vmatpush1.bf16.xpose.msra.mxu0 0
  %1832 = vmatprep.subr.bf16.mxu0 0
  %1833 = vmatpush1.bf16.xpose.msra.mxu0 0
  %1834 = vmatprep.subr.bf16.mxu0 0
  %1835 = vmatpush1.bf16.xpose.msra.mxu0 0
  %1836 = vmatprep.subr.bf16.mxu0 0
  %1837 = vmatpush1.bf16.xpose.msra.mxu0 0
  %1838 = vmatprep.subr.bf16.mxu0 0
  %1839 = vmatpush1.bf16.xpose.msra.mxu0 0
  %1840 = vmatprep.subr.bf16.mxu0 0
  %1841 = vmatpush1.bf16.xpose.msra.mxu0 0
  %1842 = vmatprep.subr.bf16.mxu0 0
  %1843 = vmatpush1.bf16.xpose.msra.mxu0 0
  %1844 = vmatprep.subr.bf16.mxu0 0
  %1845 = vmatpush1.bf16.xpose.msra.mxu0 0
  %1846 = vmatprep.subr.bf16.mxu0 0
  %1847 = vmatpush1.bf16.xpose.msra.mxu0 0
  %1848 = vmatprep.subr.bf16.mxu0 0
  %1849 = vmatpush1.bf16.xpose.msra.mxu0 0
  %1850 = vmatprep.subr.bf16.mxu0 0
  %1851 = vmatpush1.bf16.xpose.msra.mxu0 0
  %1852 = vmatprep.subr.bf16.mxu0 0
  %1853 = vmatpush1.bf16.xpose.msra.mxu0 0
  %1854 = vmatprep.subr.bf16.mxu0 0
  %1855 = vmatpush1.bf16.xpose.msra.mxu0 0
  %1856 = vmatprep.subr.bf16.mxu0 0
  %1857 = vmatpush1.bf16.xpose.msra.mxu0 0
  %1858 = vmatprep.mubr.bf16.mxu0 0
  %1859 = vmatmul.mubr.bf16.gmra.mrb[0].mxu0 %v1821
  %v1860 = vpop.f32.mrb[0].mxu0
  %v1861 = vadd.f32 %v660, %v1860
  %v1862 = vpop.f32.mrb[0].mxu0
  %v1863 = vpop.f32.mrb[0].mxu0
  %v1864 = vadd.f32 %v660, %v1863
  %v1865 = vpop.f32.mrb[0].mxu0
  %1866 = vdwg.mxu0
  %v1867 = vsel %vm178, %v1861, -inf
  %1868 = vmax.xlane.f32.xlu0 %v1867
  %v1869 = vpop.xlane.xlu0 %1868
  %v1870 = vsel %vm178, %v1864, -inf
  %1871 = vmax.xlane.f32.xlu0 %v1870
  %v1872 = vpop.xlane.xlu0 %1871
  %v1873 = vsub.f32 %v1861, %v1869
  %v1874 = vsub.f32 %v1864, %v1872
  %v1875 = vmul.f32 %v1873, 1.442695
  %v1876 = vpow.pop %v1875
  %v1877 = vmul.f32 %v1874, 1.442695
  %v1878 = vpow.pop %v1877
  %v1879 = vsel %vm178, %v1876, 0.0
  %1880 = vadd.xlane.f32.xlu0 %v1879
  %v1881 = vpop.xlane.xlu0 %1880
  %v1882 = vsel %vm178, %v1878, 0.0
  %1883 = vadd.xlane.f32.xlu0 %v1882
  %v1884 = vpop.xlane.xlu0 %1883
  %v1885 = vrcp.pop %v1881
  %v1886 = vrcp.pop %v1884
  %v1887 = vmul.f32 %v1876, %v1885
  %v1888 = vmul.f32 %v1878, %v1886
  %v1889 = vpack.c.bf16 %v1888, %v1887
  %1890 = vrot.lane.b32.xlu0 %v1693, 48
  %v1891 = vpop.permute.xlu0 %1890
  %v1894 = vsel %vm178, %v1889, 0
  %1896 = vmatprep.subr.bf16.mxu0 0
  %1897 = vmatpush1.bf16.msra.mxu0 %v1891
  %1898 = vmatprep.subr.bf16.mxu0 0
  %1899 = vmatpush1.bf16.msra.mxu0 0
  %1900 = vmatprep.subr.bf16.mxu0 0
  %1901 = vmatpush1.bf16.msra.mxu0 0
  %1902 = vmatprep.subr.bf16.mxu0 0
  %1903 = vmatpush1.bf16.msra.mxu0 0
  %1904 = vmatprep.subr.bf16.mxu0 0
  %1905 = vmatpush1.bf16.msra.mxu0 0
  %1906 = vmatprep.subr.bf16.mxu0 0
  %1907 = vmatpush1.bf16.msra.mxu0 0
  %1908 = vmatprep.subr.bf16.mxu0 0
  %1909 = vmatpush1.bf16.msra.mxu0 0
  %1910 = vmatprep.subr.bf16.mxu0 0
  %1911 = vmatpush1.bf16.msra.mxu0 0
  %1912 = vmatprep.subr.bf16.mxu0 0
  %1913 = vmatpush1.bf16.msra.mxu0 0
  %1914 = vmatprep.subr.bf16.mxu0 0
  %1915 = vmatpush1.bf16.msra.mxu0 0
  %1916 = vmatprep.subr.bf16.mxu0 0
  %1917 = vmatpush1.bf16.msra.mxu0 0
  %1918 = vmatprep.subr.bf16.mxu0 0
  %1919 = vmatpush1.bf16.msra.mxu0 0
  %1920 = vmatprep.subr.bf16.mxu0 0
  %1921 = vmatpush1.bf16.msra.mxu0 0
  %1922 = vmatprep.subr.bf16.mxu0 0
  %1923 = vmatpush1.bf16.msra.mxu0 0
  %1924 = vmatprep.subr.bf16.mxu0 0
  %1925 = vmatpush1.bf16.msra.mxu0 0
  %1926 = vmatprep.subr.bf16.mxu0 0
  %1927 = vmatpush1.bf16.msra.mxu0 0
  %1928 = vmatprep.mubr.bf16.mxu0 0
  %1929 = vmatmul.mubr.bf16.gmra.mrb[0].mxu0 %v1894
  %v1930 = vpop.f32.mrb[0].mxu0
  %v1931 = vadd.f32 0.0, %v1930
  %v1932 = vpop.f32.mrb[0].mxu0
  %v1933 = vpop.f32.mrb[0].mxu0
  %v1934 = vadd.f32 0.0, %v1933
  %v1935 = vpop.f32.mrb[0].mxu0
  %1936 = vdwg.mxu0
  %1939 = vrot.lane.b32.xlu0 %v1931, 16
  %v1940 = vpop.permute.xlu0 %1939
  %1941 = vrot.lane.b32.xlu0 %v1934, 16
  %v1942 = vpop.permute.xlu0 %1941
  %1945 = vst.msk [vmem:[#allocation2 + $0x10] sm:$0xff] %vm653, %v1940
  %1946 = vst.msk [vmem:[#allocation2 + $0x18] sm:$0xff] %vm653, %v1942
  %v1947 = vld [vmem:[%s4 + $0x30] sm:$0xf]
  %v1948 = vld [vmem:[%s4 + $0x34] sm:$0xf]
  %v1949 = vld [vmem:[%s4 + $0x38] sm:$0xf]
  %v1950 = vld [vmem:[%s4 + $0x3c] sm:$0xf]
  %v1951 = vld [vmem:[#allocation2] sm:$0xff]
  %v1952 = vld [vmem:[#allocation2 + $0x8] sm:$0xff]
  %v1953 = vld [vmem:[#allocation2 + $0x10] sm:$0xff]
  %v1954 = vld [vmem:[#allocation2 + $0x18] sm:$0xff]
  %v1955 = vpack.c.bf16 %v1952, %v1951
  %v1956 = vpack.c.bf16 %v1954, %v1953
  %v1957 = vlaneseq
  %v1958 = vshrl.u32 %v1957, 7
  %v1959 = vsub.s32 0, %v1958
  %v1960 = vrot.slane %v28, %v1959
  %v1965 = vunpack.c.l.b16 %v1947
  %v1966 = vunpack.c.l.b16 %v1948
  %v1967 = vunpack.c.l.b16 %v1949
  %v1968 = vunpack.c.l.b16 %v1950
  %v1969 = vpack.c.b16 %v1966, %v1965
  %v1970 = vpack.c.b16 %v1968, %v1967
  %v1974 = vsel %vm234, %v1955, 0
  %v1977 = vsel %vm234, %v1956, 0
  %1979 = vmatprep.subr.bf16.mxu0 0
  %1980 = vmatpush1.bf16.msra.mxu0 %v1969
  %1981 = vmatprep.subr.bf16.mxu0 0
  %1982 = vmatpush1.bf16.msra.mxu0 %v1970
  %1983 = vmatprep.subr.bf16.mxu0 0
  %1984 = vmatpush1.bf16.msra.mxu0 0
  %1985 = vmatprep.subr.bf16.mxu0 0
  %1986 = vmatpush1.bf16.msra.mxu0 0
  %1987 = vmatprep.subr.bf16.mxu0 0
  %1988 = vmatpush1.bf16.msra.mxu0 0
  %1989 = vmatprep.subr.bf16.mxu0 0
  %1990 = vmatpush1.bf16.msra.mxu0 0
  %1991 = vmatprep.subr.bf16.mxu0 0
  %1992 = vmatpush1.bf16.msra.mxu0 0
  %1993 = vmatprep.subr.bf16.mxu0 0
  %1994 = vmatpush1.bf16.msra.mxu0 0
  %1995 = vmatprep.subr.bf16.mxu0 0
  %1996 = vmatpush1.bf16.msra.mxu0 0
  %1997 = vmatprep.subr.bf16.mxu0 0
  %1998 = vmatpush1.bf16.msra.mxu0 0
  %1999 = vmatprep.subr.bf16.mxu0 0
  %2000 = vmatpush1.bf16.msra.mxu0 0
  %2001 = vmatprep.subr.bf16.mxu0 0
  %2002 = vmatpush1.bf16.msra.mxu0 0
  %2003 = vmatprep.subr.bf16.mxu0 0
  %2004 = vmatpush1.bf16.msra.mxu0 0
  %2005 = vmatprep.subr.bf16.mxu0 0
  %2006 = vmatpush1.bf16.msra.mxu0 0
  %2007 = vmatprep.subr.bf16.mxu0 0
  %2008 = vmatpush1.bf16.msra.mxu0 0
  %2009 = vmatprep.subr.bf16.mxu0 0
  %2010 = vmatpush1.bf16.msra.mxu0 0
  %2011 = vmatprep.mubr.bf16.mxu0 0
  %2012 = vmatmul.mubr.bf16.gmra.mrb[0].mxu0 %v1974
  %v2013 = vpop.f32.mrb[0].mxu0
  %v2014 = vadd.f32 %v1960, %v2013
  %v2015 = vpop.f32.mrb[0].mxu0
  %v2016 = vpop.f32.mrb[0].mxu0
  %v2017 = vadd.f32 %v1960, %v2016
  %v2018 = vpop.f32.mrb[0].mxu0
  %2019 = vmatprep.mubr.bf16.mxu0 0
  %2020 = vmatmul.mubr.bf16.gmra.mrb[0].mxu0 %v1977
  %v2021 = vpop.f32.mrb[0].mxu0
  %v2022 = vadd.f32 %v1960, %v2021
  %v2023 = vpop.f32.mrb[0].mxu0
  %v2024 = vpop.f32.mrb[0].mxu0
  %v2025 = vadd.f32 %v1960, %v2024
  %v2026 = vpop.f32.mrb[0].mxu0
  %2027 = vdwg.mxu0
  %v2028 = vadd.f32 %v1357, %v2014
  %v2029 = vadd.f32 %v1358, %v2017
  %v2030 = vadd.f32 %v1359, %v2022
  %v2031 = vadd.f32 %v1360, %v2025
  %v2032 = vsel %vm234, %v2028, 0.0
  %2033 = vadd.xlane.f32.xlu0 %v2032
  %v2034 = vpop.xlane.xlu0 %2033
  %v2035 = vsel %vm234, %v2029, 0.0
  %2036 = vadd.xlane.f32.xlu0 %v2035
  %v2037 = vpop.xlane.xlu0 %2036
  %v2038 = vsel %vm234, %v2030, 0.0
  %2039 = vadd.xlane.f32.xlu0 %v2038
  %v2040 = vpop.xlane.xlu0 %2039
  %v2041 = vsel %vm234, %v2031, 0.0
  %2042 = vadd.xlane.f32.xlu0 %v2041
  %v2043 = vpop.xlane.xlu0 %2042
  %v2044 = vmul.f32 %v2034, %v247
  %v2045 = vmul.f32 %v2037, %v247
  %v2046 = vmul.f32 %v2040, %v247
  %v2047 = vmul.f32 %v2043, %v247
  %v2048 = vmul.f32 %v2028, %v2028
  %v2049 = vmul.f32 %v2029, %v2029
  %v2050 = vmul.f32 %v2030, %v2030
  %v2051 = vmul.f32 %v2031, %v2031
  %v2052 = vsel %vm234, %v2048, 0.0
  %2053 = vadd.xlane.f32.xlu0 %v2052
  %v2054 = vpop.xlane.xlu0 %2053
  %v2055 = vsel %vm234, %v2049, 0.0
  %2056 = vadd.xlane.f32.xlu0 %v2055
  %v2057 = vpop.xlane.xlu0 %2056
  %v2058 = vsel %vm234, %v2050, 0.0
  %2059 = vadd.xlane.f32.xlu0 %v2058
  %v2060 = vpop.xlane.xlu0 %2059
  %v2061 = vsel %vm234, %v2051, 0.0
  %2062 = vadd.xlane.f32.xlu0 %v2061
  %v2063 = vpop.xlane.xlu0 %2062
  %v2064 = vmul.f32 %v2054, %v247
  %v2065 = vmul.f32 %v2057, %v247
  %v2066 = vmul.f32 %v2060, %v247
  %v2067 = vmul.f32 %v2063, %v247
  %v2068 = vmul.f32 %v2044, %v2044
  %v2069 = vmul.f32 %v2045, %v2045
  %v2070 = vmul.f32 %v2046, %v2046
  %v2071 = vmul.f32 %v2047, %v2047
  %v2072 = vsub.f32 %v2064, %v2068
  %v2073 = vsub.f32 %v2065, %v2069
  %v2074 = vsub.f32 %v2066, %v2070
  %v2075 = vsub.f32 %v2067, %v2071
  %v2076 = vmax.f32 %v2072, 0.0
  %v2077 = vmax.f32 %v2073, 0.0
  %v2078 = vmax.f32 %v2074, 0.0
  %v2079 = vmax.f32 %v2075, 0.0
  %v2080 = vsub.f32 %v2028, %v2044
  %v2081 = vsub.f32 %v2029, %v2045
  %v2082 = vsub.f32 %v2030, %v2046
  %v2083 = vsub.f32 %v2031, %v2047
  %v2084 = vadd.f32 %v2076, 1e-12
  %v2085 = vadd.f32 %v2077, 1e-12
  %v2086 = vadd.f32 %v2078, 1e-12
  %v2087 = vadd.f32 %v2079, 1e-12
  %v2088 = vrsqrt.pop %v2084
  %v2089 = vrsqrt.pop %v2085
  %v2090 = vrsqrt.pop %v2086
  %v2091 = vrsqrt.pop %v2087
  %v2092 = vmul.f32 %v2080, %v2088
  %v2093 = vmul.f32 %v2081, %v2089
  %v2094 = vmul.f32 %v2082, %v2090
  %v2095 = vmul.f32 %v2083, %v2091
  %v2096 = vlaneseq
  %v2097 = vshrl.u32 %v2096, 7
  %v2098 = vsub.s32 1, %v2097
  %v2099 = vrot.slane %v28, %v2098
  %v2100 = vmul.f32 %v2092, %v2099
  %v2101 = vmul.f32 %v2093, %v2099
  %v2102 = vmul.f32 %v2094, %v2099
  %v2103 = vmul.f32 %v2095, %v2099
  %v2104 = vlaneseq
  %v2105 = vshrl.u32 %v2104, 7
  %v2106 = vsub.s32 2, %v2105
  %v2107 = vrot.slane %v28, %v2106
  %v2108 = vadd.f32 %v2100, %v2107
  %v2109 = vadd.f32 %v2101, %v2107
  %v2110 = vadd.f32 %v2102, %v2107
  %v2111 = vadd.f32 %v2103, %v2107
  %v2112 = vpack.c.bf16 %v2109, %v2108
  %v2113 = vpack.c.bf16 %v2111, %v2110
  %v2114 = vld [vmem:[%s6 + $0x3] sm:$0x1]
  %v2115 = vlaneseq
  %v2116 = vshrl.u32 %v2115, 7
  %v2117 = vsub.s32 0, %v2116
  %v2118 = vrot.slane %v2114, %v2117
  %2119 = vrot.lane.b32.xlu0 %v1969, 96
  %v2120 = vpop.permute.xlu0 %2119
  %2121 = vrot.lane.b32.xlu0 %v1970, 96
  %v2122 = vpop.permute.xlu0 %2121
  %v2126 = vsel %vm234, %v2112, 0
  %v2129 = vsel %vm234, %v2113, 0
  %2131 = vmatprep.subr.bf16.mxu0 0
  %2132 = vmatpush1.bf16.msra.mxu0 %v2120
  %2133 = vmatprep.subr.bf16.mxu0 0
  %2134 = vmatpush1.bf16.msra.mxu0 %v2122
  %2135 = vmatprep.subr.bf16.mxu0 0
  %2136 = vmatpush1.bf16.msra.mxu0 0
  %2137 = vmatprep.subr.bf16.mxu0 0
  %2138 = vmatpush1.bf16.msra.mxu0 0
  %2139 = vmatprep.subr.bf16.mxu0 0
  %2140 = vmatpush1.bf16.msra.mxu0 0
  %2141 = vmatprep.subr.bf16.mxu0 0
  %2142 = vmatpush1.bf16.msra.mxu0 0
  %2143 = vmatprep.subr.bf16.mxu0 0
  %2144 = vmatpush1.bf16.msra.mxu0 0
  %2145 = vmatprep.subr.bf16.mxu0 0
  %2146 = vmatpush1.bf16.msra.mxu0 0
  %2147 = vmatprep.subr.bf16.mxu0 0
  %2148 = vmatpush1.bf16.msra.mxu0 0
  %2149 = vmatprep.subr.bf16.mxu0 0
  %2150 = vmatpush1.bf16.msra.mxu0 0
  %2151 = vmatprep.subr.bf16.mxu0 0
  %2152 = vmatpush1.bf16.msra.mxu0 0
  %2153 = vmatprep.subr.bf16.mxu0 0
  %2154 = vmatpush1.bf16.msra.mxu0 0
  %2155 = vmatprep.subr.bf16.mxu0 0
  %2156 = vmatpush1.bf16.msra.mxu0 0
  %2157 = vmatprep.subr.bf16.mxu0 0
  %2158 = vmatpush1.bf16.msra.mxu0 0
  %2159 = vmatprep.subr.bf16.mxu0 0
  %2160 = vmatpush1.bf16.msra.mxu0 0
  %2161 = vmatprep.subr.bf16.mxu0 0
  %2162 = vmatpush1.bf16.msra.mxu0 0
  %2163 = vmatprep.mubr.bf16.mxu0 0
  %2164 = vmatmul.mubr.bf16.gmra.mrb[0].mxu0 %v2126
  %v2165 = vpop.f32.mrb[0].mxu0
  %v2166 = vadd.f32 %v2118, %v2165
  %v2167 = vpop.f32.mrb[0].mxu0
  %v2168 = vpop.f32.mrb[0].mxu0
  %v2169 = vadd.f32 %v2118, %v2168
  %v2170 = vpop.f32.mrb[0].mxu0
  %2171 = vmatprep.mubr.bf16.mxu0 0
  %2172 = vmatmul.mubr.bf16.gmra.mrb[0].mxu0 %v2129
  %v2173 = vpop.f32.mrb[0].mxu0
  %v2174 = vadd.f32 %v2118, %v2173
  %v2175 = vpop.f32.mrb[0].mxu0
  %v2176 = vpop.f32.mrb[0].mxu0
  %v2177 = vadd.f32 %v2118, %v2176
  %v2178 = vpop.f32.mrb[0].mxu0
  %2179 = vdwg.mxu0
  %v2180 = vmul.f32 %v2166, %v2166
  %v2181 = vmul.f32 %v2169, %v2169
  %v2182 = vmul.f32 %v2174, %v2174
  %v2183 = vmul.f32 %v2177, %v2177
  %v2184 = vmul.f32 %v2166, %v2180
  %v2185 = vmul.f32 %v2169, %v2181
  %v2186 = vmul.f32 %v2174, %v2182
  %v2187 = vmul.f32 %v2177, %v2183
  %v2188 = vmul.f32 %v2184, 0.044715
  %v2189 = vmul.f32 %v2185, 0.044715
  %v2190 = vmul.f32 %v2186, 0.044715
  %v2191 = vmul.f32 %v2187, 0.044715
  %v2192 = vadd.f32 %v2166, %v2188
  %v2193 = vadd.f32 %v2169, %v2189
  %v2194 = vadd.f32 %v2174, %v2190
  %v2195 = vadd.f32 %v2177, %v2191
  %v2196 = vmul.f32 %v2192, 0.7978846
  %v2197 = vmul.f32 %v2193, 0.7978846
  %v2198 = vmul.f32 %v2194, 0.7978846
  %v2199 = vmul.f32 %v2195, 0.7978846
  %v2200 = vtanh.pop %v2196
  %v2201 = vtanh.pop %v2197
  %v2202 = vtanh.pop %v2198
  %v2203 = vtanh.pop %v2199
  %v2204 = vadd.f32 %v2200, 1.0
  %v2205 = vadd.f32 %v2201, 1.0
  %v2206 = vadd.f32 %v2202, 1.0
  %v2207 = vadd.f32 %v2203, 1.0
  %v2208 = vmul.f32 %v2204, 0.5
  %v2209 = vmul.f32 %v2205, 0.5
  %v2210 = vmul.f32 %v2206, 0.5
  %v2211 = vmul.f32 %v2207, 0.5
  %v2212 = vmul.f32 %v2166, %v2208
  %v2213 = vmul.f32 %v2169, %v2209
  %v2214 = vmul.f32 %v2174, %v2210
  %v2215 = vmul.f32 %v2177, %v2211
  %v2216 = vld [vmem:[%s3 + $0x68] sm:$0xf]
  %v2217 = vld [vmem:[%s3 + $0x6c] sm:$0xf]
  %v2218 = vld [vmem:[%s3 + $0x70] sm:$0xf]
  %v2219 = vld [vmem:[%s3 + $0x74] sm:$0xf]
  %v2220 = vld [vmem:[%s3 + $0x78] sm:$0xf]
  %v2221 = vld [vmem:[%s3 + $0x7c] sm:$0xf]
  %v2222 = vld [vmem:[%s3 + $0x80] sm:$0xf]
  %v2223 = vld [vmem:[%s3 + $0x84] sm:$0xf]
  %v2224 = vpack.c.bf16 %v2213, %v2212
  %v2225 = vpack.c.bf16 %v2215, %v2214
  %v2226 = vlaneseq
  %v2227 = vshrl.u32 %v2226, 7
  %v2228 = vsub.s32 3, %v2227
  %v2229 = vrot.slane %v28, %v2228
  %v2238 = vunpack.c.l.b16 %v2216
  %v2239 = vunpack.c.l.b16 %v2217
  %v2240 = vunpack.c.l.b16 %v2218
  %v2241 = vunpack.c.l.b16 %v2219
  %v2242 = vunpack.c.l.b16 %v2220
  %v2243 = vunpack.c.l.b16 %v2221
  %v2244 = vunpack.c.l.b16 %v2222
  %v2245 = vunpack.c.l.b16 %v2223
  %v2246 = vpack.c.b16 %v2239, %v2238
  %v2247 = vpack.c.b16 %v2241, %v2240
  %v2248 = vpack.c.b16 %v2243, %v2242
  %v2249 = vpack.c.b16 %v2245, %v2244
  %v2255 = vsel %vm1221, %v2224, 0
  %v2258 = vsel %vm1221, %v2225, 0
  %2260 = vmatprep.subr.bf16.mxu0 0
  %2261 = vmatpush1.bf16.msra.mxu0 %v2246
  %2262 = vmatprep.subr.bf16.mxu0 0
  %2263 = vmatpush1.bf16.msra.mxu0 %v2247
  %2264 = vmatprep.subr.bf16.mxu0 0
  %2265 = vmatpush1.bf16.msra.mxu0 %v2248
  %2266 = vmatprep.subr.bf16.mxu0 0
  %2267 = vmatpush1.bf16.msra.mxu0 %v2249
  %2268 = vmatprep.subr.bf16.mxu0 0
  %2269 = vmatpush1.bf16.msra.mxu0 0
  %2270 = vmatprep.subr.bf16.mxu0 0
  %2271 = vmatpush1.bf16.msra.mxu0 0
  %2272 = vmatprep.subr.bf16.mxu0 0
  %2273 = vmatpush1.bf16.msra.mxu0 0
  %2274 = vmatprep.subr.bf16.mxu0 0
  %2275 = vmatpush1.bf16.msra.mxu0 0
  %2276 = vmatprep.subr.bf16.mxu0 0
  %2277 = vmatpush1.bf16.msra.mxu0 0
  %2278 = vmatprep.subr.bf16.mxu0 0
  %2279 = vmatpush1.bf16.msra.mxu0 0
  %2280 = vmatprep.subr.bf16.mxu0 0
  %2281 = vmatpush1.bf16.msra.mxu0 0
  %2282 = vmatprep.subr.bf16.mxu0 0
  %2283 = vmatpush1.bf16.msra.mxu0 0
  %2284 = vmatprep.subr.bf16.mxu0 0
  %2285 = vmatpush1.bf16.msra.mxu0 0
  %2286 = vmatprep.subr.bf16.mxu0 0
  %2287 = vmatpush1.bf16.msra.mxu0 0
  %2288 = vmatprep.subr.bf16.mxu0 0
  %2289 = vmatpush1.bf16.msra.mxu0 0
  %2290 = vmatprep.subr.bf16.mxu0 0
  %2291 = vmatpush1.bf16.msra.mxu0 0
  %2292 = vmatprep.mubr.bf16.mxu0 0
  %2293 = vmatmul.mubr.bf16.gmra.mrb[0].mxu0 %v2255
  %v2294 = vpop.f32.mrb[0].mxu0
  %v2295 = vadd.f32 %v2229, %v2294
  %v2296 = vpop.f32.mrb[0].mxu0
  %v2297 = vpop.f32.mrb[0].mxu0
  %v2298 = vadd.f32 %v2229, %v2297
  %v2299 = vpop.f32.mrb[0].mxu0
  %2300 = vmatprep.mubr.bf16.mxu0 0
  %2301 = vmatmul.mubr.bf16.gmra.mrb[0].mxu0 %v2258
  %v2302 = vpop.f32.mrb[0].mxu0
  %v2303 = vadd.f32 %v2229, %v2302
  %v2304 = vpop.f32.mrb[0].mxu0
  %v2305 = vpop.f32.mrb[0].mxu0
  %v2306 = vadd.f32 %v2229, %v2305
  %v2307 = vpop.f32.mrb[0].mxu0
  %2308 = vdwg.mxu0
  %v2309 = vadd.f32 %v2108, %v2295
  %v2310 = vadd.f32 %v2109, %v2298
  %v2311 = vadd.f32 %v2110, %v2303
  %v2312 = vadd.f32 %v2111, %v2306
  %v2313 = vsel %vm234, %v2309, 0.0
  %2314 = vadd.xlane.f32.xlu0 %v2313
  %v2315 = vpop.xlane.xlu0 %2314
  %v2316 = vsel %vm234, %v2310, 0.0
  %2317 = vadd.xlane.f32.xlu0 %v2316
  %v2318 = vpop.xlane.xlu0 %2317
  %v2319 = vsel %vm234, %v2311, 0.0
  %2320 = vadd.xlane.f32.xlu0 %v2319
  %v2321 = vpop.xlane.xlu0 %2320
  %v2322 = vsel %vm234, %v2312, 0.0
  %2323 = vadd.xlane.f32.xlu0 %v2322
  %v2324 = vpop.xlane.xlu0 %2323
  %v2325 = vmul.f32 %v2315, %v247
  %v2326 = vmul.f32 %v2318, %v247
  %v2327 = vmul.f32 %v2321, %v247
  %v2328 = vmul.f32 %v2324, %v247
  %v2329 = vmul.f32 %v2309, %v2309
  %v2330 = vmul.f32 %v2310, %v2310
  %v2331 = vmul.f32 %v2311, %v2311
  %v2332 = vmul.f32 %v2312, %v2312
  %v2333 = vsel %vm234, %v2329, 0.0
  %2334 = vadd.xlane.f32.xlu0 %v2333
  %v2335 = vpop.xlane.xlu0 %2334
  %v2336 = vsel %vm234, %v2330, 0.0
  %2337 = vadd.xlane.f32.xlu0 %v2336
  %v2338 = vpop.xlane.xlu0 %2337
  %v2339 = vsel %vm234, %v2331, 0.0
  %2340 = vadd.xlane.f32.xlu0 %v2339
  %v2341 = vpop.xlane.xlu0 %2340
  %v2342 = vsel %vm234, %v2332, 0.0
  %2343 = vadd.xlane.f32.xlu0 %v2342
  %v2344 = vpop.xlane.xlu0 %2343
  %v2345 = vmul.f32 %v2335, %v247
  %v2346 = vmul.f32 %v2338, %v247
  %v2347 = vmul.f32 %v2341, %v247
  %v2348 = vmul.f32 %v2344, %v247
  %v2349 = vmul.f32 %v2325, %v2325
  %v2350 = vmul.f32 %v2326, %v2326
  %v2351 = vmul.f32 %v2327, %v2327
  %v2352 = vmul.f32 %v2328, %v2328
  %v2353 = vsub.f32 %v2345, %v2349
  %v2354 = vsub.f32 %v2346, %v2350
  %v2355 = vsub.f32 %v2347, %v2351
  %v2356 = vsub.f32 %v2348, %v2352
  %v2357 = vmax.f32 %v2353, 0.0
  %v2358 = vmax.f32 %v2354, 0.0
  %v2359 = vmax.f32 %v2355, 0.0
  %v2360 = vmax.f32 %v2356, 0.0
  %v2361 = vsub.f32 %v2309, %v2325
  %v2362 = vsub.f32 %v2310, %v2326
  %v2363 = vsub.f32 %v2311, %v2327
  %v2364 = vsub.f32 %v2312, %v2328
  %v2365 = vadd.f32 %v2357, 1e-12
  %v2366 = vadd.f32 %v2358, 1e-12
  %v2367 = vadd.f32 %v2359, 1e-12
  %v2368 = vadd.f32 %v2360, 1e-12
  %v2369 = vrsqrt.pop %v2365
  %v2370 = vrsqrt.pop %v2366
  %v2371 = vrsqrt.pop %v2367
  %v2372 = vrsqrt.pop %v2368
  %v2373 = vmul.f32 %v2361, %v2369
  %v2374 = vmul.f32 %v2362, %v2370
  %v2375 = vmul.f32 %v2363, %v2371
  %v2376 = vmul.f32 %v2364, %v2372
  %v2377 = vlaneseq
  %v2378 = vshrl.u32 %v2377, 7
  %v2379 = vsub.s32 4, %v2378
  %v2380 = vrot.slane %v28, %v2379
  %v2381 = vmul.f32 %v2373, %v2380
  %v2382 = vmul.f32 %v2374, %v2380
  %v2383 = vmul.f32 %v2375, %v2380
  %v2384 = vmul.f32 %v2376, %v2380
  %v2385 = vlaneseq
  %v2386 = vshrl.u32 %v2385, 7
  %v2387 = vsub.s32 5, %v2386
  %v2388 = vrot.slane %v28, %v2387
  %v2389 = vadd.f32 %v2381, %v2388
  %v2390 = vadd.f32 %v2382, %v2388
  %v2391 = vadd.f32 %v2383, %v2388
  %v2392 = vadd.f32 %v2384, %v2388
  %v2394 = vrot.slane %v32, 2
  %v2395 = vsel %vm234, %v2394, 0
  %v2398 = vsel %vm234, %v2389, 0
  %v2401 = vsel %vm234, %v2390, 0
  %2403 = vmatprep.subr.mxu0 0.0
  %2404 = vmatpush1.xpose.msra.mxu0 %v2398
  %2405 = vmatprep.subr.mxu0 0.0
  %2406 = vmatpush1.xpose.msra.mxu0 %v2401
  %2407 = vmatprep.subr.mxu0 0.0
  %2408 = vmatpush1.xpose.msra.mxu0 0.0
  %2409 = vmatprep.subr.mxu0 0.0
  %2410 = vmatpush1.xpose.msra.mxu0 0.0
  %2411 = vmatprep.subr.mxu0 0.0
  %2412 = vmatpush1.xpose.msra.mxu0 0.0
  %2413 = vmatprep.subr.mxu0 0.0
  %2414 = vmatpush1.xpose.msra.mxu0 0.0
  %2415 = vmatprep.subr.mxu0 0.0
  %2416 = vmatpush1.xpose.msra.mxu0 0.0
  %2417 = vmatprep.subr.mxu0 0.0
  %2418 = vmatpush1.xpose.msra.mxu0 0.0
  %2419 = vmatprep.subr.mxu0 0.0
  %2420 = vmatpush1.xpose.msra.mxu0 0.0
  %2421 = vmatprep.subr.mxu0 0.0
  %2422 = vmatpush1.xpose.msra.mxu0 0.0
  %2423 = vmatprep.subr.mxu0 0.0
  %2424 = vmatpush1.xpose.msra.mxu0 0.0
  %2425 = vmatprep.subr.mxu0 0.0
  %2426 = vmatpush1.xpose.msra.mxu0 0.0
  %2427 = vmatprep.subr.mxu0 0.0
  %2428 = vmatpush1.xpose.msra.mxu0 0.0
  %2429 = vmatprep.subr.mxu0 0.0
  %2430 = vmatpush1.xpose.msra.mxu0 0.0
  %2431 = vmatprep.subr.mxu0 0.0
  %2432 = vmatpush1.xpose.msra.mxu0 0.0
  %2433 = vmatprep.subr.mxu0 0.0
  %2434 = vmatpush1.xpose.msra.mxu0 0.0
  %2435 = vmatprep.subr.mxu0 0.0
  %2436 = vmatpush1.xpose.msra.mxu0 0.0
  %2437 = vmatprep.subr.mxu0 0.0
  %2438 = vmatpush1.xpose.msra.mxu0 0.0
  %2439 = vmatprep.subr.mxu0 0.0
  %2440 = vmatpush1.xpose.msra.mxu0 0.0
  %2441 = vmatprep.subr.mxu0 0.0
  %2442 = vmatpush1.xpose.msra.mxu0 0.0
  %2443 = vmatprep.subr.mxu0 0.0
  %2444 = vmatpush1.xpose.msra.mxu0 0.0
  %2445 = vmatprep.subr.mxu0 0.0
  %2446 = vmatpush1.xpose.msra.mxu0 0.0
  %2447 = vmatprep.subr.mxu0 0.0
  %2448 = vmatpush1.xpose.msra.mxu0 0.0
  %2449 = vmatprep.subr.mxu0 0.0
  %2450 = vmatpush1.xpose.msra.mxu0 0.0
  %2451 = vmatprep.subr.mxu0 0.0
  %2452 = vmatpush1.xpose.msra.mxu0 0.0
  %2453 = vmatprep.subr.mxu0 0.0
  %2454 = vmatpush1.xpose.msra.mxu0 0.0
  %2455 = vmatprep.subr.mxu0 0.0
  %2456 = vmatpush1.xpose.msra.mxu0 0.0
  %2457 = vmatprep.subr.mxu0 0.0
  %2458 = vmatpush1.xpose.msra.mxu0 0.0
  %2459 = vmatprep.subr.mxu0 0.0
  %2460 = vmatpush1.xpose.msra.mxu0 0.0
  %2461 = vmatprep.subr.mxu0 0.0
  %2462 = vmatpush1.xpose.msra.mxu0 0.0
  %2463 = vmatprep.subr.mxu0 0.0
  %2464 = vmatpush1.xpose.msra.mxu0 0.0
  %2465 = vmatprep.subr.mxu0 0.0
  %2466 = vmatpush1.xpose.msra.mxu0 0.0
  %2467 = vmatprep.mubr.f32.mxu0 0.0
  %2468 = vmatmul.mubr.f32.gmra.mrb[0].mxu0 %v2395
  %v2469 = vpop.f32.mrb[0].mxu0
  %v2470 = vadd.f32 0.0, %v2469
  %v2471 = vpop.f32.mrb[0].mxu0
  %2472 = vdwg.mxu0
  %vm2476 = vcmask 1041408
  %v2477 = vrot.slane %v28, 6
  %v2478 = vrot.slane %v29, 6
  %v2479 = vsel %vm2476, %v2477, %v2478
  %v2480 = vrot.slane %v30, 6
  %v2481 = vsel %vm2476, %v2478, %v2480
  %v2485 = vsel %vm178, %v2470, 0
  %2487 = vmatprep.subr.mxu0 0.0
  %2488 = vmatpush1.msra.mxu0 %v2479
  %2489 = vmatprep.subr.mxu0 0.0
  %2490 = vmatpush1.msra.mxu0 %v2481
  %2491 = vmatprep.subr.mxu0 0.0
  %2492 = vmatpush1.msra.mxu0 0.0
  %2493 = vmatprep.subr.mxu0 0.0
  %2494 = vmatpush1.msra.mxu0 0.0
  %2495 = vmatprep.subr.mxu0 0.0
  %2496 = vmatpush1.msra.mxu0 0.0
  %2497 = vmatprep.subr.mxu0 0.0
  %2498 = vmatpush1.msra.mxu0 0.0
  %2499 = vmatprep.subr.mxu0 0.0
  %2500 = vmatpush1.msra.mxu0 0.0
  %2501 = vmatprep.subr.mxu0 0.0
  %2502 = vmatpush1.msra.mxu0 0.0
  %2503 = vmatprep.subr.mxu0 0.0
  %2504 = vmatpush1.msra.mxu0 0.0
  %2505 = vmatprep.subr.mxu0 0.0
  %2506 = vmatpush1.msra.mxu0 0.0
  %2507 = vmatprep.subr.mxu0 0.0
  %2508 = vmatpush1.msra.mxu0 0.0
  %2509 = vmatprep.subr.mxu0 0.0
  %2510 = vmatpush1.msra.mxu0 0.0
  %2511 = vmatprep.subr.mxu0 0.0
  %2512 = vmatpush1.msra.mxu0 0.0
  %2513 = vmatprep.subr.mxu0 0.0
  %2514 = vmatpush1.msra.mxu0 0.0
  %2515 = vmatprep.subr.mxu0 0.0
  %2516 = vmatpush1.msra.mxu0 0.0
  %2517 = vmatprep.subr.mxu0 0.0
  %2518 = vmatpush1.msra.mxu0 0.0
  %2519 = vmatprep.subr.mxu0 0.0
  %2520 = vmatpush1.msra.mxu0 0.0
  %2521 = vmatprep.subr.mxu0 0.0
  %2522 = vmatpush1.msra.mxu0 0.0
  %2523 = vmatprep.subr.mxu0 0.0
  %2524 = vmatpush1.msra.mxu0 0.0
  %2525 = vmatprep.subr.mxu0 0.0
  %2526 = vmatpush1.msra.mxu0 0.0
  %2527 = vmatprep.subr.mxu0 0.0
  %2528 = vmatpush1.msra.mxu0 0.0
  %2529 = vmatprep.subr.mxu0 0.0
  %2530 = vmatpush1.msra.mxu0 0.0
  %2531 = vmatprep.subr.mxu0 0.0
  %2532 = vmatpush1.msra.mxu0 0.0
  %2533 = vmatprep.subr.mxu0 0.0
  %2534 = vmatpush1.msra.mxu0 0.0
  %2535 = vmatprep.subr.mxu0 0.0
  %2536 = vmatpush1.msra.mxu0 0.0
  %2537 = vmatprep.subr.mxu0 0.0
  %2538 = vmatpush1.msra.mxu0 0.0
  %2539 = vmatprep.subr.mxu0 0.0
  %2540 = vmatpush1.msra.mxu0 0.0
  %2541 = vmatprep.subr.mxu0 0.0
  %2542 = vmatpush1.msra.mxu0 0.0
  %2543 = vmatprep.subr.mxu0 0.0
  %2544 = vmatpush1.msra.mxu0 0.0
  %2545 = vmatprep.subr.mxu0 0.0
  %2546 = vmatpush1.msra.mxu0 0.0
  %2547 = vmatprep.subr.mxu0 0.0
  %2548 = vmatpush1.msra.mxu0 0.0
  %2549 = vmatprep.subr.mxu0 0.0
  %2550 = vmatpush1.msra.mxu0 0.0
  %2551 = vmatprep.mubr.f32.mxu0 0.0
  %2552 = vmatmul.mubr.f32.gmra.mrb[0].mxu0 %v2485
  %v2553 = vpop.f32.mrb[0].mxu0
  %v2554 = vadd.f32 0.0, %v2553
  %v2555 = vpop.f32.mrb[0].mxu0
  %2556 = vdwg.mxu0
  %vm2557 = vcmask 253952
  %2558 = vst.msk [vmem:[#allocation3] sm:$0x1] %vm2557, %v2554
  %v2560 = vsel %vm234, %v2391, 0
  %v2563 = vsel %vm234, %v2392, 0
  %2565 = vmatprep.subr.mxu0 0.0
  %2566 = vmatpush1.xpose.msra.mxu0 %v2560
  %2567 = vmatprep.subr.mxu0 0.0
  %2568 = vmatpush1.xpose.msra.mxu0 %v2563
  %2569 = vmatprep.subr.mxu0 0.0
  %2570 = vmatpush1.xpose.msra.mxu0 0.0
  %2571 = vmatprep.subr.mxu0 0.0
  %2572 = vmatpush1.xpose.msra.mxu0 0.0
  %2573 = vmatprep.subr.mxu0 0.0
  %2574 = vmatpush1.xpose.msra.mxu0 0.0
  %2575 = vmatprep.subr.mxu0 0.0
  %2576 = vmatpush1.xpose.msra.mxu0 0.0
  %2577 = vmatprep.subr.mxu0 0.0
  %2578 = vmatpush1.xpose.msra.mxu0 0.0
  %2579 = vmatprep.subr.mxu0 0.0
  %2580 = vmatpush1.xpose.msra.mxu0 0.0
  %2581 = vmatprep.subr.mxu0 0.0
  %2582 = vmatpush1.xpose.msra.mxu0 0.0
  %2583 = vmatprep.subr.mxu0 0.0
  %2584 = vmatpush1.xpose.msra.mxu0 0.0
  %2585 = vmatprep.subr.mxu0 0.0
  %2586 = vmatpush1.xpose.msra.mxu0 0.0
  %2587 = vmatprep.subr.mxu0 0.0
  %2588 = vmatpush1.xpose.msra.mxu0 0.0
  %2589 = vmatprep.subr.mxu0 0.0
  %2590 = vmatpush1.xpose.msra.mxu0 0.0
  %2591 = vmatprep.subr.mxu0 0.0
  %2592 = vmatpush1.xpose.msra.mxu0 0.0
  %2593 = vmatprep.subr.mxu0 0.0
  %2594 = vmatpush1.xpose.msra.mxu0 0.0
  %2595 = vmatprep.subr.mxu0 0.0
  %2596 = vmatpush1.xpose.msra.mxu0 0.0
  %2597 = vmatprep.subr.mxu0 0.0
  %2598 = vmatpush1.xpose.msra.mxu0 0.0
  %2599 = vmatprep.subr.mxu0 0.0
  %2600 = vmatpush1.xpose.msra.mxu0 0.0
  %2601 = vmatprep.subr.mxu0 0.0
  %2602 = vmatpush1.xpose.msra.mxu0 0.0
  %2603 = vmatprep.subr.mxu0 0.0
  %2604 = vmatpush1.xpose.msra.mxu0 0.0
  %2605 = vmatprep.subr.mxu0 0.0
  %2606 = vmatpush1.xpose.msra.mxu0 0.0
  %2607 = vmatprep.subr.mxu0 0.0
  %2608 = vmatpush1.xpose.msra.mxu0 0.0
  %2609 = vmatprep.subr.mxu0 0.0
  %2610 = vmatpush1.xpose.msra.mxu0 0.0
  %2611 = vmatprep.subr.mxu0 0.0
  %2612 = vmatpush1.xpose.msra.mxu0 0.0
  %2613 = vmatprep.subr.mxu0 0.0
  %2614 = vmatpush1.xpose.msra.mxu0 0.0
  %2615 = vmatprep.subr.mxu0 0.0
  %2616 = vmatpush1.xpose.msra.mxu0 0.0
  %2617 = vmatprep.subr.mxu0 0.0
  %2618 = vmatpush1.xpose.msra.mxu0 0.0
  %2619 = vmatprep.subr.mxu0 0.0
  %2620 = vmatpush1.xpose.msra.mxu0 0.0
  %2621 = vmatprep.subr.mxu0 0.0
  %2622 = vmatpush1.xpose.msra.mxu0 0.0
  %2623 = vmatprep.subr.mxu0 0.0
  %2624 = vmatpush1.xpose.msra.mxu0 0.0
  %2625 = vmatprep.subr.mxu0 0.0
  %2626 = vmatpush1.xpose.msra.mxu0 0.0
  %2627 = vmatprep.subr.mxu0 0.0
  %2628 = vmatpush1.xpose.msra.mxu0 0.0
  %2629 = vmatprep.mubr.f32.mxu0 0.0
  %2630 = vmatmul.mubr.f32.gmra.mrb[0].mxu0 %v2395
  %v2631 = vpop.f32.mrb[0].mxu0
  %v2632 = vadd.f32 0.0, %v2631
  %v2633 = vpop.f32.mrb[0].mxu0
  %2634 = vdwg.mxu0
  %v2636 = vsel %vm178, %v2632, 0
  %2638 = vmatprep.subr.mxu0 0.0
  %2639 = vmatpush1.msra.mxu0 %v2479
  %2640 = vmatprep.subr.mxu0 0.0
  %2641 = vmatpush1.msra.mxu0 %v2481
  %2642 = vmatprep.subr.mxu0 0.0
  %2643 = vmatpush1.msra.mxu0 0.0
  %2644 = vmatprep.subr.mxu0 0.0
  %2645 = vmatpush1.msra.mxu0 0.0
  %2646 = vmatprep.subr.mxu0 0.0
  %2647 = vmatpush1.msra.mxu0 0.0
  %2648 = vmatprep.subr.mxu0 0.0
  %2649 = vmatpush1.msra.mxu0 0.0
  %2650 = vmatprep.subr.mxu0 0.0
  %2651 = vmatpush1.msra.mxu0 0.0
  %2652 = vmatprep.subr.mxu0 0.0
  %2653 = vmatpush1.msra.mxu0 0.0
  %2654 = vmatprep.subr.mxu0 0.0
  %2655 = vmatpush1.msra.mxu0 0.0
  %2656 = vmatprep.subr.mxu0 0.0
  %2657 = vmatpush1.msra.mxu0 0.0
  %2658 = vmatprep.subr.mxu0 0.0
  %2659 = vmatpush1.msra.mxu0 0.0
  %2660 = vmatprep.subr.mxu0 0.0
  %2661 = vmatpush1.msra.mxu0 0.0
  %2662 = vmatprep.subr.mxu0 0.0
  %2663 = vmatpush1.msra.mxu0 0.0
  %2664 = vmatprep.subr.mxu0 0.0
  %2665 = vmatpush1.msra.mxu0 0.0
  %2666 = vmatprep.subr.mxu0 0.0
  %2667 = vmatpush1.msra.mxu0 0.0
  %2668 = vmatprep.subr.mxu0 0.0
  %2669 = vmatpush1.msra.mxu0 0.0
  %2670 = vmatprep.subr.mxu0 0.0
  %2671 = vmatpush1.msra.mxu0 0.0
  %2672 = vmatprep.subr.mxu0 0.0
  %2673 = vmatpush1.msra.mxu0 0.0
  %2674 = vmatprep.subr.mxu0 0.0
  %2675 = vmatpush1.msra.mxu0 0.0
  %2676 = vmatprep.subr.mxu0 0.0
  %2677 = vmatpush1.msra.mxu0 0.0
  %2678 = vmatprep.subr.mxu0 0.0
  %2679 = vmatpush1.msra.mxu0 0.0
  %2680 = vmatprep.subr.mxu0 0.0
  %2681 = vmatpush1.msra.mxu0 0.0
  %2682 = vmatprep.subr.mxu0 0.0
  %2683 = vmatpush1.msra.mxu0 0.0
  %2684 = vmatprep.subr.mxu0 0.0
  %2685 = vmatpush1.msra.mxu0 0.0
  %2686 = vmatprep.subr.mxu0 0.0
  %2687 = vmatpush1.msra.mxu0 0.0
  %2688 = vmatprep.subr.mxu0 0.0
  %2689 = vmatpush1.msra.mxu0 0.0
  %2690 = vmatprep.subr.mxu0 0.0
  %2691 = vmatpush1.msra.mxu0 0.0
  %2692 = vmatprep.subr.mxu0 0.0
  %2693 = vmatpush1.msra.mxu0 0.0
  %2694 = vmatprep.subr.mxu0 0.0
  %2695 = vmatpush1.msra.mxu0 0.0
  %2696 = vmatprep.subr.mxu0 0.0
  %2697 = vmatpush1.msra.mxu0 0.0
  %2698 = vmatprep.subr.mxu0 0.0
  %2699 = vmatpush1.msra.mxu0 0.0
  %2700 = vmatprep.subr.mxu0 0.0
  %2701 = vmatpush1.msra.mxu0 0.0
  %2702 = vmatprep.mubr.f32.mxu0 0.0
  %2703 = vmatmul.mubr.f32.gmra.mrb[0].mxu0 %v2636
  %v2704 = vpop.f32.mrb[0].mxu0
  %v2705 = vadd.f32 0.0, %v2704
  %v2706 = vpop.f32.mrb[0].mxu0
  %2707 = vdwg.mxu0
  %2708 = vst.msk [vmem:[#allocation3 + $0x1] sm:$0x1] %vm2557, %v2705
  %v2709 = vld [vmem:[#allocation3] sm:$0x3]
  %v2710 = vlaneseq
  %v2711 = vshrl.u32 %v2710, 7
  %v2712 = vsub.s32 6, %v2711
  %v2713 = vrot.slane %v31, %v2712
  %v2714 = vadd.f32 %v2709, %v2713
  %v2715 = vld [vmem:[%s2] sm:$0x3]
  %v2716 = vlaneseq
  %v2717 = vshrl.u32 %v2716, 7
  %v2718 = vsub.s32 7, %v2717
  %v2719 = vrot.slane %v31, %v2718
  %v2721 = vrot.slane %v31, 6
  %v2722 = vsel %vm2476, %v2480, %v2721
  %vm2724 = vcmask 64512
  %v2726 = vsel %vm2724, %v2715, 0
  %2728 = vmatprep.subr.mxu0 0.0
  %2729 = vmatpush1.msra.mxu0 %v2722
  %2730 = vmatprep.subr.mxu0 0.0
  %2731 = vmatpush1.msra.mxu0 0.0
  %2732 = vmatprep.subr.mxu0 0.0
  %2733 = vmatpush1.msra.mxu0 0.0
  %2734 = vmatprep.subr.mxu0 0.0
  %2735 = vmatpush1.msra.mxu0 0.0
  %2736 = vmatprep.subr.mxu0 0.0
  %2737 = vmatpush1.msra.mxu0 0.0
  %2738 = vmatprep.subr.mxu0 0.0
  %2739 = vmatpush1.msra.mxu0 0.0
  %2740 = vmatprep.subr.mxu0 0.0
  %2741 = vmatpush1.msra.mxu0 0.0
  %2742 = vmatprep.subr.mxu0 0.0
  %2743 = vmatpush1.msra.mxu0 0.0
  %2744 = vmatprep.subr.mxu0 0.0
  %2745 = vmatpush1.msra.mxu0 0.0
  %2746 = vmatprep.subr.mxu0 0.0
  %2747 = vmatpush1.msra.mxu0 0.0
  %2748 = vmatprep.subr.mxu0 0.0
  %2749 = vmatpush1.msra.mxu0 0.0
  %2750 = vmatprep.subr.mxu0 0.0
  %2751 = vmatpush1.msra.mxu0 0.0
  %2752 = vmatprep.subr.mxu0 0.0
  %2753 = vmatpush1.msra.mxu0 0.0
  %2754 = vmatprep.subr.mxu0 0.0
  %2755 = vmatpush1.msra.mxu0 0.0
  %2756 = vmatprep.subr.mxu0 0.0
  %2757 = vmatpush1.msra.mxu0 0.0
  %2758 = vmatprep.subr.mxu0 0.0
  %2759 = vmatpush1.msra.mxu0 0.0
  %2760 = vmatprep.subr.mxu0 0.0
  %2761 = vmatpush1.msra.mxu0 0.0
  %2762 = vmatprep.subr.mxu0 0.0
  %2763 = vmatpush1.msra.mxu0 0.0
  %2764 = vmatprep.subr.mxu0 0.0
  %2765 = vmatpush1.msra.mxu0 0.0
  %2766 = vmatprep.subr.mxu0 0.0
  %2767 = vmatpush1.msra.mxu0 0.0
  %2768 = vmatprep.subr.mxu0 0.0
  %2769 = vmatpush1.msra.mxu0 0.0
  %2770 = vmatprep.subr.mxu0 0.0
  %2771 = vmatpush1.msra.mxu0 0.0
  %2772 = vmatprep.subr.mxu0 0.0
  %2773 = vmatpush1.msra.mxu0 0.0
  %2774 = vmatprep.subr.mxu0 0.0
  %2775 = vmatpush1.msra.mxu0 0.0
  %2776 = vmatprep.subr.mxu0 0.0
  %2777 = vmatpush1.msra.mxu0 0.0
  %2778 = vmatprep.subr.mxu0 0.0
  %2779 = vmatpush1.msra.mxu0 0.0
  %2780 = vmatprep.subr.mxu0 0.0
  %2781 = vmatpush1.msra.mxu0 0.0
  %2782 = vmatprep.subr.mxu0 0.0
  %2783 = vmatpush1.msra.mxu0 0.0
  %2784 = vmatprep.subr.mxu0 0.0
  %2785 = vmatpush1.msra.mxu0 0.0
  %2786 = vmatprep.subr.mxu0 0.0
  %2787 = vmatpush1.msra.mxu0 0.0
  %2788 = vmatprep.subr.mxu0 0.0
  %2789 = vmatpush1.msra.mxu0 0.0
  %2790 = vmatprep.subr.mxu0 0.0
  %2791 = vmatpush1.msra.mxu0 0.0
  %2792 = vmatprep.mubr.f32.mxu0 0.0
  %2793 = vmatmul.mubr.f32.gmra.mrb[0].mxu0 %v2726
  %v2794 = vpop.f32.mrb[0].mxu0
  %v2795 = vadd.f32 %v2719, %v2794
  %v2796 = vpop.f32.mrb[0].mxu0
  %2797 = vdwg.mxu0
  %v2798 = vmax.f32 %v2714, 0.0
  %v2799 = vmax.f32 %v2795, 0.0
  %v2800 = vlaneseq
  %v2801 = vshrl.u32 %v2800, 7
  %v2802 = vsub.s32 1, %v2801
  %v2803 = vrot.slane %v32, %v2802
  %v2804 = vmul.f32 %v2799, %v2803
  %vm2805 = vcmask 254976
  %v2806 = vsel %vm2805, %v2804, 0.0
  %2807 = vadd.xlane.f32.xlu0 %v2806
  %v2808 = vpop.xlane.xlu0 %2807
  %v2809 = vlaneseq
  %v2810 = vshrl.u32 %v2809, 7
  %v2811 = vsub.s32 0, %v2810
  %v2812 = vrot.slane %v32, %v2811
  %v2813 = vmul.f32 %v2798, %v2812
  %v2814 = vsel %vm2805, %v2813, 0.0
  %2815 = vadd.xlane.f32.xlu0 %v2814
  %v2816 = vpop.xlane.xlu0 %2815
  %v2817 = vadd.f32 %v2816, %v2808
  %v2818 = vlaneseq
  %v2819 = vshrl.u32 %v2818, 7
  %v2820 = vsub.s32 3, %v2819
  %v2821 = vrot.slane %v32, %v2820
  %v2822 = vadd.f32 %v2817, %v2821
  %v2823 = vxor.u32 %v2822, 2147483648
  %v2824 = vmul.f32 %v2823, 1.442695
  %v2825 = vpow.pop %v2824
  %v2826 = vadd.f32 %v2825, 1.0
  %v2827 = vrcp.pop %v2826
  %v2828 = vmul.f32 1.0, %v2827
  %vm2829 = vcmask 1024
  %2830 = vst.msk [vmem:[%s7] sm:$0x3] %vm2829, %v2828
  // Predicated region
  $region30: #{tinybert_classifier_forward.1} parent=0 // pred_check
    _
  $region31: #{tinybert_classifier_forward.1} parent=0 // pred_check_branch
    %2832 = sbr.rel (0) target = $region33
  $region32: #{tinybert_classifier_forward.1} parent=0 // pred_region
    _
  $region33: #{tinybert_classifier_forward.1} parent=0 // pred_fallthru
    _
  // Predicated region
  $region34: #{tinybert_classifier_forward.1} parent=0 // pred_check
    _
  $region35: #{tinybert_classifier_forward.1} parent=0 // pred_check_branch
    %2834 = sbr.rel (0) target = $region37
  $region36: #{tinybert_classifier_forward.1} parent=0 // pred_region
    _
  $region37: #{tinybert_classifier_forward.1} parent=0 // pred_fallthru
    _

</llo_original>
